<compile_context>
chip_gen: v5e
topology: v5e:2x2
jax: 0.10.0
libtpu: 0.0.40
codegen_flags: <defaults>
</compile_context>

<pallas_src>
import numpy as np
import jax
import jax.numpy as jnp
from jax import lax
from jax.experimental import pallas as pl
from jax.experimental.pallas import tpu as pltpu


# Flip to jnp.bfloat16 on v6e/v7x (accumulation stays f32 via
# preferred_element_type); f32 keeps the 1e-3 check exact everywhere.
MXU_DTYPE = jnp.float32

_LANE = 128


def _round_up(v, m=_LANE):
    return ((v + m - 1) // m) * m


# ---------------------------------------------------------------------------
# trace-time 0/1 constants (numpy, tiny)
# ---------------------------------------------------------------------------
def _tap_masks(n, h, w, lanes):
    """[9, lanes] 0/1 edge masks for the 9 taps of a 'same' 3x3 conv on the
    batch-folded flat layout j = b*h*w + y*w + x.  Lanes >= n*h*w are padding
    and stay 0, so rolled-in junk (other sample / opposite edge / pad lanes)
    never contributes."""
    hw = h * w
    m = np.zeros((9, lanes), np.float32)
    for t in range(9):
        dy, dx = t // 3 - 1, t % 3 - 1
        for b in range(n):
            for y in range(h):
                if not 0 <= y + dy < h:
                    continue
                for x in range(w):
                    if 0 <= x + dx < w:
                        m[t, b * hw + y * w + x] = 1.0
    return jnp.asarray(m)


def _downsel_matrix(n, h, w, lanes_in, lanes_out):
    """[lanes_in, lanes_out] 0/1 operator picking every other row/column of a
    dense full-res conv output (stride-2 conv done on the MXU)."""
    hw, ho, wo = h * w, h // 2, w // 2
    s = np.zeros((lanes_in, lanes_out), np.float32)
    for b in range(n):
        for yo in range(ho):
            for xo in range(wo):
                s[b * hw + (2 * yo) * w + 2 * xo,
                  b * ho * wo + yo * wo + xo] = 1.0
    return jnp.asarray(s)


def _upsample_matrix(n, h, w, lanes_in, lanes_out):
    """[lanes_in, lanes_out] 0/1 operator for nearest-neighbour 2x upsampling.
    Rows belonging to padding lanes are all-zero, discarding any junk there."""
    hw, ho, wo = h * w, 2 * h, 2 * w
    u = np.zeros((lanes_in, lanes_out), np.float32)
    for b in range(n):
        for yo in range(ho):
            for xo in range(wo):
                u[b * hw + (yo // 2) * w + xo // 2,
                  b * ho * wo + yo * wo + xo] = 1.0
    return jnp.asarray(u)


# ---------------------------------------------------------------------------
# fused kernel
# ---------------------------------------------------------------------------
def _make_fused_kernel(wf, wh, wq, lf, lh, lq):
    """wf/wh/wq: per-sample image row widths; lf/lh/lq: lane widths."""

    def conv3x3(x, w2_ref, b_ref, m_ref, row_w, lanes):
        """3x3 'same' conv on a [cin, lanes] activation.  Shifted taps via
        pltpu.roll on the lane axis + 0/1 edge masks; one im2col MXU matmul
        with K = 9*cin."""
        cin = x.shape[0]
        taps = []
        for t in range(9):
            d = (t // 3 - 1) * row_w + (t % 3 - 1)
            xt = x if d == 0 else pltpu.roll(x, shift=(-d) % lanes, axis=1)
            taps.append((xt * m_ref[pl.ds(t, 1), :]).astype(MXU_DTYPE))
        if cin % 8 == 0:
            # single deep-K matmul (fills the MXU far better than 9 K<=48 taps)
            x9 = jnp.concatenate(taps, axis=0)               # [9*cin, lanes]
            y = jnp.dot(w2_ref[...].astype(MXU_DTYPE), x9,
                        preferred_element_type=jnp.float32)
        else:
            # tiny-cin path (preconv, cin=1): avoid a sublane-unaligned concat;
            # accumulate 9 small matmuls in f32 instead.
            y = jnp.zeros((w2_ref.shape[0], lanes), jnp.float32)
            for t in range(9):
                wt = w2_ref[:, pl.ds(t * cin, cin)].astype(MXU_DTYPE)
                y = y + jnp.dot(wt, taps[t],
                                preferred_element_type=jnp.float32)
        return y + b_ref[...]

    def mm(a, op_ref):
        # activation [c, l_in] x 0/1 operator [l_in, l_out]  (MXU gather)
        return jnp.dot(a.astype(MXU_DTYPE), op_ref[...].astype(MXU_DTYPE),
                       preferred_element_type=jnp.float32)

    def kernel(x_ref, mf_ref, mh_ref, mq_ref, sel1_ref, sel2_ref,
               up2_ref, up1_ref,
               w_pre, b_pre,
               w_b1, b_b1, s_b1, t_b1,
               w_d1, b_d1,
               w_b2, b_b2, s_b2, t_b2,
               w_d2, b_d2,
               w_bk, b_bk, s_bk, t_bk,
               w_b3, b_b3,
               w_b4, b_b4,
               w_l, b_l,
               o_ref):
        x0 = x_ref[...]                                         # [cin, lf]

        # preconv: 3x3, cin -> 16, full res
        x11 = conv3x3(x0, w_pre, b_pre, mf_ref, wf, lf)

        # body1 (residual): x21 = x11 + BN(conv(relu(x11)))
        y = conv3x3(jnp.maximum(x11, 0.0), w_b1, b_b1, mf_ref, wf, lf)
        x21 = x11 + (y * s_b1[...] + t_b1[...])

        # down1: stride-2 conv 16->32 = dense conv + 0/1 selection matmul
        x31 = mm(conv3x3(x21, w_d1, b_d1, mf_ref, wf, lf), sel1_ref)   # [32, lh]

        # body2 (residual)
        y = conv3x3(jnp.maximum(x31, 0.0), w_b2, b_b2, mh_ref, wh, lh)
        x41 = x31 + (y * s_b2[...] + t_b2[...])

        # down2: stride-2 conv 32->48
        x51 = mm(conv3x3(x41, w_d2, b_d2, mh_ref, wh, lh), sel2_ref)   # [48, lq]

        # bottleneck (residual).  Quarter-res data lives in the first n*h4*w4
        # lanes of lq; padding lanes hold junk after the residual add, but
        # up2's all-zero rows for those lanes discard it.
        y = conv3x3(jnp.maximum(x51, 0.0), w_bk, b_bk, mq_ref, wq, lq)
        x_bn = x51 + (y * s_bk[...] + t_bk[...])

        # up2 (nearest 2x as 0/1 matmul) + body3 + skip(x41)
        x52 = mm(x_bn, up2_ref)                                        # [48, lh]
        x42 = x41 + conv3x3(x52, w_b3, b_b3, mh_ref, wh, lh)           # [32, lh]

        # up1 + body4 + skip(x21)
        x32 = mm(x42, up1_ref)                                         # [32, lf]
        x22 = x21 + conv3x3(x32, w_b4, b_b4, mf_ref, wf, lf)           # [16, lf]

        # last: 1x1 conv 16 -> out_ch (lane-dense output write)
        xout = jnp.dot(w_l[...].astype(MXU_DTYPE), x22.astype(MXU_DTYPE),
                       preferred_element_type=jnp.float32) + b_l[...]
        o_ref[...] = xout.astype(o_ref.dtype)

    return kernel


# ---------------------------------------------------------------------------
# wrapper
# ---------------------------------------------------------------------------
def denoise_net_pallas(x, p):
    """x: NHWC [n, h, w, cin];  p: dict of HWIO conv weights + folded BN."""
    n, h, w, cin = x.shape
    assert h % 4 == 0 and w % 4 == 0
    h2, w2, h4, w4 = h // 2, w // 2, h // 4, w // 4

    nf, nh, nq = n * h * w, n * h2 * w2, n * h4 * w4
    lf, lh, lq = _round_up(nf), _round_up(nh), _round_up(nq)

    # weights: HWIO [3,3,ci,co] -> im2col form [co, 9*ci] (tap-major columns)
    def conv_w(name):
        wt, b = p[name]
        kh, kw_, ci, co = wt.shape
        wim = jnp.transpose(wt.reshape(kh * kw_, ci, co), (2, 0, 1))
        return (wim.reshape(co, kh * kw_ * ci).astype(jnp.float32),
                b.reshape(co, 1).astype(jnp.float32))

    def bn_p(name):
        s, t = p[name + '_bn']
        c = s.shape[0]
        return (s.reshape(c, 1).astype(jnp.float32),
                t.reshape(c, 1).astype(jnp.float32))

    w_pre, b_pre = conv_w('preconv')
    w_b1, b_b1 = conv_w('body1'); s_b1, t_b1 = bn_p('body1')
    w_d1, b_d1 = conv_w('down1')
    w_b2, b_b2 = conv_w('body2'); s_b2, t_b2 = bn_p('body2')
    w_d2, b_d2 = conv_w('down2')
    w_bk, b_bk = conv_w('bneck'); s_bk, t_bk = bn_p('bneck')
    w_b3, b_b3 = conv_w('body3')
    w_b4, b_b4 = conv_w('body4')
    w_l, b_l = conv_w('last')                       # [out_ch, 16], [out_ch, 1]
    out_ch = w_l.shape[0]

    # trace-time 0/1 constants
    mf = _tap_masks(n, h, w, lf)
    mh = _tap_masks(n, h2, w2, lh)
    mq = _tap_masks(n, h4, w4, lq)
    sel1 = _downsel_matrix(n, h, w, lf, lh)
    sel2 = _downsel_matrix(n, h2, w2, lh, lq)
    up2m = _upsample_matrix(n, h4, w4, lq, lh)
    up1m = _upsample_matrix(n, h2, w2, lh, lf)

    # activations: [C, N*H*W] -- channels on sublanes, flat batch+spatial on
    # lanes -> every op / store / VMEM tile is lane-dense.
    x2d = jnp.transpose(x, (3, 0, 1, 2)).reshape(cin, nf)
    if lf > nf:
        x2d = jnp.pad(x2d, ((0, 0), (0, lf - nf)))

    kernel = _make_fused_kernel(w, w2, w4, lf, lh, lq)

    # No grid: whole (tiny) net in one invocation, batch folded into lanes ->
    # zero per-grid-step overhead on single-TC v5e/v6e.  On v7x a 2-way
    # "parallel" grid over the batch could be reintroduced for the 2nd TC.
    out2d = pl.pallas_call(
        kernel,
        out_shape=jax.ShapeDtypeStruct((out_ch, lf), x.dtype),
    )(x2d, mf, mh, mq, sel1, sel2, up2m, up1m,
      w_pre, b_pre,
      w_b1, b_b1, s_b1, t_b1,
      w_d1, b_d1,
      w_b2, b_b2, s_b2, t_b2,
      w_d2, b_d2,
      w_bk, b_bk, s_bk, t_bk,
      w_b3, b_b3,
      w_b4, b_b4,
      w_l, b_l)

    out2d = out2d[:, :nf].reshape(out_ch, n, h, w)
    return jnp.transpose(out2d, (1, 2, 3, 0))


# ---------------------------------------------------------------------------
# Parameters (deterministic synthetic init; shapes from DenoiseNet.__init__)
# ---------------------------------------------------------------------------
def init_params(key, in_ch=1, out_ch=1):
    def conv_init(k, kh, kw, cin, cout):
        kw_, kb_ = jax.random.split(k)
        fan_in = kh * kw * cin
        w = jax.random.normal(kw_, (kh, kw, cin, cout), jnp.float32) / np.sqrt(fan_in)
        b = 0.1 * jax.random.normal(kb_, (cout,), jnp.float32)
        return w, b

    keys = jax.random.split(key, 9)
    p = {
        'preconv': conv_init(keys[0], 3, 3, in_ch, 16),
        'body1':   conv_init(keys[1], 3, 3, 16, 16),
        'down1':   conv_init(keys[2], 3, 3, 16, 32),
        'body2':   conv_init(keys[3], 3, 3, 32, 32),
        'down2':   conv_init(keys[4], 3, 3, 32, 48),
        'bneck':   conv_init(keys[5], 3, 3, 48, 48),
        'body3':   conv_init(keys[6], 3, 3, 48, 32),
        'body4':   conv_init(keys[7], 3, 3, 32, 16),
        'last':    conv_init(keys[8], 1, 1, 16, out_ch),
    }
    # BatchNorm2d eval-mode with PyTorch defaults (gamma=1, beta=0, running
    # mean=0, var=1, eps=1e-5) folded to per-channel scale/shift.
    eps = 1e-5
    for name, c in (('body1', 16), ('body2', 32), ('bneck', 48)):
        gamma = jnp.ones((c,), jnp.float32)
        beta = jnp.zeros((c,), jnp.float32)
        mean = jnp.zeros((c,), jnp.float32)
        var = jnp.ones((c,), jnp.float32)
        scale = gamma / jnp.sqrt(var + eps)
        shift = beta - mean * scale
        p[name + '_bn'] = (scale, shift)
    return p


# ---------------------------------------------------------------------------
# Pure-JAX reference (same math) for the correctness check
# ---------------------------------------------------------------------------
def upsample_nearest_2x(x):
    x = jnp.repeat(x, 2, axis=1)
    x = jnp.repeat(x, 2, axis=2)
    return x


def _conv_ref(x, w, b, stride=1, padding=1):
    y = lax.conv_general_dilated(
        x, w, window_strides=(stride, stride),
        padding=((padding, padding), (padding, padding)),
        dimension_numbers=('NHWC', 'HWIO', 'NHWC'),
        precision=lax.Precision.HIGHEST)
    return y + b


def denoise_net_ref(x, p):
    def resblock(z, name):
        w, b = p[name]; s, sh = p[name + '_bn']
        y = _conv_ref(jnp.maximum(z, 0.0), w, b)
        return z + (y * s + sh)

    w, b = p['preconv']; x11 = _conv_ref(x, w, b)
    x21 = resblock(x11, 'body1')
    w, b = p['down1']; x31 = _conv_ref(x21, w, b, stride=2)
    x41 = resblock(x31, 'body2')
    w, b = p['down2']; x51 = _conv_ref(x41, w, b, stride=2)
    x_bn = resblock(x51, 'bneck')
    x52 = upsample_nearest_2x(x_bn)
    w, b = p['body3']; x42 = x41 + _conv_ref(x52, w, b)
    x32 = upsample_nearest_2x(x42)
    w, b = p['body4']; x22 = x21 + _conv_ref(x32, w, b)
    w, b = p['last']; xout = _conv_ref(x22, w, b, padding=0)
    return xout


if __name__ == "__main__":
    key = jax.random.PRNGKey(0)
    kx, kp = jax.random.split(key)

    # NCHW (2, 1, 16, 16) in the PyTorch module -> NHWC (2, 16, 16, 1) here.
    N, H, W, C_IN = 2, 16, 16, 1
    x = jax.random.normal(kx, (N, H, W, C_IN), jnp.float32)
    params = init_params(kp, in_ch=C_IN, out_ch=1)

    out = jax.block_until_ready(jax.jit(denoise_net_pallas)(x, params))
    ref = jax.block_until_ready(denoise_net_ref(x, params))

    assert out.shape == (N, H, W, 1) and out.dtype == jnp.float32
    np.testing.assert_allclose(np.asarray(out), np.asarray(ref),
                               atol=1e-3, rtol=1e-3)
    print("KERNEL_OK")
</pallas_src>

<mosaic_0001>
module attributes {stable_mosaic.version = 11 : i64} {
  func.func @kernel(%arg0: memref<1x512xf32, #tpu.memory_space<vmem>>, %arg1: memref<9x512xf32, #tpu.memory_space<vmem>>, %arg2: memref<9x128xf32, #tpu.memory_space<vmem>>, %arg3: memref<9x128xf32, #tpu.memory_space<vmem>>, %arg4: memref<512x128xf32, #tpu.memory_space<vmem>>, %arg5: memref<128x128xf32, #tpu.memory_space<vmem>>, %arg6: memref<128x128xf32, #tpu.memory_space<vmem>>, %arg7: memref<128x512xf32, #tpu.memory_space<vmem>>, %arg8: memref<16x9xf32, #tpu.memory_space<vmem>>, %arg9: memref<16x1xf32, #tpu.memory_space<vmem>>, %arg10: memref<16x144xf32, #tpu.memory_space<vmem>>, %arg11: memref<16x1xf32, #tpu.memory_space<vmem>>, %arg12: memref<16x1xf32, #tpu.memory_space<vmem>>, %arg13: memref<16x1xf32, #tpu.memory_space<vmem>>, %arg14: memref<32x144xf32, #tpu.memory_space<vmem>>, %arg15: memref<32x1xf32, #tpu.memory_space<vmem>>, %arg16: memref<32x288xf32, #tpu.memory_space<vmem>>, %arg17: memref<32x1xf32, #tpu.memory_space<vmem>>, %arg18: memref<32x1xf32, #tpu.memory_space<vmem>>, %arg19: memref<32x1xf32, #tpu.memory_space<vmem>>, %arg20: memref<48x288xf32, #tpu.memory_space<vmem>>, %arg21: memref<48x1xf32, #tpu.memory_space<vmem>>, %arg22: memref<48x432xf32, #tpu.memory_space<vmem>>, %arg23: memref<48x1xf32, #tpu.memory_space<vmem>>, %arg24: memref<48x1xf32, #tpu.memory_space<vmem>>, %arg25: memref<48x1xf32, #tpu.memory_space<vmem>>, %arg26: memref<32x432xf32, #tpu.memory_space<vmem>>, %arg27: memref<32x1xf32, #tpu.memory_space<vmem>>, %arg28: memref<16x288xf32, #tpu.memory_space<vmem>>, %arg29: memref<16x1xf32, #tpu.memory_space<vmem>>, %arg30: memref<1x16xf32, #tpu.memory_space<vmem>>, %arg31: memref<1x1xf32, #tpu.memory_space<vmem>>, %arg32: memref<1x512xf32, #tpu.memory_space<vmem>>) attributes {dimension_semantics = [], scalar_prefetch = 0 : i64, scratch_operands = 0 : i64, tpu.core_type = #tpu.core_type<tc>} {
    %c0 = arith.constant 0 : index
    %c0_0 = arith.constant 0 : index
    %0 = vector.load %arg0[%c0, %c0_0] : memref<1x512xf32, #tpu.memory_space<vmem>>, vector<1x512xf32>
    %c17_i32 = arith.constant 17 : i32
    %1 = tpu.dynamic_rotate %0 by %c17_i32 dim 1 : vector<1x512xf32>, i32 -> vector<1x512xf32>
    %c0_1 = arith.constant 0 : index
    %c0_2 = arith.constant 0 : index
    %2 = vector.load %arg1[%c0_1, %c0_2] : memref<9x512xf32, #tpu.memory_space<vmem>>, vector<1x512xf32>
    %3 = arith.mulf %1, %2 : vector<1x512xf32>
    %c16_i32 = arith.constant 16 : i32
    %4 = tpu.dynamic_rotate %0 by %c16_i32 dim 1 : vector<1x512xf32>, i32 -> vector<1x512xf32>
    %c1 = arith.constant 1 : index
    %c0_3 = arith.constant 0 : index
    %5 = vector.load %arg1[%c1, %c0_3] : memref<9x512xf32, #tpu.memory_space<vmem>>, vector<1x512xf32>
    %6 = arith.mulf %4, %5 : vector<1x512xf32>
    %c15_i32 = arith.constant 15 : i32
    %7 = tpu.dynamic_rotate %0 by %c15_i32 dim 1 : vector<1x512xf32>, i32 -> vector<1x512xf32>
    %c2 = arith.constant 2 : index
    %c0_4 = arith.constant 0 : index
    %8 = vector.load %arg1[%c2, %c0_4] : memref<9x512xf32, #tpu.memory_space<vmem>>, vector<1x512xf32>
    %9 = arith.mulf %7, %8 : vector<1x512xf32>
    %c1_i32 = arith.constant 1 : i32
    %10 = tpu.dynamic_rotate %0 by %c1_i32 dim 1 : vector<1x512xf32>, i32 -> vector<1x512xf32>
    %c3 = arith.constant 3 : index
    %c0_5 = arith.constant 0 : index
    %11 = vector.load %arg1[%c3, %c0_5] : memref<9x512xf32, #tpu.memory_space<vmem>>, vector<1x512xf32>
    %12 = arith.mulf %10, %11 : vector<1x512xf32>
    %c4 = arith.constant 4 : index
    %c0_6 = arith.constant 0 : index
    %13 = vector.load %arg1[%c4, %c0_6] : memref<9x512xf32, #tpu.memory_space<vmem>>, vector<1x512xf32>
    %14 = arith.mulf %0, %13 : vector<1x512xf32>
    %c511_i32 = arith.constant 511 : i32
    %15 = tpu.dynamic_rotate %0 by %c511_i32 dim 1 : vector<1x512xf32>, i32 -> vector<1x512xf32>
    %c5 = arith.constant 5 : index
    %c0_7 = arith.constant 0 : index
    %16 = vector.load %arg1[%c5, %c0_7] : memref<9x512xf32, #tpu.memory_space<vmem>>, vector<1x512xf32>
    %17 = arith.mulf %15, %16 : vector<1x512xf32>
    %c497_i32 = arith.constant 497 : i32
    %18 = tpu.dynamic_rotate %0 by %c497_i32 dim 1 : vector<1x512xf32>, i32 -> vector<1x512xf32>
    %c6 = arith.constant 6 : index
    %c0_8 = arith.constant 0 : index
    %19 = vector.load %arg1[%c6, %c0_8] : memref<9x512xf32, #tpu.memory_space<vmem>>, vector<1x512xf32>
    %20 = arith.mulf %18, %19 : vector<1x512xf32>
    %c496_i32 = arith.constant 496 : i32
    %21 = tpu.dynamic_rotate %0 by %c496_i32 dim 1 : vector<1x512xf32>, i32 -> vector<1x512xf32>
    %c7 = arith.constant 7 : index
    %c0_9 = arith.constant 0 : index
    %22 = vector.load %arg1[%c7, %c0_9] : memref<9x512xf32, #tpu.memory_space<vmem>>, vector<1x512xf32>
    %23 = arith.mulf %21, %22 : vector<1x512xf32>
    %c495_i32 = arith.constant 495 : i32
    %24 = tpu.dynamic_rotate %0 by %c495_i32 dim 1 : vector<1x512xf32>, i32 -> vector<1x512xf32>
    %c8 = arith.constant 8 : index
    %c0_10 = arith.constant 0 : index
    %25 = vector.load %arg1[%c8, %c0_10] : memref<9x512xf32, #tpu.memory_space<vmem>>, vector<1x512xf32>
    %26 = arith.mulf %24, %25 : vector<1x512xf32>
    %cst = arith.constant 0.000000e+00 : f32
    %27 = vector.broadcast %cst : f32 to vector<16x512xf32>
    %c0_11 = arith.constant 0 : index
    %c0_12 = arith.constant 0 : index
    %28 = vector.load %arg8[%c0_11, %c0_12] : memref<16x9xf32, #tpu.memory_space<vmem>>, vector<16x1xf32>
    %cst_13 = arith.constant dense<0.000000e+00> : vector<16x512xf32>
    %29 = tpu.matmul %28, %3, %cst_13 {dimension_numbers = #tpu.dot_dimension_numbers<[1], [0], [0], [1], [0, 0, 1, 1], [], []>} : vector<16x1xf32>, vector<1x512xf32>, vector<16x512xf32> -> vector<16x512xf32>
    %30 = arith.addf %27, %29 : vector<16x512xf32>
    %c0_14 = arith.constant 0 : index
    %c1_15 = arith.constant 1 : index
    %31 = vector.load %arg8[%c0_14, %c1_15] : memref<16x9xf32, #tpu.memory_space<vmem>>, vector<16x1xf32>
    %cst_16 = arith.constant dense<0.000000e+00> : vector<16x512xf32>
    %32 = tpu.matmul %31, %6, %cst_16 {dimension_numbers = #tpu.dot_dimension_numbers<[1], [0], [0], [1], [0, 0, 1, 1], [], []>} : vector<16x1xf32>, vector<1x512xf32>, vector<16x512xf32> -> vector<16x512xf32>
    %33 = arith.addf %30, %32 : vector<16x512xf32>
    %c0_17 = arith.constant 0 : index
    %c2_18 = arith.constant 2 : index
    %34 = vector.load %arg8[%c0_17, %c2_18] : memref<16x9xf32, #tpu.memory_space<vmem>>, vector<16x1xf32>
    %cst_19 = arith.constant dense<0.000000e+00> : vector<16x512xf32>
    %35 = tpu.matmul %34, %9, %cst_19 {dimension_numbers = #tpu.dot_dimension_numbers<[1], [0], [0], [1], [0, 0, 1, 1], [], []>} : vector<16x1xf32>, vector<1x512xf32>, vector<16x512xf32> -> vector<16x512xf32>
    %36 = arith.addf %33, %35 : vector<16x512xf32>
    %c0_20 = arith.constant 0 : index
    %c3_21 = arith.constant 3 : index
    %37 = vector.load %arg8[%c0_20, %c3_21] : memref<16x9xf32, #tpu.memory_space<vmem>>, vector<16x1xf32>
    %cst_22 = arith.constant dense<0.000000e+00> : vector<16x512xf32>
    %38 = tpu.matmul %37, %12, %cst_22 {dimension_numbers = #tpu.dot_dimension_numbers<[1], [0], [0], [1], [0, 0, 1, 1], [], []>} : vector<16x1xf32>, vector<1x512xf32>, vector<16x512xf32> -> vector<16x512xf32>
    %39 = arith.addf %36, %38 : vector<16x512xf32>
    %c0_23 = arith.constant 0 : index
    %c4_24 = arith.constant 4 : index
    %40 = vector.load %arg8[%c0_23, %c4_24] : memref<16x9xf32, #tpu.memory_space<vmem>>, vector<16x1xf32>
    %cst_25 = arith.constant dense<0.000000e+00> : vector<16x512xf32>
    %41 = tpu.matmul %40, %14, %cst_25 {dimension_numbers = #tpu.dot_dimension_numbers<[1], [0], [0], [1], [0, 0, 1, 1], [], []>} : vector<16x1xf32>, vector<1x512xf32>, vector<16x512xf32> -> vector<16x512xf32>
    %42 = arith.addf %39, %41 : vector<16x512xf32>
    %c0_26 = arith.constant 0 : index
    %c5_27 = arith.constant 5 : index
    %43 = vector.load %arg8[%c0_26, %c5_27] : memref<16x9xf32, #tpu.memory_space<vmem>>, vector<16x1xf32>
    %cst_28 = arith.constant dense<0.000000e+00> : vector<16x512xf32>
    %44 = tpu.matmul %43, %17, %cst_28 {dimension_numbers = #tpu.dot_dimension_numbers<[1], [0], [0], [1], [0, 0, 1, 1], [], []>} : vector<16x1xf32>, vector<1x512xf32>, vector<16x512xf32> -> vector<16x512xf32>
    %45 = arith.addf %42, %44 : vector<16x512xf32>
    %c0_29 = arith.constant 0 : index
    %c6_30 = arith.constant 6 : index
    %46 = vector.load %arg8[%c0_29, %c6_30] : memref<16x9xf32, #tpu.memory_space<vmem>>, vector<16x1xf32>
    %cst_31 = arith.constant dense<0.000000e+00> : vector<16x512xf32>
    %47 = tpu.matmul %46, %20, %cst_31 {dimension_numbers = #tpu.dot_dimension_numbers<[1], [0], [0], [1], [0, 0, 1, 1], [], []>} : vector<16x1xf32>, vector<1x512xf32>, vector<16x512xf32> -> vector<16x512xf32>
    %48 = arith.addf %45, %47 : vector<16x512xf32>
    %c0_32 = arith.constant 0 : index
    %c7_33 = arith.constant 7 : index
    %49 = vector.load %arg8[%c0_32, %c7_33] : memref<16x9xf32, #tpu.memory_space<vmem>>, vector<16x1xf32>
    %cst_34 = arith.constant dense<0.000000e+00> : vector<16x512xf32>
    %50 = tpu.matmul %49, %23, %cst_34 {dimension_numbers = #tpu.dot_dimension_numbers<[1], [0], [0], [1], [0, 0, 1, 1], [], []>} : vector<16x1xf32>, vector<1x512xf32>, vector<16x512xf32> -> vector<16x512xf32>
    %51 = arith.addf %48, %50 : vector<16x512xf32>
    %c0_35 = arith.constant 0 : index
    %c8_36 = arith.constant 8 : index
    %52 = vector.load %arg8[%c0_35, %c8_36] : memref<16x9xf32, #tpu.memory_space<vmem>>, vector<16x1xf32>
    %cst_37 = arith.constant dense<0.000000e+00> : vector<16x512xf32>
    %53 = tpu.matmul %52, %26, %cst_37 {dimension_numbers = #tpu.dot_dimension_numbers<[1], [0], [0], [1], [0, 0, 1, 1], [], []>} : vector<16x1xf32>, vector<1x512xf32>, vector<16x512xf32> -> vector<16x512xf32>
    %54 = arith.addf %51, %53 : vector<16x512xf32>
    %c0_38 = arith.constant 0 : index
    %c0_39 = arith.constant 0 : index
    %55 = vector.load %arg9[%c0_38, %c0_39] : memref<16x1xf32, #tpu.memory_space<vmem>>, vector<16x1xf32>
    %56 = vector.broadcast %55 : vector<16x1xf32> to vector<16x512xf32>
    %57 = arith.addf %54, %56 : vector<16x512xf32>
    %cst_40 = arith.constant 0.000000e+00 : f32
    %58 = vector.broadcast %cst_40 : f32 to vector<16x512xf32>
    %59 = arith.maximumf %57, %58 : vector<16x512xf32>
    %c17_i32_41 = arith.constant 17 : i32
    %60 = tpu.dynamic_rotate %59 by %c17_i32_41 dim 1 : vector<16x512xf32>, i32 -> vector<16x512xf32>
    %c0_42 = arith.constant 0 : index
    %c0_43 = arith.constant 0 : index
    %61 = vector.load %arg1[%c0_42, %c0_43] : memref<9x512xf32, #tpu.memory_space<vmem>>, vector<1x512xf32>
    %62 = vector.broadcast %61 : vector<1x512xf32> to vector<16x512xf32>
    %63 = arith.mulf %60, %62 : vector<16x512xf32>
    %c16_i32_44 = arith.constant 16 : i32
    %64 = tpu.dynamic_rotate %59 by %c16_i32_44 dim 1 : vector<16x512xf32>, i32 -> vector<16x512xf32>
    %c1_45 = arith.constant 1 : index
    %c0_46 = arith.constant 0 : index
    %65 = vector.load %arg1[%c1_45, %c0_46] : memref<9x512xf32, #tpu.memory_space<vmem>>, vector<1x512xf32>
    %66 = vector.broadcast %65 : vector<1x512xf32> to vector<16x512xf32>
    %67 = arith.mulf %64, %66 : vector<16x512xf32>
    %c15_i32_47 = arith.constant 15 : i32
    %68 = tpu.dynamic_rotate %59 by %c15_i32_47 dim 1 : vector<16x512xf32>, i32 -> vector<16x512xf32>
    %c2_48 = arith.constant 2 : index
    %c0_49 = arith.constant 0 : index
    %69 = vector.load %arg1[%c2_48, %c0_49] : memref<9x512xf32, #tpu.memory_space<vmem>>, vector<1x512xf32>
    %70 = vector.broadcast %69 : vector<1x512xf32> to vector<16x512xf32>
    %71 = arith.mulf %68, %70 : vector<16x512xf32>
    %c1_i32_50 = arith.constant 1 : i32
    %72 = tpu.dynamic_rotate %59 by %c1_i32_50 dim 1 : vector<16x512xf32>, i32 -> vector<16x512xf32>
    %c3_51 = arith.constant 3 : index
    %c0_52 = arith.constant 0 : index
    %73 = vector.load %arg1[%c3_51, %c0_52] : memref<9x512xf32, #tpu.memory_space<vmem>>, vector<1x512xf32>
    %74 = vector.broadcast %73 : vector<1x512xf32> to vector<16x512xf32>
    %75 = arith.mulf %72, %74 : vector<16x512xf32>
    %c4_53 = arith.constant 4 : index
    %c0_54 = arith.constant 0 : index
    %76 = vector.load %arg1[%c4_53, %c0_54] : memref<9x512xf32, #tpu.memory_space<vmem>>, vector<1x512xf32>
    %77 = vector.broadcast %76 : vector<1x512xf32> to vector<16x512xf32>
    %78 = arith.mulf %59, %77 : vector<16x512xf32>
    %c511_i32_55 = arith.constant 511 : i32
    %79 = tpu.dynamic_rotate %59 by %c511_i32_55 dim 1 : vector<16x512xf32>, i32 -> vector<16x512xf32>
    %c5_56 = arith.constant 5 : index
    %c0_57 = arith.constant 0 : index
    %80 = vector.load %arg1[%c5_56, %c0_57] : memref<9x512xf32, #tpu.memory_space<vmem>>, vector<1x512xf32>
    %81 = vector.broadcast %80 : vector<1x512xf32> to vector<16x512xf32>
    %82 = arith.mulf %79, %81 : vector<16x512xf32>
    %c497_i32_58 = arith.constant 497 : i32
    %83 = tpu.dynamic_rotate %59 by %c497_i32_58 dim 1 : vector<16x512xf32>, i32 -> vector<16x512xf32>
    %c6_59 = arith.constant 6 : index
    %c0_60 = arith.constant 0 : index
    %84 = vector.load %arg1[%c6_59, %c0_60] : memref<9x512xf32, #tpu.memory_space<vmem>>, vector<1x512xf32>
    %85 = vector.broadcast %84 : vector<1x512xf32> to vector<16x512xf32>
    %86 = arith.mulf %83, %85 : vector<16x512xf32>
    %c496_i32_61 = arith.constant 496 : i32
    %87 = tpu.dynamic_rotate %59 by %c496_i32_61 dim 1 : vector<16x512xf32>, i32 -> vector<16x512xf32>
    %c7_62 = arith.constant 7 : index
    %c0_63 = arith.constant 0 : index
    %88 = vector.load %arg1[%c7_62, %c0_63] : memref<9x512xf32, #tpu.memory_space<vmem>>, vector<1x512xf32>
    %89 = vector.broadcast %88 : vector<1x512xf32> to vector<16x512xf32>
    %90 = arith.mulf %87, %89 : vector<16x512xf32>
    %c495_i32_64 = arith.constant 495 : i32
    %91 = tpu.dynamic_rotate %59 by %c495_i32_64 dim 1 : vector<16x512xf32>, i32 -> vector<16x512xf32>
    %c8_65 = arith.constant 8 : index
    %c0_66 = arith.constant 0 : index
    %92 = vector.load %arg1[%c8_65, %c0_66] : memref<9x512xf32, #tpu.memory_space<vmem>>, vector<1x512xf32>
    %93 = vector.broadcast %92 : vector<1x512xf32> to vector<16x512xf32>
    %94 = arith.mulf %91, %93 : vector<16x512xf32>
    %95 = tpu.concatenate %63, %67, %71, %75, %78, %82, %86, %90, %94 in 0 : vector<16x512xf32>, vector<16x512xf32>, vector<16x512xf32>, vector<16x512xf32>, vector<16x512xf32>, vector<16x512xf32>, vector<16x512xf32>, vector<16x512xf32>, vector<16x512xf32> -> vector<144x512xf32>
    %c0_67 = arith.constant 0 : index
    %c0_68 = arith.constant 0 : index
    %96 = vector.load %arg10[%c0_67, %c0_68] : memref<16x144xf32, #tpu.memory_space<vmem>>, vector<16x144xf32>
    %cst_69 = arith.constant dense<0.000000e+00> : vector<16x512xf32>
    %97 = tpu.matmul %96, %95, %cst_69 {dimension_numbers = #tpu.dot_dimension_numbers<[1], [0], [0], [1], [0, 0, 1, 1], [], []>} : vector<16x144xf32>, vector<144x512xf32>, vector<16x512xf32> -> vector<16x512xf32>
    %c0_70 = arith.constant 0 : index
    %c0_71 = arith.constant 0 : index
    %98 = vector.load %arg11[%c0_70, %c0_71] : memref<16x1xf32, #tpu.memory_space<vmem>>, vector<16x1xf32>
    %99 = vector.broadcast %98 : vector<16x1xf32> to vector<16x512xf32>
    %100 = arith.addf %97, %99 : vector<16x512xf32>
    %c0_72 = arith.constant 0 : index
    %c0_73 = arith.constant 0 : index
    %101 = vector.load %arg12[%c0_72, %c0_73] : memref<16x1xf32, #tpu.memory_space<vmem>>, vector<16x1xf32>
    %102 = vector.broadcast %101 : vector<16x1xf32> to vector<16x512xf32>
    %103 = arith.mulf %100, %102 : vector<16x512xf32>
    %c0_74 = arith.constant 0 : index
    %c0_75 = arith.constant 0 : index
    %104 = vector.load %arg13[%c0_74, %c0_75] : memref<16x1xf32, #tpu.memory_space<vmem>>, vector<16x1xf32>
    %105 = vector.broadcast %104 : vector<16x1xf32> to vector<16x512xf32>
    %106 = arith.addf %103, %105 : vector<16x512xf32>
    %107 = arith.addf %57, %106 : vector<16x512xf32>
    %c17_i32_76 = arith.constant 17 : i32
    %108 = tpu.dynamic_rotate %107 by %c17_i32_76 dim 1 : vector<16x512xf32>, i32 -> vector<16x512xf32>
    %c0_77 = arith.constant 0 : index
    %c0_78 = arith.constant 0 : index
    %109 = vector.load %arg1[%c0_77, %c0_78] : memref<9x512xf32, #tpu.memory_space<vmem>>, vector<1x512xf32>
    %110 = vector.broadcast %109 : vector<1x512xf32> to vector<16x512xf32>
    %111 = arith.mulf %108, %110 : vector<16x512xf32>
    %c16_i32_79 = arith.constant 16 : i32
    %112 = tpu.dynamic_rotate %107 by %c16_i32_79 dim 1 : vector<16x512xf32>, i32 -> vector<16x512xf32>
    %c1_80 = arith.constant 1 : index
    %c0_81 = arith.constant 0 : index
    %113 = vector.load %arg1[%c1_80, %c0_81] : memref<9x512xf32, #tpu.memory_space<vmem>>, vector<1x512xf32>
    %114 = vector.broadcast %113 : vector<1x512xf32> to vector<16x512xf32>
    %115 = arith.mulf %112, %114 : vector<16x512xf32>
    %c15_i32_82 = arith.constant 15 : i32
    %116 = tpu.dynamic_rotate %107 by %c15_i32_82 dim 1 : vector<16x512xf32>, i32 -> vector<16x512xf32>
    %c2_83 = arith.constant 2 : index
    %c0_84 = arith.constant 0 : index
    %117 = vector.load %arg1[%c2_83, %c0_84] : memref<9x512xf32, #tpu.memory_space<vmem>>, vector<1x512xf32>
    %118 = vector.broadcast %117 : vector<1x512xf32> to vector<16x512xf32>
    %119 = arith.mulf %116, %118 : vector<16x512xf32>
    %c1_i32_85 = arith.constant 1 : i32
    %120 = tpu.dynamic_rotate %107 by %c1_i32_85 dim 1 : vector<16x512xf32>, i32 -> vector<16x512xf32>
    %c3_86 = arith.constant 3 : index
    %c0_87 = arith.constant 0 : index
    %121 = vector.load %arg1[%c3_86, %c0_87] : memref<9x512xf32, #tpu.memory_space<vmem>>, vector<1x512xf32>
    %122 = vector.broadcast %121 : vector<1x512xf32> to vector<16x512xf32>
    %123 = arith.mulf %120, %122 : vector<16x512xf32>
    %c4_88 = arith.constant 4 : index
    %c0_89 = arith.constant 0 : index
    %124 = vector.load %arg1[%c4_88, %c0_89] : memref<9x512xf32, #tpu.memory_space<vmem>>, vector<1x512xf32>
    %125 = vector.broadcast %124 : vector<1x512xf32> to vector<16x512xf32>
    %126 = arith.mulf %107, %125 : vector<16x512xf32>
    %c511_i32_90 = arith.constant 511 : i32
    %127 = tpu.dynamic_rotate %107 by %c511_i32_90 dim 1 : vector<16x512xf32>, i32 -> vector<16x512xf32>
    %c5_91 = arith.constant 5 : index
    %c0_92 = arith.constant 0 : index
    %128 = vector.load %arg1[%c5_91, %c0_92] : memref<9x512xf32, #tpu.memory_space<vmem>>, vector<1x512xf32>
    %129 = vector.broadcast %128 : vector<1x512xf32> to vector<16x512xf32>
    %130 = arith.mulf %127, %129 : vector<16x512xf32>
    %c497_i32_93 = arith.constant 497 : i32
    %131 = tpu.dynamic_rotate %107 by %c497_i32_93 dim 1 : vector<16x512xf32>, i32 -> vector<16x512xf32>
    %c6_94 = arith.constant 6 : index
    %c0_95 = arith.constant 0 : index
    %132 = vector.load %arg1[%c6_94, %c0_95] : memref<9x512xf32, #tpu.memory_space<vmem>>, vector<1x512xf32>
    %133 = vector.broadcast %132 : vector<1x512xf32> to vector<16x512xf32>
    %134 = arith.mulf %131, %133 : vector<16x512xf32>
    %c496_i32_96 = arith.constant 496 : i32
    %135 = tpu.dynamic_rotate %107 by %c496_i32_96 dim 1 : vector<16x512xf32>, i32 -> vector<16x512xf32>
    %c7_97 = arith.constant 7 : index
    %c0_98 = arith.constant 0 : index
    %136 = vector.load %arg1[%c7_97, %c0_98] : memref<9x512xf32, #tpu.memory_space<vmem>>, vector<1x512xf32>
    %137 = vector.broadcast %136 : vector<1x512xf32> to vector<16x512xf32>
    %138 = arith.mulf %135, %137 : vector<16x512xf32>
    %c495_i32_99 = arith.constant 495 : i32
    %139 = tpu.dynamic_rotate %107 by %c495_i32_99 dim 1 : vector<16x512xf32>, i32 -> vector<16x512xf32>
    %c8_100 = arith.constant 8 : index
    %c0_101 = arith.constant 0 : index
    %140 = vector.load %arg1[%c8_100, %c0_101] : memref<9x512xf32, #tpu.memory_space<vmem>>, vector<1x512xf32>
    %141 = vector.broadcast %140 : vector<1x512xf32> to vector<16x512xf32>
    %142 = arith.mulf %139, %141 : vector<16x512xf32>
    %143 = tpu.concatenate %111, %115, %119, %123, %126, %130, %134, %138, %142 in 0 : vector<16x512xf32>, vector<16x512xf32>, vector<16x512xf32>, vector<16x512xf32>, vector<16x512xf32>, vector<16x512xf32>, vector<16x512xf32>, vector<16x512xf32>, vector<16x512xf32> -> vector<144x512xf32>
    %c0_102 = arith.constant 0 : index
    %c0_103 = arith.constant 0 : index
    %144 = vector.load %arg14[%c0_102, %c0_103] : memref<32x144xf32, #tpu.memory_space<vmem>>, vector<32x144xf32>
    %cst_104 = arith.constant dense<0.000000e+00> : vector<32x512xf32>
    %145 = tpu.matmul %144, %143, %cst_104 {dimension_numbers = #tpu.dot_dimension_numbers<[1], [0], [0], [1], [0, 0, 1, 1], [], []>} : vector<32x144xf32>, vector<144x512xf32>, vector<32x512xf32> -> vector<32x512xf32>
    %c0_105 = arith.constant 0 : index
    %c0_106 = arith.constant 0 : index
    %146 = vector.load %arg15[%c0_105, %c0_106] : memref<32x1xf32, #tpu.memory_space<vmem>>, vector<32x1xf32>
    %147 = vector.broadcast %146 : vector<32x1xf32> to vector<32x512xf32>
    %148 = arith.addf %145, %147 : vector<32x512xf32>
    %c0_107 = arith.constant 0 : index
    %c0_108 = arith.constant 0 : index
    %149 = vector.load %arg4[%c0_107, %c0_108] : memref<512x128xf32, #tpu.memory_space<vmem>>, vector<512x128xf32>
    %cst_109 = arith.constant dense<0.000000e+00> : vector<32x128xf32>
    %150 = tpu.matmul %148, %149, %cst_109 {dimension_numbers = #tpu.dot_dimension_numbers<[1], [0], [0], [1], [0, 0, 1, 1], [], []>} : vector<32x512xf32>, vector<512x128xf32>, vector<32x128xf32> -> vector<32x128xf32>
    %cst_110 = arith.constant 0.000000e+00 : f32
    %151 = vector.broadcast %cst_110 : f32 to vector<32x128xf32>
    %152 = arith.maximumf %150, %151 : vector<32x128xf32>
    %c9_i32 = arith.constant 9 : i32
    %153 = tpu.dynamic_rotate %152 by %c9_i32 dim 1 : vector<32x128xf32>, i32 -> vector<32x128xf32>
    %c0_111 = arith.constant 0 : index
    %c0_112 = arith.constant 0 : index
    %154 = vector.load %arg2[%c0_111, %c0_112] : memref<9x128xf32, #tpu.memory_space<vmem>>, vector<1x128xf32>
    %155 = vector.broadcast %154 : vector<1x128xf32> to vector<32x128xf32>
    %156 = arith.mulf %153, %155 : vector<32x128xf32>
    %c8_i32 = arith.constant 8 : i32
    %157 = tpu.dynamic_rotate %152 by %c8_i32 dim 1 : vector<32x128xf32>, i32 -> vector<32x128xf32>
    %c1_113 = arith.constant 1 : index
    %c0_114 = arith.constant 0 : index
    %158 = vector.load %arg2[%c1_113, %c0_114] : memref<9x128xf32, #tpu.memory_space<vmem>>, vector<1x128xf32>
    %159 = vector.broadcast %158 : vector<1x128xf32> to vector<32x128xf32>
    %160 = arith.mulf %157, %159 : vector<32x128xf32>
    %c7_i32 = arith.constant 7 : i32
    %161 = tpu.dynamic_rotate %152 by %c7_i32 dim 1 : vector<32x128xf32>, i32 -> vector<32x128xf32>
    %c2_115 = arith.constant 2 : index
    %c0_116 = arith.constant 0 : index
    %162 = vector.load %arg2[%c2_115, %c0_116] : memref<9x128xf32, #tpu.memory_space<vmem>>, vector<1x128xf32>
    %163 = vector.broadcast %162 : vector<1x128xf32> to vector<32x128xf32>
    %164 = arith.mulf %161, %163 : vector<32x128xf32>
    %c1_i32_117 = arith.constant 1 : i32
    %165 = tpu.dynamic_rotate %152 by %c1_i32_117 dim 1 : vector<32x128xf32>, i32 -> vector<32x128xf32>
    %c3_118 = arith.constant 3 : index
    %c0_119 = arith.constant 0 : index
    %166 = vector.load %arg2[%c3_118, %c0_119] : memref<9x128xf32, #tpu.memory_space<vmem>>, vector<1x128xf32>
    %167 = vector.broadcast %166 : vector<1x128xf32> to vector<32x128xf32>
    %168 = arith.mulf %165, %167 : vector<32x128xf32>
    %c4_120 = arith.constant 4 : index
    %c0_121 = arith.constant 0 : index
    %169 = vector.load %arg2[%c4_120, %c0_121] : memref<9x128xf32, #tpu.memory_space<vmem>>, vector<1x128xf32>
    %170 = vector.broadcast %169 : vector<1x128xf32> to vector<32x128xf32>
    %171 = arith.mulf %152, %170 : vector<32x128xf32>
    %c127_i32 = arith.constant 127 : i32
    %172 = tpu.dynamic_rotate %152 by %c127_i32 dim 1 : vector<32x128xf32>, i32 -> vector<32x128xf32>
    %c5_122 = arith.constant 5 : index
    %c0_123 = arith.constant 0 : index
    %173 = vector.load %arg2[%c5_122, %c0_123] : memref<9x128xf32, #tpu.memory_space<vmem>>, vector<1x128xf32>
    %174 = vector.broadcast %173 : vector<1x128xf32> to vector<32x128xf32>
    %175 = arith.mulf %172, %174 : vector<32x128xf32>
    %c121_i32 = arith.constant 121 : i32
    %176 = tpu.dynamic_rotate %152 by %c121_i32 dim 1 : vector<32x128xf32>, i32 -> vector<32x128xf32>
    %c6_124 = arith.constant 6 : index
    %c0_125 = arith.constant 0 : index
    %177 = vector.load %arg2[%c6_124, %c0_125] : memref<9x128xf32, #tpu.memory_space<vmem>>, vector<1x128xf32>
    %178 = vector.broadcast %177 : vector<1x128xf32> to vector<32x128xf32>
    %179 = arith.mulf %176, %178 : vector<32x128xf32>
    %c120_i32 = arith.constant 120 : i32
    %180 = tpu.dynamic_rotate %152 by %c120_i32 dim 1 : vector<32x128xf32>, i32 -> vector<32x128xf32>
    %c7_126 = arith.constant 7 : index
    %c0_127 = arith.constant 0 : index
    %181 = vector.load %arg2[%c7_126, %c0_127] : memref<9x128xf32, #tpu.memory_space<vmem>>, vector<1x128xf32>
    %182 = vector.broadcast %181 : vector<1x128xf32> to vector<32x128xf32>
    %183 = arith.mulf %180, %182 : vector<32x128xf32>
    %c119_i32 = arith.constant 119 : i32
    %184 = tpu.dynamic_rotate %152 by %c119_i32 dim 1 : vector<32x128xf32>, i32 -> vector<32x128xf32>
    %c8_128 = arith.constant 8 : index
    %c0_129 = arith.constant 0 : index
    %185 = vector.load %arg2[%c8_128, %c0_129] : memref<9x128xf32, #tpu.memory_space<vmem>>, vector<1x128xf32>
    %186 = vector.broadcast %185 : vector<1x128xf32> to vector<32x128xf32>
    %187 = arith.mulf %184, %186 : vector<32x128xf32>
    %188 = tpu.concatenate %156, %160, %164, %168, %171, %175, %179, %183, %187 in 0 : vector<32x128xf32>, vector<32x128xf32>, vector<32x128xf32>, vector<32x128xf32>, vector<32x128xf32>, vector<32x128xf32>, vector<32x128xf32>, vector<32x128xf32>, vector<32x128xf32> -> vector<288x128xf32>
    %c0_130 = arith.constant 0 : index
    %c0_131 = arith.constant 0 : index
    %189 = vector.load %arg16[%c0_130, %c0_131] : memref<32x288xf32, #tpu.memory_space<vmem>>, vector<32x288xf32>
    %cst_132 = arith.constant dense<0.000000e+00> : vector<32x128xf32>
    %190 = tpu.matmul %189, %188, %cst_132 {dimension_numbers = #tpu.dot_dimension_numbers<[1], [0], [0], [1], [0, 0, 1, 1], [], []>} : vector<32x288xf32>, vector<288x128xf32>, vector<32x128xf32> -> vector<32x128xf32>
    %c0_133 = arith.constant 0 : index
    %c0_134 = arith.constant 0 : index
    %191 = vector.load %arg17[%c0_133, %c0_134] : memref<32x1xf32, #tpu.memory_space<vmem>>, vector<32x1xf32>
    %192 = vector.broadcast %191 : vector<32x1xf32> to vector<32x128xf32>
    %193 = arith.addf %190, %192 : vector<32x128xf32>
    %c0_135 = arith.constant 0 : index
    %c0_136 = arith.constant 0 : index
    %194 = vector.load %arg18[%c0_135, %c0_136] : memref<32x1xf32, #tpu.memory_space<vmem>>, vector<32x1xf32>
    %195 = vector.broadcast %194 : vector<32x1xf32> to vector<32x128xf32>
    %196 = arith.mulf %193, %195 : vector<32x128xf32>
    %c0_137 = arith.constant 0 : index
    %c0_138 = arith.constant 0 : index
    %197 = vector.load %arg19[%c0_137, %c0_138] : memref<32x1xf32, #tpu.memory_space<vmem>>, vector<32x1xf32>
    %198 = vector.broadcast %197 : vector<32x1xf32> to vector<32x128xf32>
    %199 = arith.addf %196, %198 : vector<32x128xf32>
    %200 = arith.addf %150, %199 : vector<32x128xf32>
    %c9_i32_139 = arith.constant 9 : i32
    %201 = tpu.dynamic_rotate %200 by %c9_i32_139 dim 1 : vector<32x128xf32>, i32 -> vector<32x128xf32>
    %c0_140 = arith.constant 0 : index
    %c0_141 = arith.constant 0 : index
    %202 = vector.load %arg2[%c0_140, %c0_141] : memref<9x128xf32, #tpu.memory_space<vmem>>, vector<1x128xf32>
    %203 = vector.broadcast %202 : vector<1x128xf32> to vector<32x128xf32>
    %204 = arith.mulf %201, %203 : vector<32x128xf32>
    %c8_i32_142 = arith.constant 8 : i32
    %205 = tpu.dynamic_rotate %200 by %c8_i32_142 dim 1 : vector<32x128xf32>, i32 -> vector<32x128xf32>
    %c1_143 = arith.constant 1 : index
    %c0_144 = arith.constant 0 : index
    %206 = vector.load %arg2[%c1_143, %c0_144] : memref<9x128xf32, #tpu.memory_space<vmem>>, vector<1x128xf32>
    %207 = vector.broadcast %206 : vector<1x128xf32> to vector<32x128xf32>
    %208 = arith.mulf %205, %207 : vector<32x128xf32>
    %c7_i32_145 = arith.constant 7 : i32
    %209 = tpu.dynamic_rotate %200 by %c7_i32_145 dim 1 : vector<32x128xf32>, i32 -> vector<32x128xf32>
    %c2_146 = arith.constant 2 : index
    %c0_147 = arith.constant 0 : index
    %210 = vector.load %arg2[%c2_146, %c0_147] : memref<9x128xf32, #tpu.memory_space<vmem>>, vector<1x128xf32>
    %211 = vector.broadcast %210 : vector<1x128xf32> to vector<32x128xf32>
    %212 = arith.mulf %209, %211 : vector<32x128xf32>
    %c1_i32_148 = arith.constant 1 : i32
    %213 = tpu.dynamic_rotate %200 by %c1_i32_148 dim 1 : vector<32x128xf32>, i32 -> vector<32x128xf32>
    %c3_149 = arith.constant 3 : index
    %c0_150 = arith.constant 0 : index
    %214 = vector.load %arg2[%c3_149, %c0_150] : memref<9x128xf32, #tpu.memory_space<vmem>>, vector<1x128xf32>
    %215 = vector.broadcast %214 : vector<1x128xf32> to vector<32x128xf32>
    %216 = arith.mulf %213, %215 : vector<32x128xf32>
    %c4_151 = arith.constant 4 : index
    %c0_152 = arith.constant 0 : index
    %217 = vector.load %arg2[%c4_151, %c0_152] : memref<9x128xf32, #tpu.memory_space<vmem>>, vector<1x128xf32>
    %218 = vector.broadcast %217 : vector<1x128xf32> to vector<32x128xf32>
    %219 = arith.mulf %200, %218 : vector<32x128xf32>
    %c127_i32_153 = arith.constant 127 : i32
    %220 = tpu.dynamic_rotate %200 by %c127_i32_153 dim 1 : vector<32x128xf32>, i32 -> vector<32x128xf32>
    %c5_154 = arith.constant 5 : index
    %c0_155 = arith.constant 0 : index
    %221 = vector.load %arg2[%c5_154, %c0_155] : memref<9x128xf32, #tpu.memory_space<vmem>>, vector<1x128xf32>
    %222 = vector.broadcast %221 : vector<1x128xf32> to vector<32x128xf32>
    %223 = arith.mulf %220, %222 : vector<32x128xf32>
    %c121_i32_156 = arith.constant 121 : i32
    %224 = tpu.dynamic_rotate %200 by %c121_i32_156 dim 1 : vector<32x128xf32>, i32 -> vector<32x128xf32>
    %c6_157 = arith.constant 6 : index
    %c0_158 = arith.constant 0 : index
    %225 = vector.load %arg2[%c6_157, %c0_158] : memref<9x128xf32, #tpu.memory_space<vmem>>, vector<1x128xf32>
    %226 = vector.broadcast %225 : vector<1x128xf32> to vector<32x128xf32>
    %227 = arith.mulf %224, %226 : vector<32x128xf32>
    %c120_i32_159 = arith.constant 120 : i32
    %228 = tpu.dynamic_rotate %200 by %c120_i32_159 dim 1 : vector<32x128xf32>, i32 -> vector<32x128xf32>
    %c7_160 = arith.constant 7 : index
    %c0_161 = arith.constant 0 : index
    %229 = vector.load %arg2[%c7_160, %c0_161] : memref<9x128xf32, #tpu.memory_space<vmem>>, vector<1x128xf32>
    %230 = vector.broadcast %229 : vector<1x128xf32> to vector<32x128xf32>
    %231 = arith.mulf %228, %230 : vector<32x128xf32>
    %c119_i32_162 = arith.constant 119 : i32
    %232 = tpu.dynamic_rotate %200 by %c119_i32_162 dim 1 : vector<32x128xf32>, i32 -> vector<32x128xf32>
    %c8_163 = arith.constant 8 : index
    %c0_164 = arith.constant 0 : index
    %233 = vector.load %arg2[%c8_163, %c0_164] : memref<9x128xf32, #tpu.memory_space<vmem>>, vector<1x128xf32>
    %234 = vector.broadcast %233 : vector<1x128xf32> to vector<32x128xf32>
    %235 = arith.mulf %232, %234 : vector<32x128xf32>
    %236 = tpu.concatenate %204, %208, %212, %216, %219, %223, %227, %231, %235 in 0 : vector<32x128xf32>, vector<32x128xf32>, vector<32x128xf32>, vector<32x128xf32>, vector<32x128xf32>, vector<32x128xf32>, vector<32x128xf32>, vector<32x128xf32>, vector<32x128xf32> -> vector<288x128xf32>
    %c0_165 = arith.constant 0 : index
    %c0_166 = arith.constant 0 : index
    %237 = vector.load %arg20[%c0_165, %c0_166] : memref<48x288xf32, #tpu.memory_space<vmem>>, vector<48x288xf32>
    %cst_167 = arith.constant dense<0.000000e+00> : vector<48x128xf32>
    %238 = tpu.matmul %237, %236, %cst_167 {dimension_numbers = #tpu.dot_dimension_numbers<[1], [0], [0], [1], [0, 0, 1, 1], [], []>} : vector<48x288xf32>, vector<288x128xf32>, vector<48x128xf32> -> vector<48x128xf32>
    %c0_168 = arith.constant 0 : index
    %c0_169 = arith.constant 0 : index
    %239 = vector.load %arg21[%c0_168, %c0_169] : memref<48x1xf32, #tpu.memory_space<vmem>>, vector<48x1xf32>
    %240 = vector.broadcast %239 : vector<48x1xf32> to vector<48x128xf32>
    %241 = arith.addf %238, %240 : vector<48x128xf32>
    %c0_170 = arith.constant 0 : index
    %c0_171 = arith.constant 0 : index
    %242 = vector.load %arg5[%c0_170, %c0_171] : memref<128x128xf32, #tpu.memory_space<vmem>>, vector<128x128xf32>
    %cst_172 = arith.constant dense<0.000000e+00> : vector<48x128xf32>
    %243 = tpu.matmul %241, %242, %cst_172 {dimension_numbers = #tpu.dot_dimension_numbers<[1], [0], [0], [1], [0, 0, 1, 1], [], []>} : vector<48x128xf32>, vector<128x128xf32>, vector<48x128xf32> -> vector<48x128xf32>
    %cst_173 = arith.constant 0.000000e+00 : f32
    %244 = vector.broadcast %cst_173 : f32 to vector<48x128xf32>
    %245 = arith.maximumf %243, %244 : vector<48x128xf32>
    %c5_i32 = arith.constant 5 : i32
    %246 = tpu.dynamic_rotate %245 by %c5_i32 dim 1 : vector<48x128xf32>, i32 -> vector<48x128xf32>
    %c0_174 = arith.constant 0 : index
    %c0_175 = arith.constant 0 : index
    %247 = vector.load %arg3[%c0_174, %c0_175] : memref<9x128xf32, #tpu.memory_space<vmem>>, vector<1x128xf32>
    %248 = vector.broadcast %247 : vector<1x128xf32> to vector<48x128xf32>
    %249 = arith.mulf %246, %248 : vector<48x128xf32>
    %c4_i32 = arith.constant 4 : i32
    %250 = tpu.dynamic_rotate %245 by %c4_i32 dim 1 : vector<48x128xf32>, i32 -> vector<48x128xf32>
    %c1_176 = arith.constant 1 : index
    %c0_177 = arith.constant 0 : index
    %251 = vector.load %arg3[%c1_176, %c0_177] : memref<9x128xf32, #tpu.memory_space<vmem>>, vector<1x128xf32>
    %252 = vector.broadcast %251 : vector<1x128xf32> to vector<48x128xf32>
    %253 = arith.mulf %250, %252 : vector<48x128xf32>
    %c3_i32 = arith.constant 3 : i32
    %254 = tpu.dynamic_rotate %245 by %c3_i32 dim 1 : vector<48x128xf32>, i32 -> vector<48x128xf32>
    %c2_178 = arith.constant 2 : index
    %c0_179 = arith.constant 0 : index
    %255 = vector.load %arg3[%c2_178, %c0_179] : memref<9x128xf32, #tpu.memory_space<vmem>>, vector<1x128xf32>
    %256 = vector.broadcast %255 : vector<1x128xf32> to vector<48x128xf32>
    %257 = arith.mulf %254, %256 : vector<48x128xf32>
    %c1_i32_180 = arith.constant 1 : i32
    %258 = tpu.dynamic_rotate %245 by %c1_i32_180 dim 1 : vector<48x128xf32>, i32 -> vector<48x128xf32>
    %c3_181 = arith.constant 3 : index
    %c0_182 = arith.constant 0 : index
    %259 = vector.load %arg3[%c3_181, %c0_182] : memref<9x128xf32, #tpu.memory_space<vmem>>, vector<1x128xf32>
    %260 = vector.broadcast %259 : vector<1x128xf32> to vector<48x128xf32>
    %261 = arith.mulf %258, %260 : vector<48x128xf32>
    %c4_183 = arith.constant 4 : index
    %c0_184 = arith.constant 0 : index
    %262 = vector.load %arg3[%c4_183, %c0_184] : memref<9x128xf32, #tpu.memory_space<vmem>>, vector<1x128xf32>
    %263 = vector.broadcast %262 : vector<1x128xf32> to vector<48x128xf32>
    %264 = arith.mulf %245, %263 : vector<48x128xf32>
    %c127_i32_185 = arith.constant 127 : i32
    %265 = tpu.dynamic_rotate %245 by %c127_i32_185 dim 1 : vector<48x128xf32>, i32 -> vector<48x128xf32>
    %c5_186 = arith.constant 5 : index
    %c0_187 = arith.constant 0 : index
    %266 = vector.load %arg3[%c5_186, %c0_187] : memref<9x128xf32, #tpu.memory_space<vmem>>, vector<1x128xf32>
    %267 = vector.broadcast %266 : vector<1x128xf32> to vector<48x128xf32>
    %268 = arith.mulf %265, %267 : vector<48x128xf32>
    %c125_i32 = arith.constant 125 : i32
    %269 = tpu.dynamic_rotate %245 by %c125_i32 dim 1 : vector<48x128xf32>, i32 -> vector<48x128xf32>
    %c6_188 = arith.constant 6 : index
    %c0_189 = arith.constant 0 : index
    %270 = vector.load %arg3[%c6_188, %c0_189] : memref<9x128xf32, #tpu.memory_space<vmem>>, vector<1x128xf32>
    %271 = vector.broadcast %270 : vector<1x128xf32> to vector<48x128xf32>
    %272 = arith.mulf %269, %271 : vector<48x128xf32>
    %c124_i32 = arith.constant 124 : i32
    %273 = tpu.dynamic_rotate %245 by %c124_i32 dim 1 : vector<48x128xf32>, i32 -> vector<48x128xf32>
    %c7_190 = arith.constant 7 : index
    %c0_191 = arith.constant 0 : index
    %274 = vector.load %arg3[%c7_190, %c0_191] : memref<9x128xf32, #tpu.memory_space<vmem>>, vector<1x128xf32>
    %275 = vector.broadcast %274 : vector<1x128xf32> to vector<48x128xf32>
    %276 = arith.mulf %273, %275 : vector<48x128xf32>
    %c123_i32 = arith.constant 123 : i32
    %277 = tpu.dynamic_rotate %245 by %c123_i32 dim 1 : vector<48x128xf32>, i32 -> vector<48x128xf32>
    %c8_192 = arith.constant 8 : index
    %c0_193 = arith.constant 0 : index
    %278 = vector.load %arg3[%c8_192, %c0_193] : memref<9x128xf32, #tpu.memory_space<vmem>>, vector<1x128xf32>
    %279 = vector.broadcast %278 : vector<1x128xf32> to vector<48x128xf32>
    %280 = arith.mulf %277, %279 : vector<48x128xf32>
    %281 = tpu.concatenate %249, %253, %257, %261, %264, %268, %272, %276, %280 in 0 : vector<48x128xf32>, vector<48x128xf32>, vector<48x128xf32>, vector<48x128xf32>, vector<48x128xf32>, vector<48x128xf32>, vector<48x128xf32>, vector<48x128xf32>, vector<48x128xf32> -> vector<432x128xf32>
    %c0_194 = arith.constant 0 : index
    %c0_195 = arith.constant 0 : index
    %282 = vector.load %arg22[%c0_194, %c0_195] : memref<48x432xf32, #tpu.memory_space<vmem>>, vector<48x432xf32>
    %cst_196 = arith.constant dense<0.000000e+00> : vector<48x128xf32>
    %283 = tpu.matmul %282, %281, %cst_196 {dimension_numbers = #tpu.dot_dimension_numbers<[1], [0], [0], [1], [0, 0, 1, 1], [], []>} : vector<48x432xf32>, vector<432x128xf32>, vector<48x128xf32> -> vector<48x128xf32>
    %c0_197 = arith.constant 0 : index
    %c0_198 = arith.constant 0 : index
    %284 = vector.load %arg23[%c0_197, %c0_198] : memref<48x1xf32, #tpu.memory_space<vmem>>, vector<48x1xf32>
    %285 = vector.broadcast %284 : vector<48x1xf32> to vector<48x128xf32>
    %286 = arith.addf %283, %285 : vector<48x128xf32>
    %c0_199 = arith.constant 0 : index
    %c0_200 = arith.constant 0 : index
    %287 = vector.load %arg24[%c0_199, %c0_200] : memref<48x1xf32, #tpu.memory_space<vmem>>, vector<48x1xf32>
    %288 = vector.broadcast %287 : vector<48x1xf32> to vector<48x128xf32>
    %289 = arith.mulf %286, %288 : vector<48x128xf32>
    %c0_201 = arith.constant 0 : index
    %c0_202 = arith.constant 0 : index
    %290 = vector.load %arg25[%c0_201, %c0_202] : memref<48x1xf32, #tpu.memory_space<vmem>>, vector<48x1xf32>
    %291 = vector.broadcast %290 : vector<48x1xf32> to vector<48x128xf32>
    %292 = arith.addf %289, %291 : vector<48x128xf32>
    %293 = arith.addf %243, %292 : vector<48x128xf32>
    %c0_203 = arith.constant 0 : index
    %c0_204 = arith.constant 0 : index
    %294 = vector.load %arg6[%c0_203, %c0_204] : memref<128x128xf32, #tpu.memory_space<vmem>>, vector<128x128xf32>
    %cst_205 = arith.constant dense<0.000000e+00> : vector<48x128xf32>
    %295 = tpu.matmul %293, %294, %cst_205 {dimension_numbers = #tpu.dot_dimension_numbers<[1], [0], [0], [1], [0, 0, 1, 1], [], []>} : vector<48x128xf32>, vector<128x128xf32>, vector<48x128xf32> -> vector<48x128xf32>
    %c9_i32_206 = arith.constant 9 : i32
    %296 = tpu.dynamic_rotate %295 by %c9_i32_206 dim 1 : vector<48x128xf32>, i32 -> vector<48x128xf32>
    %c0_207 = arith.constant 0 : index
    %c0_208 = arith.constant 0 : index
    %297 = vector.load %arg2[%c0_207, %c0_208] : memref<9x128xf32, #tpu.memory_space<vmem>>, vector<1x128xf32>
    %298 = vector.broadcast %297 : vector<1x128xf32> to vector<48x128xf32>
    %299 = arith.mulf %296, %298 : vector<48x128xf32>
    %c8_i32_209 = arith.constant 8 : i32
    %300 = tpu.dynamic_rotate %295 by %c8_i32_209 dim 1 : vector<48x128xf32>, i32 -> vector<48x128xf32>
    %c1_210 = arith.constant 1 : index
    %c0_211 = arith.constant 0 : index
    %301 = vector.load %arg2[%c1_210, %c0_211] : memref<9x128xf32, #tpu.memory_space<vmem>>, vector<1x128xf32>
    %302 = vector.broadcast %301 : vector<1x128xf32> to vector<48x128xf32>
    %303 = arith.mulf %300, %302 : vector<48x128xf32>
    %c7_i32_212 = arith.constant 7 : i32
    %304 = tpu.dynamic_rotate %295 by %c7_i32_212 dim 1 : vector<48x128xf32>, i32 -> vector<48x128xf32>
    %c2_213 = arith.constant 2 : index
    %c0_214 = arith.constant 0 : index
    %305 = vector.load %arg2[%c2_213, %c0_214] : memref<9x128xf32, #tpu.memory_space<vmem>>, vector<1x128xf32>
    %306 = vector.broadcast %305 : vector<1x128xf32> to vector<48x128xf32>
    %307 = arith.mulf %304, %306 : vector<48x128xf32>
    %c1_i32_215 = arith.constant 1 : i32
    %308 = tpu.dynamic_rotate %295 by %c1_i32_215 dim 1 : vector<48x128xf32>, i32 -> vector<48x128xf32>
    %c3_216 = arith.constant 3 : index
    %c0_217 = arith.constant 0 : index
    %309 = vector.load %arg2[%c3_216, %c0_217] : memref<9x128xf32, #tpu.memory_space<vmem>>, vector<1x128xf32>
    %310 = vector.broadcast %309 : vector<1x128xf32> to vector<48x128xf32>
    %311 = arith.mulf %308, %310 : vector<48x128xf32>
    %c4_218 = arith.constant 4 : index
    %c0_219 = arith.constant 0 : index
    %312 = vector.load %arg2[%c4_218, %c0_219] : memref<9x128xf32, #tpu.memory_space<vmem>>, vector<1x128xf32>
    %313 = vector.broadcast %312 : vector<1x128xf32> to vector<48x128xf32>
    %314 = arith.mulf %295, %313 : vector<48x128xf32>
    %c127_i32_220 = arith.constant 127 : i32
    %315 = tpu.dynamic_rotate %295 by %c127_i32_220 dim 1 : vector<48x128xf32>, i32 -> vector<48x128xf32>
    %c5_221 = arith.constant 5 : index
    %c0_222 = arith.constant 0 : index
    %316 = vector.load %arg2[%c5_221, %c0_222] : memref<9x128xf32, #tpu.memory_space<vmem>>, vector<1x128xf32>
    %317 = vector.broadcast %316 : vector<1x128xf32> to vector<48x128xf32>
    %318 = arith.mulf %315, %317 : vector<48x128xf32>
    %c121_i32_223 = arith.constant 121 : i32
    %319 = tpu.dynamic_rotate %295 by %c121_i32_223 dim 1 : vector<48x128xf32>, i32 -> vector<48x128xf32>
    %c6_224 = arith.constant 6 : index
    %c0_225 = arith.constant 0 : index
    %320 = vector.load %arg2[%c6_224, %c0_225] : memref<9x128xf32, #tpu.memory_space<vmem>>, vector<1x128xf32>
    %321 = vector.broadcast %320 : vector<1x128xf32> to vector<48x128xf32>
    %322 = arith.mulf %319, %321 : vector<48x128xf32>
    %c120_i32_226 = arith.constant 120 : i32
    %323 = tpu.dynamic_rotate %295 by %c120_i32_226 dim 1 : vector<48x128xf32>, i32 -> vector<48x128xf32>
    %c7_227 = arith.constant 7 : index
    %c0_228 = arith.constant 0 : index
    %324 = vector.load %arg2[%c7_227, %c0_228] : memref<9x128xf32, #tpu.memory_space<vmem>>, vector<1x128xf32>
    %325 = vector.broadcast %324 : vector<1x128xf32> to vector<48x128xf32>
    %326 = arith.mulf %323, %325 : vector<48x128xf32>
    %c119_i32_229 = arith.constant 119 : i32
    %327 = tpu.dynamic_rotate %295 by %c119_i32_229 dim 1 : vector<48x128xf32>, i32 -> vector<48x128xf32>
    %c8_230 = arith.constant 8 : index
    %c0_231 = arith.constant 0 : index
    %328 = vector.load %arg2[%c8_230, %c0_231] : memref<9x128xf32, #tpu.memory_space<vmem>>, vector<1x128xf32>
    %329 = vector.broadcast %328 : vector<1x128xf32> to vector<48x128xf32>
    %330 = arith.mulf %327, %329 : vector<48x128xf32>
    %331 = tpu.concatenate %299, %303, %307, %311, %314, %318, %322, %326, %330 in 0 : vector<48x128xf32>, vector<48x128xf32>, vector<48x128xf32>, vector<48x128xf32>, vector<48x128xf32>, vector<48x128xf32>, vector<48x128xf32>, vector<48x128xf32>, vector<48x128xf32> -> vector<432x128xf32>
    %c0_232 = arith.constant 0 : index
    %c0_233 = arith.constant 0 : index
    %332 = vector.load %arg26[%c0_232, %c0_233] : memref<32x432xf32, #tpu.memory_space<vmem>>, vector<32x432xf32>
    %cst_234 = arith.constant dense<0.000000e+00> : vector<32x128xf32>
    %333 = tpu.matmul %332, %331, %cst_234 {dimension_numbers = #tpu.dot_dimension_numbers<[1], [0], [0], [1], [0, 0, 1, 1], [], []>} : vector<32x432xf32>, vector<432x128xf32>, vector<32x128xf32> -> vector<32x128xf32>
    %c0_235 = arith.constant 0 : index
    %c0_236 = arith.constant 0 : index
    %334 = vector.load %arg27[%c0_235, %c0_236] : memref<32x1xf32, #tpu.memory_space<vmem>>, vector<32x1xf32>
    %335 = vector.broadcast %334 : vector<32x1xf32> to vector<32x128xf32>
    %336 = arith.addf %333, %335 : vector<32x128xf32>
    %337 = arith.addf %200, %336 : vector<32x128xf32>
    %c0_237 = arith.constant 0 : index
    %c0_238 = arith.constant 0 : index
    %338 = vector.load %arg7[%c0_237, %c0_238] : memref<128x512xf32, #tpu.memory_space<vmem>>, vector<128x512xf32>
    %cst_239 = arith.constant dense<0.000000e+00> : vector<32x512xf32>
    %339 = tpu.matmul %337, %338, %cst_239 {dimension_numbers = #tpu.dot_dimension_numbers<[1], [0], [0], [1], [0, 0, 1, 1], [], []>} : vector<32x128xf32>, vector<128x512xf32>, vector<32x512xf32> -> vector<32x512xf32>
    %c17_i32_240 = arith.constant 17 : i32
    %340 = tpu.dynamic_rotate %339 by %c17_i32_240 dim 1 : vector<32x512xf32>, i32 -> vector<32x512xf32>
    %c0_241 = arith.constant 0 : index
    %c0_242 = arith.constant 0 : index
    %341 = vector.load %arg1[%c0_241, %c0_242] : memref<9x512xf32, #tpu.memory_space<vmem>>, vector<1x512xf32>
    %342 = vector.broadcast %341 : vector<1x512xf32> to vector<32x512xf32>
    %343 = arith.mulf %340, %342 : vector<32x512xf32>
    %c16_i32_243 = arith.constant 16 : i32
    %344 = tpu.dynamic_rotate %339 by %c16_i32_243 dim 1 : vector<32x512xf32>, i32 -> vector<32x512xf32>
    %c1_244 = arith.constant 1 : index
    %c0_245 = arith.constant 0 : index
    %345 = vector.load %arg1[%c1_244, %c0_245] : memref<9x512xf32, #tpu.memory_space<vmem>>, vector<1x512xf32>
    %346 = vector.broadcast %345 : vector<1x512xf32> to vector<32x512xf32>
    %347 = arith.mulf %344, %346 : vector<32x512xf32>
    %c15_i32_246 = arith.constant 15 : i32
    %348 = tpu.dynamic_rotate %339 by %c15_i32_246 dim 1 : vector<32x512xf32>, i32 -> vector<32x512xf32>
    %c2_247 = arith.constant 2 : index
    %c0_248 = arith.constant 0 : index
    %349 = vector.load %arg1[%c2_247, %c0_248] : memref<9x512xf32, #tpu.memory_space<vmem>>, vector<1x512xf32>
    %350 = vector.broadcast %349 : vector<1x512xf32> to vector<32x512xf32>
    %351 = arith.mulf %348, %350 : vector<32x512xf32>
    %c1_i32_249 = arith.constant 1 : i32
    %352 = tpu.dynamic_rotate %339 by %c1_i32_249 dim 1 : vector<32x512xf32>, i32 -> vector<32x512xf32>
    %c3_250 = arith.constant 3 : index
    %c0_251 = arith.constant 0 : index
    %353 = vector.load %arg1[%c3_250, %c0_251] : memref<9x512xf32, #tpu.memory_space<vmem>>, vector<1x512xf32>
    %354 = vector.broadcast %353 : vector<1x512xf32> to vector<32x512xf32>
    %355 = arith.mulf %352, %354 : vector<32x512xf32>
    %c4_252 = arith.constant 4 : index
    %c0_253 = arith.constant 0 : index
    %356 = vector.load %arg1[%c4_252, %c0_253] : memref<9x512xf32, #tpu.memory_space<vmem>>, vector<1x512xf32>
    %357 = vector.broadcast %356 : vector<1x512xf32> to vector<32x512xf32>
    %358 = arith.mulf %339, %357 : vector<32x512xf32>
    %c511_i32_254 = arith.constant 511 : i32
    %359 = tpu.dynamic_rotate %339 by %c511_i32_254 dim 1 : vector<32x512xf32>, i32 -> vector<32x512xf32>
    %c5_255 = arith.constant 5 : index
    %c0_256 = arith.constant 0 : index
    %360 = vector.load %arg1[%c5_255, %c0_256] : memref<9x512xf32, #tpu.memory_space<vmem>>, vector<1x512xf32>
    %361 = vector.broadcast %360 : vector<1x512xf32> to vector<32x512xf32>
    %362 = arith.mulf %359, %361 : vector<32x512xf32>
    %c497_i32_257 = arith.constant 497 : i32
    %363 = tpu.dynamic_rotate %339 by %c497_i32_257 dim 1 : vector<32x512xf32>, i32 -> vector<32x512xf32>
    %c6_258 = arith.constant 6 : index
    %c0_259 = arith.constant 0 : index
    %364 = vector.load %arg1[%c6_258, %c0_259] : memref<9x512xf32, #tpu.memory_space<vmem>>, vector<1x512xf32>
    %365 = vector.broadcast %364 : vector<1x512xf32> to vector<32x512xf32>
    %366 = arith.mulf %363, %365 : vector<32x512xf32>
    %c496_i32_260 = arith.constant 496 : i32
    %367 = tpu.dynamic_rotate %339 by %c496_i32_260 dim 1 : vector<32x512xf32>, i32 -> vector<32x512xf32>
    %c7_261 = arith.constant 7 : index
    %c0_262 = arith.constant 0 : index
    %368 = vector.load %arg1[%c7_261, %c0_262] : memref<9x512xf32, #tpu.memory_space<vmem>>, vector<1x512xf32>
    %369 = vector.broadcast %368 : vector<1x512xf32> to vector<32x512xf32>
    %370 = arith.mulf %367, %369 : vector<32x512xf32>
    %c495_i32_263 = arith.constant 495 : i32
    %371 = tpu.dynamic_rotate %339 by %c495_i32_263 dim 1 : vector<32x512xf32>, i32 -> vector<32x512xf32>
    %c8_264 = arith.constant 8 : index
    %c0_265 = arith.constant 0 : index
    %372 = vector.load %arg1[%c8_264, %c0_265] : memref<9x512xf32, #tpu.memory_space<vmem>>, vector<1x512xf32>
    %373 = vector.broadcast %372 : vector<1x512xf32> to vector<32x512xf32>
    %374 = arith.mulf %371, %373 : vector<32x512xf32>
    %375 = tpu.concatenate %343, %347, %351, %355, %358, %362, %366, %370, %374 in 0 : vector<32x512xf32>, vector<32x512xf32>, vector<32x512xf32>, vector<32x512xf32>, vector<32x512xf32>, vector<32x512xf32>, vector<32x512xf32>, vector<32x512xf32>, vector<32x512xf32> -> vector<288x512xf32>
    %c0_266 = arith.constant 0 : index
    %c0_267 = arith.constant 0 : index
    %376 = vector.load %arg28[%c0_266, %c0_267] : memref<16x288xf32, #tpu.memory_space<vmem>>, vector<16x288xf32>
    %cst_268 = arith.constant dense<0.000000e+00> : vector<16x512xf32>
    %377 = tpu.matmul %376, %375, %cst_268 {dimension_numbers = #tpu.dot_dimension_numbers<[1], [0], [0], [1], [0, 0, 1, 1], [], []>} : vector<16x288xf32>, vector<288x512xf32>, vector<16x512xf32> -> vector<16x512xf32>
    %c0_269 = arith.constant 0 : index
    %c0_270 = arith.constant 0 : index
    %378 = vector.load %arg29[%c0_269, %c0_270] : memref<16x1xf32, #tpu.memory_space<vmem>>, vector<16x1xf32>
    %379 = vector.broadcast %378 : vector<16x1xf32> to vector<16x512xf32>
    %380 = arith.addf %377, %379 : vector<16x512xf32>
    %381 = arith.addf %107, %380 : vector<16x512xf32>
    %c0_271 = arith.constant 0 : index
    %c0_272 = arith.constant 0 : index
    %382 = vector.load %arg30[%c0_271, %c0_272] : memref<1x16xf32, #tpu.memory_space<vmem>>, vector<1x16xf32>
    %cst_273 = arith.constant dense<0.000000e+00> : vector<1x512xf32>
    %383 = tpu.matmul %382, %381, %cst_273 {dimension_numbers = #tpu.dot_dimension_numbers<[1], [0], [0], [1], [0, 0, 1, 1], [], []>} : vector<1x16xf32>, vector<16x512xf32>, vector<1x512xf32> -> vector<1x512xf32>
    %c0_274 = arith.constant 0 : index
    %c0_275 = arith.constant 0 : index
    %384 = vector.load %arg31[%c0_274, %c0_275] : memref<1x1xf32, #tpu.memory_space<vmem>>, vector<1x1xf32>
    %385 = vector.broadcast %384 : vector<1x1xf32> to vector<1x512xf32>
    %386 = arith.addf %383, %385 : vector<1x512xf32>
    %c0_276 = arith.constant 0 : index
    %c0_277 = arith.constant 0 : index
    %387 = vector.load %arg32[%c0_276, %c0_277] : memref<1x512xf32, #tpu.memory_space<vmem>>, vector<1x512xf32>
    tpu.vector_store %arg32[%c0_276, %c0_277], %386 {strides = array<i32>} : memref<1x512xf32, #tpu.memory_space<vmem>>, vector<1x512xf32>,
    return
  }
}

</mosaic_0001>

<llo_original>
// kernel: denoise_net_pallas.1
$region0: #{denoise_net_pallas.1}
  #allocation0 [shape = 'u32[]', space=smem, size = 0x4, offset = 0x4, fixed_abs, tag = 'smem constant byte address 0x4 - core index']
  #allocation1 [shape = 'u32[72,128]{1,0:T(1,128)}', space=vmem, size = 0x9000, scoped, tag = 'internal scratch']
  #allocation2 [shape = 'f32[1,1]{1,0:T(1,128)S(1)}', space=vmem, size = 0x200, scoped, tag = 'scoped memory for denoise_net_pallas.1']
  %s0 = inlined_call_operand.smem [shape: u32[33], index: -1, kind: input, shape index: {}]
  %s1 = sld [smem:[%s0]]
  %s2 = scalar_lea.smem %s0, 1
  %s3 = sld [smem:[%s2]]
  %s4 = scalar_lea.smem %s0, 2
  %s5 = sld [smem:[%s4]]
  %s6 = scalar_lea.smem %s0, 3
  %s7 = sld [smem:[%s6]]
  %s8 = scalar_lea.smem %s0, 4
  %s9 = sld [smem:[%s8]]
  %s10 = scalar_lea.smem %s0, 5
  %s11 = sld [smem:[%s10]]
  %s12 = scalar_lea.smem %s0, 6
  %s13 = sld [smem:[%s12]]
  %s14 = scalar_lea.smem %s0, 7
  %s15 = sld [smem:[%s14]]
  %s16 = scalar_lea.smem %s0, 8
  %s17 = sld [smem:[%s16]]
  %s18 = scalar_lea.smem %s0, 9
  %s19 = sld [smem:[%s18]]
  %s20 = scalar_lea.smem %s0, 10
  %s21 = sld [smem:[%s20]]
  %s22 = scalar_lea.smem %s0, 11
  %s23 = sld [smem:[%s22]]
  %s24 = scalar_lea.smem %s0, 12
  %s25 = sld [smem:[%s24]]
  %s26 = scalar_lea.smem %s0, 13
  %s27 = sld [smem:[%s26]]
  %s28 = scalar_lea.smem %s0, 14
  %s29 = sld [smem:[%s28]]
  %s30 = scalar_lea.smem %s0, 15
  %s31 = sld [smem:[%s30]]
  %s32 = scalar_lea.smem %s0, 16
  %s33 = sld [smem:[%s32]]
  %s34 = scalar_lea.smem %s0, 17
  %s35 = sld [smem:[%s34]]
  %s36 = scalar_lea.smem %s0, 18
  %s37 = sld [smem:[%s36]]
  %s38 = scalar_lea.smem %s0, 19
  %s39 = sld [smem:[%s38]]
  %s40 = scalar_lea.smem %s0, 20
  %s41 = sld [smem:[%s40]]
  %s42 = scalar_lea.smem %s0, 21
  %s43 = sld [smem:[%s42]]
  %s44 = scalar_lea.smem %s0, 22
  %s45 = sld [smem:[%s44]]
  %s46 = scalar_lea.smem %s0, 23
  %s47 = sld [smem:[%s46]]
  %s48 = scalar_lea.smem %s0, 24
  %s49 = sld [smem:[%s48]]
  %s50 = scalar_lea.smem %s0, 25
  %s51 = sld [smem:[%s50]]
  %s52 = scalar_lea.smem %s0, 26
  %s53 = sld [smem:[%s52]]
  %s54 = scalar_lea.smem %s0, 27
  %s55 = sld [smem:[%s54]]
  %s56 = scalar_lea.smem %s0, 28
  %s57 = sld [smem:[%s56]]
  %s58 = scalar_lea.smem %s0, 29
  %s59 = sld [smem:[%s58]]
  %s60 = scalar_lea.smem %s0, 30
  %s61 = sld [smem:[%s60]]
  %s62 = scalar_lea.smem %s0, 31
  %s63 = sld [smem:[%s62]]
  %s64 = scalar_lea.smem %s0, 32
  %s65 = sld [smem:[%s64]]
  %s66 = sld [smem:[#allocation0]]
  $region138: #{denoise_net_pallas.1} parent=0
    _
  %s68 = ssub.s32 1, %s66
  %s69 = scalar_select 0, %s68, %s66
  %v70 = vstv %s63
  %71 = vst [vmem:[#allocation2] sm:$0x1] %v70
  // Predicated region
  $region2: #{denoise_net_pallas.1} parent=0 // pred_check
    _
  $region3: #{denoise_net_pallas.1} parent=0 // pred_check_branch
    %73 = sbr.rel (0) target = $region5
  $region4: #{denoise_net_pallas.1} parent=0 // pred_region
    _
  $region5: #{denoise_net_pallas.1} parent=0 // pred_fallthru
    _
  // Predicated region
  $region6: #{denoise_net_pallas.1} parent=0 // pred_check
    _
  $region7: #{denoise_net_pallas.1} parent=0 // pred_check_branch
    %75 = sbr.rel (0) target = $region9
  $region8: #{denoise_net_pallas.1} parent=0 // pred_region
    _
  $region9: #{denoise_net_pallas.1} parent=0 // pred_fallthru
    _
  // Predicated region
  $region10: #{denoise_net_pallas.1} parent=0 // pred_check
    _
  $region11: #{denoise_net_pallas.1} parent=0 // pred_check_branch
    %77 = sbr.rel (0) target = $region13
  $region12: #{denoise_net_pallas.1} parent=0 // pred_region
    _
  $region13: #{denoise_net_pallas.1} parent=0 // pred_fallthru
    _
  // Predicated region
  $region14: #{denoise_net_pallas.1} parent=0 // pred_check
    _
  $region15: #{denoise_net_pallas.1} parent=0 // pred_check_branch
    %79 = sbr.rel (0) target = $region17
  $region16: #{denoise_net_pallas.1} parent=0 // pred_region
    _
  $region17: #{denoise_net_pallas.1} parent=0 // pred_fallthru
    _
  // Predicated region
  $region18: #{denoise_net_pallas.1} parent=0 // pred_check
    _
  $region19: #{denoise_net_pallas.1} parent=0 // pred_check_branch
    %81 = sbr.rel (0) target = $region21
  $region20: #{denoise_net_pallas.1} parent=0 // pred_region
    _
  $region21: #{denoise_net_pallas.1} parent=0 // pred_fallthru
    _
  // Predicated region
  $region22: #{denoise_net_pallas.1} parent=0 // pred_check
    _
  $region23: #{denoise_net_pallas.1} parent=0 // pred_check_branch
    %83 = sbr.rel (0) target = $region25
  $region24: #{denoise_net_pallas.1} parent=0 // pred_region
    _
  $region25: #{denoise_net_pallas.1} parent=0 // pred_fallthru
    _
  // Predicated region
  $region26: #{denoise_net_pallas.1} parent=0 // pred_check
    _
  $region27: #{denoise_net_pallas.1} parent=0 // pred_check_branch
    %85 = sbr.rel (0) target = $region29
  $region28: #{denoise_net_pallas.1} parent=0 // pred_region
    _
  $region29: #{denoise_net_pallas.1} parent=0 // pred_fallthru
    _
  // Predicated region
  $region30: #{denoise_net_pallas.1} parent=0 // pred_check
    _
  $region31: #{denoise_net_pallas.1} parent=0 // pred_check_branch
    %87 = sbr.rel (0) target = $region33
  $region32: #{denoise_net_pallas.1} parent=0 // pred_region
    _
  $region33: #{denoise_net_pallas.1} parent=0 // pred_fallthru
    _
  // Predicated region
  $region34: #{denoise_net_pallas.1} parent=0 // pred_check
    _
  $region35: #{denoise_net_pallas.1} parent=0 // pred_check_branch
    %89 = sbr.rel (0) target = $region37
  $region36: #{denoise_net_pallas.1} parent=0 // pred_region
    _
  $region37: #{denoise_net_pallas.1} parent=0 // pred_fallthru
    _
  // Predicated region
  $region38: #{denoise_net_pallas.1} parent=0 // pred_check
    _
  $region39: #{denoise_net_pallas.1} parent=0 // pred_check_branch
    %91 = sbr.rel (0) target = $region41
  $region40: #{denoise_net_pallas.1} parent=0 // pred_region
    _
  $region41: #{denoise_net_pallas.1} parent=0 // pred_fallthru
    _
  // Predicated region
  $region42: #{denoise_net_pallas.1} parent=0 // pred_check
    _
  $region43: #{denoise_net_pallas.1} parent=0 // pred_check_branch
    %93 = sbr.rel (0) target = $region45
  $region44: #{denoise_net_pallas.1} parent=0 // pred_region
    _
  $region45: #{denoise_net_pallas.1} parent=0 // pred_fallthru
    _
  // Predicated region
  $region46: #{denoise_net_pallas.1} parent=0 // pred_check
    _
  $region47: #{denoise_net_pallas.1} parent=0 // pred_check_branch
    %95 = sbr.rel (0) target = $region49
  $region48: #{denoise_net_pallas.1} parent=0 // pred_region
    _
  $region49: #{denoise_net_pallas.1} parent=0 // pred_fallthru
    _
  // Predicated region
  $region50: #{denoise_net_pallas.1} parent=0 // pred_check
    _
  $region51: #{denoise_net_pallas.1} parent=0 // pred_check_branch
    %97 = sbr.rel (0) target = $region53
  $region52: #{denoise_net_pallas.1} parent=0 // pred_region
    _
  $region53: #{denoise_net_pallas.1} parent=0 // pred_fallthru
    _
  // Predicated region
  $region54: #{denoise_net_pallas.1} parent=0 // pred_check
    _
  $region55: #{denoise_net_pallas.1} parent=0 // pred_check_branch
    %99 = sbr.rel (0) target = $region57
  $region56: #{denoise_net_pallas.1} parent=0 // pred_region
    _
  $region57: #{denoise_net_pallas.1} parent=0 // pred_fallthru
    _
  // Predicated region
  $region58: #{denoise_net_pallas.1} parent=0 // pred_check
    _
  $region59: #{denoise_net_pallas.1} parent=0 // pred_check_branch
    %101 = sbr.rel (0) target = $region61
  $region60: #{denoise_net_pallas.1} parent=0 // pred_region
    _
  $region61: #{denoise_net_pallas.1} parent=0 // pred_fallthru
    _
  // Predicated region
  $region62: #{denoise_net_pallas.1} parent=0 // pred_check
    _
  $region63: #{denoise_net_pallas.1} parent=0 // pred_check_branch
    %103 = sbr.rel (0) target = $region65
  $region64: #{denoise_net_pallas.1} parent=0 // pred_region
    _
  $region65: #{denoise_net_pallas.1} parent=0 // pred_fallthru
    _
  // Predicated region
  $region66: #{denoise_net_pallas.1} parent=0 // pred_check
    _
  $region67: #{denoise_net_pallas.1} parent=0 // pred_check_branch
    %105 = sbr.rel (0) target = $region69
  $region68: #{denoise_net_pallas.1} parent=0 // pred_region
    _
  $region69: #{denoise_net_pallas.1} parent=0 // pred_fallthru
    _
  // Predicated region
  $region70: #{denoise_net_pallas.1} parent=0 // pred_check
    _
  $region71: #{denoise_net_pallas.1} parent=0 // pred_check_branch
    %107 = sbr.rel (0) target = $region73
  $region72: #{denoise_net_pallas.1} parent=0 // pred_region
    _
  $region73: #{denoise_net_pallas.1} parent=0 // pred_fallthru
    _
  // Predicated region
  $region74: #{denoise_net_pallas.1} parent=0 // pred_check
    _
  $region75: #{denoise_net_pallas.1} parent=0 // pred_check_branch
    %109 = sbr.rel (0) target = $region77
  $region76: #{denoise_net_pallas.1} parent=0 // pred_region
    _
  $region77: #{denoise_net_pallas.1} parent=0 // pred_fallthru
    _
  // Predicated region
  $region78: #{denoise_net_pallas.1} parent=0 // pred_check
    _
  $region79: #{denoise_net_pallas.1} parent=0 // pred_check_branch
    %111 = sbr.rel (0) target = $region81
  $region80: #{denoise_net_pallas.1} parent=0 // pred_region
    _
  $region81: #{denoise_net_pallas.1} parent=0 // pred_fallthru
    _
  // Predicated region
  $region82: #{denoise_net_pallas.1} parent=0 // pred_check
    _
  $region83: #{denoise_net_pallas.1} parent=0 // pred_check_branch
    %113 = sbr.rel (0) target = $region85
  $region84: #{denoise_net_pallas.1} parent=0 // pred_region
    _
  $region85: #{denoise_net_pallas.1} parent=0 // pred_fallthru
    _
  // Predicated region
  $region86: #{denoise_net_pallas.1} parent=0 // pred_check
    _
  $region87: #{denoise_net_pallas.1} parent=0 // pred_check_branch
    %115 = sbr.rel (0) target = $region89
  $region88: #{denoise_net_pallas.1} parent=0 // pred_region
    _
  $region89: #{denoise_net_pallas.1} parent=0 // pred_fallthru
    _
  // Predicated region
  $region90: #{denoise_net_pallas.1} parent=0 // pred_check
    _
  $region91: #{denoise_net_pallas.1} parent=0 // pred_check_branch
    %117 = sbr.rel (0) target = $region93
  $region92: #{denoise_net_pallas.1} parent=0 // pred_region
    _
  $region93: #{denoise_net_pallas.1} parent=0 // pred_fallthru
    _
  // Predicated region
  $region94: #{denoise_net_pallas.1} parent=0 // pred_check
    _
  $region95: #{denoise_net_pallas.1} parent=0 // pred_check_branch
    %119 = sbr.rel (0) target = $region97
  $region96: #{denoise_net_pallas.1} parent=0 // pred_region
    _
  $region97: #{denoise_net_pallas.1} parent=0 // pred_fallthru
    _
  // Predicated region
  $region98: #{denoise_net_pallas.1} parent=0 // pred_check
    _
  $region99: #{denoise_net_pallas.1} parent=0 // pred_check_branch
    %121 = sbr.rel (0) target = $region101
  $region100: #{denoise_net_pallas.1} parent=0 // pred_region
    _
  $region101: #{denoise_net_pallas.1} parent=0 // pred_fallthru
    _
  // Predicated region
  $region102: #{denoise_net_pallas.1} parent=0 // pred_check
    _
  $region103: #{denoise_net_pallas.1} parent=0 // pred_check_branch
    %123 = sbr.rel (0) target = $region105
  $region104: #{denoise_net_pallas.1} parent=0 // pred_region
    _
  $region105: #{denoise_net_pallas.1} parent=0 // pred_fallthru
    _
  // Predicated region
  $region106: #{denoise_net_pallas.1} parent=0 // pred_check
    _
  $region107: #{denoise_net_pallas.1} parent=0 // pred_check_branch
    %125 = sbr.rel (0) target = $region109
  $region108: #{denoise_net_pallas.1} parent=0 // pred_region
    _
  $region109: #{denoise_net_pallas.1} parent=0 // pred_fallthru
    _
  // Predicated region
  $region110: #{denoise_net_pallas.1} parent=0 // pred_check
    _
  $region111: #{denoise_net_pallas.1} parent=0 // pred_check_branch
    %127 = sbr.rel (0) target = $region113
  $region112: #{denoise_net_pallas.1} parent=0 // pred_region
    _
  $region113: #{denoise_net_pallas.1} parent=0 // pred_fallthru
    _
  // Predicated region
  $region114: #{denoise_net_pallas.1} parent=0 // pred_check
    _
  $region115: #{denoise_net_pallas.1} parent=0 // pred_check_branch
    %129 = sbr.rel (0) target = $region117
  $region116: #{denoise_net_pallas.1} parent=0 // pred_region
    _
  $region117: #{denoise_net_pallas.1} parent=0 // pred_fallthru
    _
  // Predicated region
  $region118: #{denoise_net_pallas.1} parent=0 // pred_check
    _
  $region119: #{denoise_net_pallas.1} parent=0 // pred_check_branch
    %131 = sbr.rel (0) target = $region121
  $region120: #{denoise_net_pallas.1} parent=0 // pred_region
    _
  $region121: #{denoise_net_pallas.1} parent=0 // pred_fallthru
    _
  // Predicated region
  $region122: #{denoise_net_pallas.1} parent=0 // pred_check
    _
  $region123: #{denoise_net_pallas.1} parent=0 // pred_check_branch
    %133 = sbr.rel (0) target = $region125
  $region124: #{denoise_net_pallas.1} parent=0 // pred_region
    _
  $region125: #{denoise_net_pallas.1} parent=0 // pred_fallthru
    _
  // Predicated region
  $region126: #{denoise_net_pallas.1} parent=0 // pred_check
    _
  $region127: #{denoise_net_pallas.1} parent=0 // pred_check_branch
    %135 = sbr.rel (0) target = $region129
  $region128: #{denoise_net_pallas.1} parent=0 // pred_region
    _
  $region129: #{denoise_net_pallas.1} parent=0 // pred_fallthru
    _
  %v136 = vld [vmem:[%s1] sm:$0xf]
  %v138 = vperm.slane %v136, 0
  %v139 = vperm.slane %v136, 1
  %v140 = vperm.slane %v136, 2
  %v141 = vperm.slane %v136, 3
  %146 = vrot.lane.b32.xlu0 %v138, 17
  %v147 = vpop.permute.xlu0 %146
  %148 = vrot.lane.b32.xlu0 %v139, 17
  %v149 = vpop.permute.xlu0 %148
  %150 = vrot.lane.b32.xlu0 %v140, 17
  %v151 = vpop.permute.xlu0 %150
  %152 = vrot.lane.b32.xlu0 %v141, 17
  %v153 = vpop.permute.xlu0 %152
  %v154 = vlaneseq
  %v155 = vand.u32 %v154, 127
  %vm156 = vcmp.lt.s32.totalorder %v155, 17
  %v157 = vsel %vm156, %v151, %v153
  %v158 = vsel %vm156, %v149, %v151
  %v159 = vsel %vm156, %v147, %v149
  %v160 = vsel %vm156, %v153, %v147
  %v161 = vld [vmem:[%s3] ss:$8 sm:$0xf]
  %v163 = vperm.slane %v161, 0
  %v164 = vperm.slane %v161, 1
  %v165 = vperm.slane %v161, 2
  %v166 = vperm.slane %v161, 3
  %v171 = vmul.f32 %v160, %v163
  %v172 = vmul.f32 %v159, %v164
  %v173 = vmul.f32 %v158, %v165
  %v174 = vmul.f32 %v157, %v166
  %175 = vrot.lane.b32.xlu0 %v138, 16
  %v176 = vpop.permute.xlu0 %175
  %177 = vrot.lane.b32.xlu0 %v139, 16
  %v178 = vpop.permute.xlu0 %177
  %179 = vrot.lane.b32.xlu0 %v140, 16
  %v180 = vpop.permute.xlu0 %179
  %181 = vrot.lane.b32.xlu0 %v141, 16
  %v182 = vpop.permute.xlu0 %181
  %vm183 = vcmp.lt.s32.totalorder %v155, 16
  %v184 = vsel %vm183, %v180, %v182
  %v185 = vsel %vm183, %v178, %v180
  %v186 = vsel %vm183, %v176, %v178
  %v187 = vsel %vm183, %v182, %v176
  %s188 = scalar_lea.vmem %s3, 1
  %v189 = vld [vmem:[%s188] ss:$8 sm:$0xf]
  %v191 = vperm.slane %v189, 0
  %v192 = vperm.slane %v189, 1
  %v193 = vperm.slane %v189, 2
  %v194 = vperm.slane %v189, 3
  %v199 = vmul.f32 %v187, %v191
  %v200 = vmul.f32 %v186, %v192
  %v201 = vmul.f32 %v185, %v193
  %v202 = vmul.f32 %v184, %v194
  %203 = vrot.lane.b32.xlu0 %v138, 15
  %v204 = vpop.permute.xlu0 %203
  %205 = vrot.lane.b32.xlu0 %v139, 15
  %v206 = vpop.permute.xlu0 %205
  %207 = vrot.lane.b32.xlu0 %v140, 15
  %v208 = vpop.permute.xlu0 %207
  %209 = vrot.lane.b32.xlu0 %v141, 15
  %v210 = vpop.permute.xlu0 %209
  %vm211 = vcmp.lt.s32.totalorder %v155, 15
  %v212 = vsel %vm211, %v208, %v210
  %v213 = vsel %vm211, %v206, %v208
  %v214 = vsel %vm211, %v204, %v206
  %v215 = vsel %vm211, %v210, %v204
  %s216 = scalar_lea.vmem %s3, 2
  %v217 = vld [vmem:[%s216] ss:$8 sm:$0xf]
  %v219 = vperm.slane %v217, 0
  %v220 = vperm.slane %v217, 1
  %v221 = vperm.slane %v217, 2
  %v222 = vperm.slane %v217, 3
  %v227 = vmul.f32 %v215, %v219
  %v228 = vmul.f32 %v214, %v220
  %v229 = vmul.f32 %v213, %v221
  %v230 = vmul.f32 %v212, %v222
  %231 = vrot.lane.b32.xlu0 %v138, 1
  %v232 = vpop.permute.xlu0 %231
  %233 = vrot.lane.b32.xlu0 %v139, 1
  %v234 = vpop.permute.xlu0 %233
  %235 = vrot.lane.b32.xlu0 %v140, 1
  %v236 = vpop.permute.xlu0 %235
  %237 = vrot.lane.b32.xlu0 %v141, 1
  %v238 = vpop.permute.xlu0 %237
  %vm239 = vcmp.lt.s32.totalorder %v155, 1
  %v240 = vsel %vm239, %v236, %v238
  %v241 = vsel %vm239, %v234, %v236
  %v242 = vsel %vm239, %v232, %v234
  %v243 = vsel %vm239, %v238, %v232
  %s244 = scalar_lea.vmem %s3, 3
  %v245 = vld [vmem:[%s244] ss:$8 sm:$0xf]
  %v247 = vperm.slane %v245, 0
  %v248 = vperm.slane %v245, 1
  %v249 = vperm.slane %v245, 2
  %v250 = vperm.slane %v245, 3
  %v255 = vmul.f32 %v243, %v247
  %v256 = vmul.f32 %v242, %v248
  %v257 = vmul.f32 %v241, %v249
  %v258 = vmul.f32 %v240, %v250
  %s259 = scalar_lea.vmem %s3, 4
  %v260 = vld [vmem:[%s259] ss:$8 sm:$0xf]
  %v261 = vmul.f32 %v136, %v260
  %262 = vrot.lane.b32.xlu0 %v138, 127
  %v263 = vpop.permute.xlu0 %262
  %264 = vrot.lane.b32.xlu0 %v139, 127
  %v265 = vpop.permute.xlu0 %264
  %266 = vrot.lane.b32.xlu0 %v140, 127
  %v267 = vpop.permute.xlu0 %266
  %268 = vrot.lane.b32.xlu0 %v141, 127
  %v269 = vpop.permute.xlu0 %268
  %vm270 = vcmp.lt.s32.totalorder %v155, 127
  %v271 = vsel %vm270, %v267, %v269
  %v272 = vsel %vm270, %v265, %v267
  %v273 = vsel %vm270, %v263, %v265
  %v274 = vsel %vm270, %v269, %v263
  %s275 = scalar_lea.vmem %s3, 5
  %v276 = vld [vmem:[%s275] ss:$8 sm:$0xf]
  %v278 = vperm.slane %v276, 0
  %v279 = vperm.slane %v276, 1
  %v280 = vperm.slane %v276, 2
  %v281 = vperm.slane %v276, 3
  %v286 = vmul.f32 %v273, %v278
  %v287 = vmul.f32 %v272, %v279
  %v288 = vmul.f32 %v271, %v280
  %v289 = vmul.f32 %v274, %v281
  %290 = vrot.lane.b32.xlu0 %v138, 113
  %v291 = vpop.permute.xlu0 %290
  %292 = vrot.lane.b32.xlu0 %v139, 113
  %v293 = vpop.permute.xlu0 %292
  %294 = vrot.lane.b32.xlu0 %v140, 113
  %v295 = vpop.permute.xlu0 %294
  %296 = vrot.lane.b32.xlu0 %v141, 113
  %v297 = vpop.permute.xlu0 %296
  %vm298 = vcmp.lt.s32.totalorder %v155, 113
  %v299 = vsel %vm298, %v295, %v297
  %v300 = vsel %vm298, %v293, %v295
  %v301 = vsel %vm298, %v291, %v293
  %v302 = vsel %vm298, %v297, %v291
  %s303 = scalar_lea.vmem %s3, 6
  %v304 = vld [vmem:[%s303] ss:$8 sm:$0xf]
  %v306 = vperm.slane %v304, 0
  %v307 = vperm.slane %v304, 1
  %v308 = vperm.slane %v304, 2
  %v309 = vperm.slane %v304, 3
  %v314 = vmul.f32 %v301, %v306
  %v315 = vmul.f32 %v300, %v307
  %v316 = vmul.f32 %v299, %v308
  %v317 = vmul.f32 %v302, %v309
  %318 = vrot.lane.b32.xlu0 %v138, 112
  %v319 = vpop.permute.xlu0 %318
  %320 = vrot.lane.b32.xlu0 %v139, 112
  %v321 = vpop.permute.xlu0 %320
  %322 = vrot.lane.b32.xlu0 %v140, 112
  %v323 = vpop.permute.xlu0 %322
  %324 = vrot.lane.b32.xlu0 %v141, 112
  %v325 = vpop.permute.xlu0 %324
  %vm326 = vcmp.lt.s32.totalorder %v155, 112
  %v327 = vsel %vm326, %v323, %v325
  %v328 = vsel %vm326, %v321, %v323
  %v329 = vsel %vm326, %v319, %v321
  %v330 = vsel %vm326, %v325, %v319
  %s331 = scalar_lea.vmem %s3, 7
  %v332 = vld [vmem:[%s331] ss:$8 sm:$0xf]
  %v334 = vperm.slane %v332, 0
  %v335 = vperm.slane %v332, 1
  %v336 = vperm.slane %v332, 2
  %v337 = vperm.slane %v332, 3
  %v342 = vmul.f32 %v329, %v334
  %v343 = vmul.f32 %v328, %v335
  %v344 = vmul.f32 %v327, %v336
  %v345 = vmul.f32 %v330, %v337
  %346 = vrot.lane.b32.xlu0 %v138, 111
  %v347 = vpop.permute.xlu0 %346
  %348 = vrot.lane.b32.xlu0 %v139, 111
  %v349 = vpop.permute.xlu0 %348
  %350 = vrot.lane.b32.xlu0 %v140, 111
  %v351 = vpop.permute.xlu0 %350
  %352 = vrot.lane.b32.xlu0 %v141, 111
  %v353 = vpop.permute.xlu0 %352
  %vm354 = vcmp.lt.s32.totalorder %v155, 111
  %v355 = vsel %vm354, %v351, %v353
  %v356 = vsel %vm354, %v349, %v351
  %v357 = vsel %vm354, %v347, %v349
  %v358 = vsel %vm354, %v353, %v347
  %s359 = scalar_lea.vmem %s3, 32
  %v360 = vld [vmem:[%s359] ss:$8 sm:$0xf]
  %v362 = vperm.slane %v360, 0
  %v363 = vperm.slane %v360, 1
  %v364 = vperm.slane %v360, 2
  %v365 = vperm.slane %v360, 3
  %v370 = vmul.f32 %v357, %v362
  %v371 = vmul.f32 %v356, %v363
  %v372 = vmul.f32 %v355, %v364
  %v373 = vmul.f32 %v358, %v365
  %v374 = vld [vmem:[%s17] sm:$0xff]
  %v375 = vld [vmem:[%s17 + $0x8] sm:$0xff]
  %378 = vrot.lane.b32.xlu0 %v374, 127
  %v379 = vpop.permute.xlu0 %378
  %380 = vrot.lane.b32.xlu0 %v375, 127
  %v381 = vpop.permute.xlu0 %380
  %vm382 = vcmask 7168
  %v383 = vsel %vm382, %v379, 0
  %v385 = vsel %vm382, %v381, 0
  %vm387 = vcmask 1040384
  %v389 = vsel %vm387, %v199, 0
  %v392 = vsel %vm387, %v200, 0
  %v395 = vsel %vm387, %v201, 0
  %v398 = vsel %vm387, %v202, 0
  %400 = vmatpush.msra.mxu0 0.0
  %401 = vmatpush.msra.mxu0 0.0
  %402 = vmatpush.msra.mxu0 0.0
  %403 = vmatpush.msra.mxu0 0.0
  %404 = vmatpush.msra.mxu0 0.0
  %405 = vmatpush.msra.mxu0 0.0
  %406 = vmatpush.msra.mxu0 0.0
  %407 = vmatpush.msra.mxu0 0.0
  %408 = vmatpush.msra.mxu0 0.0
  %409 = vmatpush.msra.mxu0 0.0
  %410 = vmatpush.msra.mxu0 0.0
  %411 = vmatpush.msra.mxu0 0.0
  %412 = vmatpush.msra.mxu0 0.0
  %413 = vmatpush.msra.mxu0 0.0
  %414 = vmatpush.msra.mxu0 0.0
  %415 = vmatpush.msra.mxu0 %v389
  %416 = vmatmul.f32.gmra.mxu0 %v383
  %v417 = vpop.f32.mrf.mxu0
  %v418 = vadd.f32 0.0, %v417
  %419 = vmatmul.f32.gmra.mxu0 %v385
  %v420 = vpop.f32.mrf.mxu0
  %v421 = vadd.f32 0.0, %v420
  %422 = vdwg.mxu0
  %423 = vmatpush.msra.mxu0 0.0
  %424 = vmatpush.msra.mxu0 0.0
  %425 = vmatpush.msra.mxu0 0.0
  %426 = vmatpush.msra.mxu0 0.0
  %427 = vmatpush.msra.mxu0 0.0
  %428 = vmatpush.msra.mxu0 0.0
  %429 = vmatpush.msra.mxu0 0.0
  %430 = vmatpush.msra.mxu0 0.0
  %431 = vmatpush.msra.mxu0 0.0
  %432 = vmatpush.msra.mxu0 0.0
  %433 = vmatpush.msra.mxu0 0.0
  %434 = vmatpush.msra.mxu0 0.0
  %435 = vmatpush.msra.mxu0 0.0
  %436 = vmatpush.msra.mxu0 0.0
  %437 = vmatpush.msra.mxu0 0.0
  %438 = vmatpush.msra.mxu0 %v392
  %439 = vmatmul.f32.gmra.mxu0 %v383
  %v440 = vpop.f32.mrf.mxu0
  %v441 = vadd.f32 0.0, %v440
  %442 = vmatmul.f32.gmra.mxu0 %v385
  %v443 = vpop.f32.mrf.mxu0
  %v444 = vadd.f32 0.0, %v443
  %445 = vdwg.mxu0
  %446 = vmatpush.msra.mxu0 0.0
  %447 = vmatpush.msra.mxu0 0.0
  %448 = vmatpush.msra.mxu0 0.0
  %449 = vmatpush.msra.mxu0 0.0
  %450 = vmatpush.msra.mxu0 0.0
  %451 = vmatpush.msra.mxu0 0.0
  %452 = vmatpush.msra.mxu0 0.0
  %453 = vmatpush.msra.mxu0 0.0
  %454 = vmatpush.msra.mxu0 0.0
  %455 = vmatpush.msra.mxu0 0.0
  %456 = vmatpush.msra.mxu0 0.0
  %457 = vmatpush.msra.mxu0 0.0
  %458 = vmatpush.msra.mxu0 0.0
  %459 = vmatpush.msra.mxu0 0.0
  %460 = vmatpush.msra.mxu0 0.0
  %461 = vmatpush.msra.mxu0 %v395
  %462 = vmatmul.f32.gmra.mxu0 %v383
  %v463 = vpop.f32.mrf.mxu0
  %v464 = vadd.f32 0.0, %v463
  %465 = vmatmul.f32.gmra.mxu0 %v385
  %v466 = vpop.f32.mrf.mxu0
  %v467 = vadd.f32 0.0, %v466
  %468 = vdwg.mxu0
  %469 = vmatpush.msra.mxu0 0.0
  %470 = vmatpush.msra.mxu0 0.0
  %471 = vmatpush.msra.mxu0 0.0
  %472 = vmatpush.msra.mxu0 0.0
  %473 = vmatpush.msra.mxu0 0.0
  %474 = vmatpush.msra.mxu0 0.0
  %475 = vmatpush.msra.mxu0 0.0
  %476 = vmatpush.msra.mxu0 0.0
  %477 = vmatpush.msra.mxu0 0.0
  %478 = vmatpush.msra.mxu0 0.0
  %479 = vmatpush.msra.mxu0 0.0
  %480 = vmatpush.msra.mxu0 0.0
  %481 = vmatpush.msra.mxu0 0.0
  %482 = vmatpush.msra.mxu0 0.0
  %483 = vmatpush.msra.mxu0 0.0
  %484 = vmatpush.msra.mxu0 %v398
  %485 = vmatmul.f32.gmra.mxu0 %v383
  %v486 = vpop.f32.mrf.mxu0
  %v487 = vadd.f32 0.0, %v486
  %488 = vmatmul.f32.gmra.mxu0 %v385
  %v489 = vpop.f32.mrf.mxu0
  %v490 = vadd.f32 0.0, %v489
  %491 = vdwg.mxu0
  %v492 = vsel %vm382, %v374, 0
  %v494 = vsel %vm382, %v375, 0
  %v497 = vsel %vm387, %v171, 0
  %v500 = vsel %vm387, %v172, 0
  %v503 = vsel %vm387, %v173, 0
  %v506 = vsel %vm387, %v174, 0
  %508 = vmatpush.msra.mxu0 0.0
  %509 = vmatpush.msra.mxu0 0.0
  %510 = vmatpush.msra.mxu0 0.0
  %511 = vmatpush.msra.mxu0 0.0
  %512 = vmatpush.msra.mxu0 0.0
  %513 = vmatpush.msra.mxu0 0.0
  %514 = vmatpush.msra.mxu0 0.0
  %515 = vmatpush.msra.mxu0 0.0
  %516 = vmatpush.msra.mxu0 0.0
  %517 = vmatpush.msra.mxu0 0.0
  %518 = vmatpush.msra.mxu0 0.0
  %519 = vmatpush.msra.mxu0 0.0
  %520 = vmatpush.msra.mxu0 0.0
  %521 = vmatpush.msra.mxu0 0.0
  %522 = vmatpush.msra.mxu0 0.0
  %523 = vmatpush.msra.mxu0 %v497
  %524 = vmatmul.f32.gmra.mxu0 %v492
  %v525 = vpop.f32.mrf.mxu0
  %v526 = vadd.f32 %v418, %v525
  %527 = vmatmul.f32.gmra.mxu0 %v494
  %v528 = vpop.f32.mrf.mxu0
  %v529 = vadd.f32 %v421, %v528
  %530 = vdwg.mxu0
  %531 = vmatpush.msra.mxu0 0.0
  %532 = vmatpush.msra.mxu0 0.0
  %533 = vmatpush.msra.mxu0 0.0
  %534 = vmatpush.msra.mxu0 0.0
  %535 = vmatpush.msra.mxu0 0.0
  %536 = vmatpush.msra.mxu0 0.0
  %537 = vmatpush.msra.mxu0 0.0
  %538 = vmatpush.msra.mxu0 0.0
  %539 = vmatpush.msra.mxu0 0.0
  %540 = vmatpush.msra.mxu0 0.0
  %541 = vmatpush.msra.mxu0 0.0
  %542 = vmatpush.msra.mxu0 0.0
  %543 = vmatpush.msra.mxu0 0.0
  %544 = vmatpush.msra.mxu0 0.0
  %545 = vmatpush.msra.mxu0 0.0
  %546 = vmatpush.msra.mxu0 %v500
  %547 = vmatmul.f32.gmra.mxu0 %v492
  %v548 = vpop.f32.mrf.mxu0
  %v549 = vadd.f32 %v441, %v548
  %550 = vmatmul.f32.gmra.mxu0 %v494
  %v551 = vpop.f32.mrf.mxu0
  %v552 = vadd.f32 %v444, %v551
  %553 = vdwg.mxu0
  %554 = vmatpush.msra.mxu0 0.0
  %555 = vmatpush.msra.mxu0 0.0
  %556 = vmatpush.msra.mxu0 0.0
  %557 = vmatpush.msra.mxu0 0.0
  %558 = vmatpush.msra.mxu0 0.0
  %559 = vmatpush.msra.mxu0 0.0
  %560 = vmatpush.msra.mxu0 0.0
  %561 = vmatpush.msra.mxu0 0.0
  %562 = vmatpush.msra.mxu0 0.0
  %563 = vmatpush.msra.mxu0 0.0
  %564 = vmatpush.msra.mxu0 0.0
  %565 = vmatpush.msra.mxu0 0.0
  %566 = vmatpush.msra.mxu0 0.0
  %567 = vmatpush.msra.mxu0 0.0
  %568 = vmatpush.msra.mxu0 0.0
  %569 = vmatpush.msra.mxu0 %v503
  %570 = vmatmul.f32.gmra.mxu0 %v492
  %v571 = vpop.f32.mrf.mxu0
  %v572 = vadd.f32 %v464, %v571
  %573 = vmatmul.f32.gmra.mxu0 %v494
  %v574 = vpop.f32.mrf.mxu0
  %v575 = vadd.f32 %v467, %v574
  %576 = vdwg.mxu0
  %577 = vmatpush.msra.mxu0 0.0
  %578 = vmatpush.msra.mxu0 0.0
  %579 = vmatpush.msra.mxu0 0.0
  %580 = vmatpush.msra.mxu0 0.0
  %581 = vmatpush.msra.mxu0 0.0
  %582 = vmatpush.msra.mxu0 0.0
  %583 = vmatpush.msra.mxu0 0.0
  %584 = vmatpush.msra.mxu0 0.0
  %585 = vmatpush.msra.mxu0 0.0
  %586 = vmatpush.msra.mxu0 0.0
  %587 = vmatpush.msra.mxu0 0.0
  %588 = vmatpush.msra.mxu0 0.0
  %589 = vmatpush.msra.mxu0 0.0
  %590 = vmatpush.msra.mxu0 0.0
  %591 = vmatpush.msra.mxu0 0.0
  %592 = vmatpush.msra.mxu0 %v506
  %593 = vmatmul.f32.gmra.mxu0 %v492
  %v594 = vpop.f32.mrf.mxu0
  %v595 = vadd.f32 %v487, %v594
  %596 = vmatmul.f32.gmra.mxu0 %v494
  %v597 = vpop.f32.mrf.mxu0
  %v598 = vadd.f32 %v490, %v597
  %599 = vdwg.mxu0
  %600 = vrot.lane.b32.xlu0 %v374, 126
  %v601 = vpop.permute.xlu0 %600
  %602 = vrot.lane.b32.xlu0 %v375, 126
  %v603 = vpop.permute.xlu0 %602
  %v604 = vsel %vm382, %v601, 0
  %v606 = vsel %vm382, %v603, 0
  %v609 = vsel %vm387, %v227, 0
  %v612 = vsel %vm387, %v228, 0
  %v615 = vsel %vm387, %v229, 0
  %v618 = vsel %vm387, %v230, 0
  %620 = vmatpush.msra.mxu0 0.0
  %621 = vmatpush.msra.mxu0 0.0
  %622 = vmatpush.msra.mxu0 0.0
  %623 = vmatpush.msra.mxu0 0.0
  %624 = vmatpush.msra.mxu0 0.0
  %625 = vmatpush.msra.mxu0 0.0
  %626 = vmatpush.msra.mxu0 0.0
  %627 = vmatpush.msra.mxu0 0.0
  %628 = vmatpush.msra.mxu0 0.0
  %629 = vmatpush.msra.mxu0 0.0
  %630 = vmatpush.msra.mxu0 0.0
  %631 = vmatpush.msra.mxu0 0.0
  %632 = vmatpush.msra.mxu0 0.0
  %633 = vmatpush.msra.mxu0 0.0
  %634 = vmatpush.msra.mxu0 0.0
  %635 = vmatpush.msra.mxu0 %v609
  %636 = vmatmul.f32.gmra.mxu0 %v604
  %v637 = vpop.f32.mrf.mxu0
  %v638 = vadd.f32 0.0, %v637
  %639 = vmatmul.f32.gmra.mxu0 %v606
  %v640 = vpop.f32.mrf.mxu0
  %v641 = vadd.f32 0.0, %v640
  %642 = vdwg.mxu0
  %643 = vmatpush.msra.mxu0 0.0
  %644 = vmatpush.msra.mxu0 0.0
  %645 = vmatpush.msra.mxu0 0.0
  %646 = vmatpush.msra.mxu0 0.0
  %647 = vmatpush.msra.mxu0 0.0
  %648 = vmatpush.msra.mxu0 0.0
  %649 = vmatpush.msra.mxu0 0.0
  %650 = vmatpush.msra.mxu0 0.0
  %651 = vmatpush.msra.mxu0 0.0
  %652 = vmatpush.msra.mxu0 0.0
  %653 = vmatpush.msra.mxu0 0.0
  %654 = vmatpush.msra.mxu0 0.0
  %655 = vmatpush.msra.mxu0 0.0
  %656 = vmatpush.msra.mxu0 0.0
  %657 = vmatpush.msra.mxu0 0.0
  %658 = vmatpush.msra.mxu0 %v612
  %659 = vmatmul.f32.gmra.mxu0 %v604
  %v660 = vpop.f32.mrf.mxu0
  %v661 = vadd.f32 0.0, %v660
  %662 = vmatmul.f32.gmra.mxu0 %v606
  %v663 = vpop.f32.mrf.mxu0
  %v664 = vadd.f32 0.0, %v663
  %665 = vdwg.mxu0
  %666 = vmatpush.msra.mxu0 0.0
  %667 = vmatpush.msra.mxu0 0.0
  %668 = vmatpush.msra.mxu0 0.0
  %669 = vmatpush.msra.mxu0 0.0
  %670 = vmatpush.msra.mxu0 0.0
  %671 = vmatpush.msra.mxu0 0.0
  %672 = vmatpush.msra.mxu0 0.0
  %673 = vmatpush.msra.mxu0 0.0
  %674 = vmatpush.msra.mxu0 0.0
  %675 = vmatpush.msra.mxu0 0.0
  %676 = vmatpush.msra.mxu0 0.0
  %677 = vmatpush.msra.mxu0 0.0
  %678 = vmatpush.msra.mxu0 0.0
  %679 = vmatpush.msra.mxu0 0.0
  %680 = vmatpush.msra.mxu0 0.0
  %681 = vmatpush.msra.mxu0 %v615
  %682 = vmatmul.f32.gmra.mxu0 %v604
  %v683 = vpop.f32.mrf.mxu0
  %v684 = vadd.f32 0.0, %v683
  %685 = vmatmul.f32.gmra.mxu0 %v606
  %v686 = vpop.f32.mrf.mxu0
  %v687 = vadd.f32 0.0, %v686
  %688 = vdwg.mxu0
  %689 = vmatpush.msra.mxu0 0.0
  %690 = vmatpush.msra.mxu0 0.0
  %691 = vmatpush.msra.mxu0 0.0
  %692 = vmatpush.msra.mxu0 0.0
  %693 = vmatpush.msra.mxu0 0.0
  %694 = vmatpush.msra.mxu0 0.0
  %695 = vmatpush.msra.mxu0 0.0
  %696 = vmatpush.msra.mxu0 0.0
  %697 = vmatpush.msra.mxu0 0.0
  %698 = vmatpush.msra.mxu0 0.0
  %699 = vmatpush.msra.mxu0 0.0
  %700 = vmatpush.msra.mxu0 0.0
  %701 = vmatpush.msra.mxu0 0.0
  %702 = vmatpush.msra.mxu0 0.0
  %703 = vmatpush.msra.mxu0 0.0
  %704 = vmatpush.msra.mxu0 %v618
  %705 = vmatmul.f32.gmra.mxu0 %v604
  %v706 = vpop.f32.mrf.mxu0
  %v707 = vadd.f32 0.0, %v706
  %708 = vmatmul.f32.gmra.mxu0 %v606
  %v709 = vpop.f32.mrf.mxu0
  %v710 = vadd.f32 0.0, %v709
  %711 = vdwg.mxu0
  %v712 = vadd.f32 %v526, %v638
  %v713 = vadd.f32 %v549, %v661
  %v714 = vadd.f32 %v572, %v684
  %v715 = vadd.f32 %v595, %v707
  %v716 = vadd.f32 %v529, %v641
  %v717 = vadd.f32 %v552, %v664
  %v718 = vadd.f32 %v575, %v687
  %v719 = vadd.f32 %v598, %v710
  %720 = vrot.lane.b32.xlu0 %v374, 125
  %v721 = vpop.permute.xlu0 %720
  %722 = vrot.lane.b32.xlu0 %v375, 125
  %v723 = vpop.permute.xlu0 %722
  %v724 = vsel %vm382, %v721, 0
  %v726 = vsel %vm382, %v723, 0
  %v729 = vsel %vm387, %v255, 0
  %v732 = vsel %vm387, %v256, 0
  %v735 = vsel %vm387, %v257, 0
  %v738 = vsel %vm387, %v258, 0
  %740 = vmatpush.msra.mxu0 0.0
  %741 = vmatpush.msra.mxu0 0.0
  %742 = vmatpush.msra.mxu0 0.0
  %743 = vmatpush.msra.mxu0 0.0
  %744 = vmatpush.msra.mxu0 0.0
  %745 = vmatpush.msra.mxu0 0.0
  %746 = vmatpush.msra.mxu0 0.0
  %747 = vmatpush.msra.mxu0 0.0
  %748 = vmatpush.msra.mxu0 0.0
  %749 = vmatpush.msra.mxu0 0.0
  %750 = vmatpush.msra.mxu0 0.0
  %751 = vmatpush.msra.mxu0 0.0
  %752 = vmatpush.msra.mxu0 0.0
  %753 = vmatpush.msra.mxu0 0.0
  %754 = vmatpush.msra.mxu0 0.0
  %755 = vmatpush.msra.mxu0 %v729
  %756 = vmatmul.f32.gmra.mxu0 %v724
  %v757 = vpop.f32.mrf.mxu0
  %v758 = vadd.f32 0.0, %v757
  %759 = vmatmul.f32.gmra.mxu0 %v726
  %v760 = vpop.f32.mrf.mxu0
  %v761 = vadd.f32 0.0, %v760
  %762 = vdwg.mxu0
  %763 = vmatpush.msra.mxu0 0.0
  %764 = vmatpush.msra.mxu0 0.0
  %765 = vmatpush.msra.mxu0 0.0
  %766 = vmatpush.msra.mxu0 0.0
  %767 = vmatpush.msra.mxu0 0.0
  %768 = vmatpush.msra.mxu0 0.0
  %769 = vmatpush.msra.mxu0 0.0
  %770 = vmatpush.msra.mxu0 0.0
  %771 = vmatpush.msra.mxu0 0.0
  %772 = vmatpush.msra.mxu0 0.0
  %773 = vmatpush.msra.mxu0 0.0
  %774 = vmatpush.msra.mxu0 0.0
  %775 = vmatpush.msra.mxu0 0.0
  %776 = vmatpush.msra.mxu0 0.0
  %777 = vmatpush.msra.mxu0 0.0
  %778 = vmatpush.msra.mxu0 %v732
  %779 = vmatmul.f32.gmra.mxu0 %v724
  %v780 = vpop.f32.mrf.mxu0
  %v781 = vadd.f32 0.0, %v780
  %782 = vmatmul.f32.gmra.mxu0 %v726
  %v783 = vpop.f32.mrf.mxu0
  %v784 = vadd.f32 0.0, %v783
  %785 = vdwg.mxu0
  %786 = vmatpush.msra.mxu0 0.0
  %787 = vmatpush.msra.mxu0 0.0
  %788 = vmatpush.msra.mxu0 0.0
  %789 = vmatpush.msra.mxu0 0.0
  %790 = vmatpush.msra.mxu0 0.0
  %791 = vmatpush.msra.mxu0 0.0
  %792 = vmatpush.msra.mxu0 0.0
  %793 = vmatpush.msra.mxu0 0.0
  %794 = vmatpush.msra.mxu0 0.0
  %795 = vmatpush.msra.mxu0 0.0
  %796 = vmatpush.msra.mxu0 0.0
  %797 = vmatpush.msra.mxu0 0.0
  %798 = vmatpush.msra.mxu0 0.0
  %799 = vmatpush.msra.mxu0 0.0
  %800 = vmatpush.msra.mxu0 0.0
  %801 = vmatpush.msra.mxu0 %v735
  %802 = vmatmul.f32.gmra.mxu0 %v724
  %v803 = vpop.f32.mrf.mxu0
  %v804 = vadd.f32 0.0, %v803
  %805 = vmatmul.f32.gmra.mxu0 %v726
  %v806 = vpop.f32.mrf.mxu0
  %v807 = vadd.f32 0.0, %v806
  %808 = vdwg.mxu0
  %809 = vmatpush.msra.mxu0 0.0
  %810 = vmatpush.msra.mxu0 0.0
  %811 = vmatpush.msra.mxu0 0.0
  %812 = vmatpush.msra.mxu0 0.0
  %813 = vmatpush.msra.mxu0 0.0
  %814 = vmatpush.msra.mxu0 0.0
  %815 = vmatpush.msra.mxu0 0.0
  %816 = vmatpush.msra.mxu0 0.0
  %817 = vmatpush.msra.mxu0 0.0
  %818 = vmatpush.msra.mxu0 0.0
  %819 = vmatpush.msra.mxu0 0.0
  %820 = vmatpush.msra.mxu0 0.0
  %821 = vmatpush.msra.mxu0 0.0
  %822 = vmatpush.msra.mxu0 0.0
  %823 = vmatpush.msra.mxu0 0.0
  %824 = vmatpush.msra.mxu0 %v738
  %825 = vmatmul.f32.gmra.mxu0 %v724
  %v826 = vpop.f32.mrf.mxu0
  %v827 = vadd.f32 0.0, %v826
  %828 = vmatmul.f32.gmra.mxu0 %v726
  %v829 = vpop.f32.mrf.mxu0
  %v830 = vadd.f32 0.0, %v829
  %831 = vdwg.mxu0
  %v832 = vadd.f32 %v712, %v758
  %v833 = vadd.f32 %v713, %v781
  %v834 = vadd.f32 %v714, %v804
  %v835 = vadd.f32 %v715, %v827
  %v836 = vadd.f32 %v716, %v761
  %v837 = vadd.f32 %v717, %v784
  %v838 = vadd.f32 %v718, %v807
  %v839 = vadd.f32 %v719, %v830
  %840 = vrot.lane.b32.xlu0 %v374, 124
  %v841 = vpop.permute.xlu0 %840
  %842 = vrot.lane.b32.xlu0 %v375, 124
  %v843 = vpop.permute.xlu0 %842
  %v845 = vperm.slane %v261, 0
  %v846 = vperm.slane %v261, 1
  %v847 = vperm.slane %v261, 2
  %v848 = vperm.slane %v261, 3
  %v849 = vsel %vm382, %v841, 0
  %v851 = vsel %vm382, %v843, 0
  %v853 = vsel %vm387, %v845, 0
  %v855 = vsel %vm387, %v846, 0
  %v857 = vsel %vm387, %v847, 0
  %v859 = vsel %vm387, %v848, 0
  %861 = vmatpush.msra.mxu0 0.0
  %862 = vmatpush.msra.mxu0 0.0
  %863 = vmatpush.msra.mxu0 0.0
  %864 = vmatpush.msra.mxu0 0.0
  %865 = vmatpush.msra.mxu0 0.0
  %866 = vmatpush.msra.mxu0 0.0
  %867 = vmatpush.msra.mxu0 0.0
  %868 = vmatpush.msra.mxu0 0.0
  %869 = vmatpush.msra.mxu0 0.0
  %870 = vmatpush.msra.mxu0 0.0
  %871 = vmatpush.msra.mxu0 0.0
  %872 = vmatpush.msra.mxu0 0.0
  %873 = vmatpush.msra.mxu0 0.0
  %874 = vmatpush.msra.mxu0 0.0
  %875 = vmatpush.msra.mxu0 0.0
  %876 = vmatpush.msra.mxu0 %v853
  %877 = vmatmul.f32.gmra.mxu0 %v849
  %v878 = vpop.f32.mrf.mxu0
  %v879 = vadd.f32 0.0, %v878
  %880 = vmatmul.f32.gmra.mxu0 %v851
  %v881 = vpop.f32.mrf.mxu0
  %v882 = vadd.f32 0.0, %v881
  %883 = vdwg.mxu0
  %884 = vmatpush.msra.mxu0 0.0
  %885 = vmatpush.msra.mxu0 0.0
  %886 = vmatpush.msra.mxu0 0.0
  %887 = vmatpush.msra.mxu0 0.0
  %888 = vmatpush.msra.mxu0 0.0
  %889 = vmatpush.msra.mxu0 0.0
  %890 = vmatpush.msra.mxu0 0.0
  %891 = vmatpush.msra.mxu0 0.0
  %892 = vmatpush.msra.mxu0 0.0
  %893 = vmatpush.msra.mxu0 0.0
  %894 = vmatpush.msra.mxu0 0.0
  %895 = vmatpush.msra.mxu0 0.0
  %896 = vmatpush.msra.mxu0 0.0
  %897 = vmatpush.msra.mxu0 0.0
  %898 = vmatpush.msra.mxu0 0.0
  %899 = vmatpush.msra.mxu0 %v855
  %900 = vmatmul.f32.gmra.mxu0 %v849
  %v901 = vpop.f32.mrf.mxu0
  %v902 = vadd.f32 0.0, %v901
  %903 = vmatmul.f32.gmra.mxu0 %v851
  %v904 = vpop.f32.mrf.mxu0
  %v905 = vadd.f32 0.0, %v904
  %906 = vdwg.mxu0
  %907 = vmatpush.msra.mxu0 0.0
  %908 = vmatpush.msra.mxu0 0.0
  %909 = vmatpush.msra.mxu0 0.0
  %910 = vmatpush.msra.mxu0 0.0
  %911 = vmatpush.msra.mxu0 0.0
  %912 = vmatpush.msra.mxu0 0.0
  %913 = vmatpush.msra.mxu0 0.0
  %914 = vmatpush.msra.mxu0 0.0
  %915 = vmatpush.msra.mxu0 0.0
  %916 = vmatpush.msra.mxu0 0.0
  %917 = vmatpush.msra.mxu0 0.0
  %918 = vmatpush.msra.mxu0 0.0
  %919 = vmatpush.msra.mxu0 0.0
  %920 = vmatpush.msra.mxu0 0.0
  %921 = vmatpush.msra.mxu0 0.0
  %922 = vmatpush.msra.mxu0 %v857
  %923 = vmatmul.f32.gmra.mxu0 %v849
  %v924 = vpop.f32.mrf.mxu0
  %v925 = vadd.f32 0.0, %v924
  %926 = vmatmul.f32.gmra.mxu0 %v851
  %v927 = vpop.f32.mrf.mxu0
  %v928 = vadd.f32 0.0, %v927
  %929 = vdwg.mxu0
  %930 = vmatpush.msra.mxu0 0.0
  %931 = vmatpush.msra.mxu0 0.0
  %932 = vmatpush.msra.mxu0 0.0
  %933 = vmatpush.msra.mxu0 0.0
  %934 = vmatpush.msra.mxu0 0.0
  %935 = vmatpush.msra.mxu0 0.0
  %936 = vmatpush.msra.mxu0 0.0
  %937 = vmatpush.msra.mxu0 0.0
  %938 = vmatpush.msra.mxu0 0.0
  %939 = vmatpush.msra.mxu0 0.0
  %940 = vmatpush.msra.mxu0 0.0
  %941 = vmatpush.msra.mxu0 0.0
  %942 = vmatpush.msra.mxu0 0.0
  %943 = vmatpush.msra.mxu0 0.0
  %944 = vmatpush.msra.mxu0 0.0
  %945 = vmatpush.msra.mxu0 %v859
  %946 = vmatmul.f32.gmra.mxu0 %v849
  %v947 = vpop.f32.mrf.mxu0
  %v948 = vadd.f32 0.0, %v947
  %949 = vmatmul.f32.gmra.mxu0 %v851
  %v950 = vpop.f32.mrf.mxu0
  %v951 = vadd.f32 0.0, %v950
  %952 = vdwg.mxu0
  %v953 = vadd.f32 %v832, %v879
  %v954 = vadd.f32 %v833, %v902
  %v955 = vadd.f32 %v834, %v925
  %v956 = vadd.f32 %v835, %v948
  %v957 = vadd.f32 %v836, %v882
  %v958 = vadd.f32 %v837, %v905
  %v959 = vadd.f32 %v838, %v928
  %v960 = vadd.f32 %v839, %v951
  %961 = vrot.lane.b32.xlu0 %v374, 123
  %v962 = vpop.permute.xlu0 %961
  %963 = vrot.lane.b32.xlu0 %v375, 123
  %v964 = vpop.permute.xlu0 %963
  %v965 = vsel %vm382, %v962, 0
  %v967 = vsel %vm382, %v964, 0
  %v970 = vsel %vm387, %v286, 0
  %v973 = vsel %vm387, %v287, 0
  %v976 = vsel %vm387, %v288, 0
  %v979 = vsel %vm387, %v289, 0
  %981 = vmatpush.msra.mxu0 0.0
  %982 = vmatpush.msra.mxu0 0.0
  %983 = vmatpush.msra.mxu0 0.0
  %984 = vmatpush.msra.mxu0 0.0
  %985 = vmatpush.msra.mxu0 0.0
  %986 = vmatpush.msra.mxu0 0.0
  %987 = vmatpush.msra.mxu0 0.0
  %988 = vmatpush.msra.mxu0 0.0
  %989 = vmatpush.msra.mxu0 0.0
  %990 = vmatpush.msra.mxu0 0.0
  %991 = vmatpush.msra.mxu0 0.0
  %992 = vmatpush.msra.mxu0 0.0
  %993 = vmatpush.msra.mxu0 0.0
  %994 = vmatpush.msra.mxu0 0.0
  %995 = vmatpush.msra.mxu0 0.0
  %996 = vmatpush.msra.mxu0 %v970
  %997 = vmatmul.f32.gmra.mxu0 %v965
  %v998 = vpop.f32.mrf.mxu0
  %v999 = vadd.f32 0.0, %v998
  %1000 = vmatmul.f32.gmra.mxu0 %v967
  %v1001 = vpop.f32.mrf.mxu0
  %v1002 = vadd.f32 0.0, %v1001
  %1003 = vdwg.mxu0
  %1004 = vmatpush.msra.mxu0 0.0
  %1005 = vmatpush.msra.mxu0 0.0
  %1006 = vmatpush.msra.mxu0 0.0
  %1007 = vmatpush.msra.mxu0 0.0
  %1008 = vmatpush.msra.mxu0 0.0
  %1009 = vmatpush.msra.mxu0 0.0
  %1010 = vmatpush.msra.mxu0 0.0
  %1011 = vmatpush.msra.mxu0 0.0
  %1012 = vmatpush.msra.mxu0 0.0
  %1013 = vmatpush.msra.mxu0 0.0
  %1014 = vmatpush.msra.mxu0 0.0
  %1015 = vmatpush.msra.mxu0 0.0
  %1016 = vmatpush.msra.mxu0 0.0
  %1017 = vmatpush.msra.mxu0 0.0
  %1018 = vmatpush.msra.mxu0 0.0
  %1019 = vmatpush.msra.mxu0 %v973
  %1020 = vmatmul.f32.gmra.mxu0 %v965
  %v1021 = vpop.f32.mrf.mxu0
  %v1022 = vadd.f32 0.0, %v1021
  %1023 = vmatmul.f32.gmra.mxu0 %v967
  %v1024 = vpop.f32.mrf.mxu0
  %v1025 = vadd.f32 0.0, %v1024
  %1026 = vdwg.mxu0
  %1027 = vmatpush.msra.mxu0 0.0
  %1028 = vmatpush.msra.mxu0 0.0
  %1029 = vmatpush.msra.mxu0 0.0
  %1030 = vmatpush.msra.mxu0 0.0
  %1031 = vmatpush.msra.mxu0 0.0
  %1032 = vmatpush.msra.mxu0 0.0
  %1033 = vmatpush.msra.mxu0 0.0
  %1034 = vmatpush.msra.mxu0 0.0
  %1035 = vmatpush.msra.mxu0 0.0
  %1036 = vmatpush.msra.mxu0 0.0
  %1037 = vmatpush.msra.mxu0 0.0
  %1038 = vmatpush.msra.mxu0 0.0
  %1039 = vmatpush.msra.mxu0 0.0
  %1040 = vmatpush.msra.mxu0 0.0
  %1041 = vmatpush.msra.mxu0 0.0
  %1042 = vmatpush.msra.mxu0 %v976
  %1043 = vmatmul.f32.gmra.mxu0 %v965
  %v1044 = vpop.f32.mrf.mxu0
  %v1045 = vadd.f32 0.0, %v1044
  %1046 = vmatmul.f32.gmra.mxu0 %v967
  %v1047 = vpop.f32.mrf.mxu0
  %v1048 = vadd.f32 0.0, %v1047
  %1049 = vdwg.mxu0
  %1050 = vmatpush.msra.mxu0 0.0
  %1051 = vmatpush.msra.mxu0 0.0
  %1052 = vmatpush.msra.mxu0 0.0
  %1053 = vmatpush.msra.mxu0 0.0
  %1054 = vmatpush.msra.mxu0 0.0
  %1055 = vmatpush.msra.mxu0 0.0
  %1056 = vmatpush.msra.mxu0 0.0
  %1057 = vmatpush.msra.mxu0 0.0
  %1058 = vmatpush.msra.mxu0 0.0
  %1059 = vmatpush.msra.mxu0 0.0
  %1060 = vmatpush.msra.mxu0 0.0
  %1061 = vmatpush.msra.mxu0 0.0
  %1062 = vmatpush.msra.mxu0 0.0
  %1063 = vmatpush.msra.mxu0 0.0
  %1064 = vmatpush.msra.mxu0 0.0
  %1065 = vmatpush.msra.mxu0 %v979
  %1066 = vmatmul.f32.gmra.mxu0 %v965
  %v1067 = vpop.f32.mrf.mxu0
  %v1068 = vadd.f32 0.0, %v1067
  %1069 = vmatmul.f32.gmra.mxu0 %v967
  %v1070 = vpop.f32.mrf.mxu0
  %v1071 = vadd.f32 0.0, %v1070
  %1072 = vdwg.mxu0
  %v1073 = vadd.f32 %v953, %v999
  %v1074 = vadd.f32 %v954, %v1022
  %v1075 = vadd.f32 %v955, %v1045
  %v1076 = vadd.f32 %v956, %v1068
  %v1077 = vadd.f32 %v957, %v1002
  %v1078 = vadd.f32 %v958, %v1025
  %v1079 = vadd.f32 %v959, %v1048
  %v1080 = vadd.f32 %v960, %v1071
  %1081 = vrot.lane.b32.xlu0 %v374, 122
  %v1082 = vpop.permute.xlu0 %1081
  %1083 = vrot.lane.b32.xlu0 %v375, 122
  %v1084 = vpop.permute.xlu0 %1083
  %v1085 = vsel %vm382, %v1082, 0
  %v1087 = vsel %vm382, %v1084, 0
  %v1090 = vsel %vm387, %v314, 0
  %v1093 = vsel %vm387, %v315, 0
  %v1096 = vsel %vm387, %v316, 0
  %v1099 = vsel %vm387, %v317, 0
  %1101 = vmatpush.msra.mxu0 0.0
  %1102 = vmatpush.msra.mxu0 0.0
  %1103 = vmatpush.msra.mxu0 0.0
  %1104 = vmatpush.msra.mxu0 0.0
  %1105 = vmatpush.msra.mxu0 0.0
  %1106 = vmatpush.msra.mxu0 0.0
  %1107 = vmatpush.msra.mxu0 0.0
  %1108 = vmatpush.msra.mxu0 0.0
  %1109 = vmatpush.msra.mxu0 0.0
  %1110 = vmatpush.msra.mxu0 0.0
  %1111 = vmatpush.msra.mxu0 0.0
  %1112 = vmatpush.msra.mxu0 0.0
  %1113 = vmatpush.msra.mxu0 0.0
  %1114 = vmatpush.msra.mxu0 0.0
  %1115 = vmatpush.msra.mxu0 0.0
  %1116 = vmatpush.msra.mxu0 %v1090
  %1117 = vmatmul.f32.gmra.mxu0 %v1085
  %v1118 = vpop.f32.mrf.mxu0
  %v1119 = vadd.f32 0.0, %v1118
  %1120 = vmatmul.f32.gmra.mxu0 %v1087
  %v1121 = vpop.f32.mrf.mxu0
  %v1122 = vadd.f32 0.0, %v1121
  %1123 = vdwg.mxu0
  %1124 = vmatpush.msra.mxu0 0.0
  %1125 = vmatpush.msra.mxu0 0.0
  %1126 = vmatpush.msra.mxu0 0.0
  %1127 = vmatpush.msra.mxu0 0.0
  %1128 = vmatpush.msra.mxu0 0.0
  %1129 = vmatpush.msra.mxu0 0.0
  %1130 = vmatpush.msra.mxu0 0.0
  %1131 = vmatpush.msra.mxu0 0.0
  %1132 = vmatpush.msra.mxu0 0.0
  %1133 = vmatpush.msra.mxu0 0.0
  %1134 = vmatpush.msra.mxu0 0.0
  %1135 = vmatpush.msra.mxu0 0.0
  %1136 = vmatpush.msra.mxu0 0.0
  %1137 = vmatpush.msra.mxu0 0.0
  %1138 = vmatpush.msra.mxu0 0.0
  %1139 = vmatpush.msra.mxu0 %v1093
  %1140 = vmatmul.f32.gmra.mxu0 %v1085
  %v1141 = vpop.f32.mrf.mxu0
  %v1142 = vadd.f32 0.0, %v1141
  %1143 = vmatmul.f32.gmra.mxu0 %v1087
  %v1144 = vpop.f32.mrf.mxu0
  %v1145 = vadd.f32 0.0, %v1144
  %1146 = vdwg.mxu0
  %1147 = vmatpush.msra.mxu0 0.0
  %1148 = vmatpush.msra.mxu0 0.0
  %1149 = vmatpush.msra.mxu0 0.0
  %1150 = vmatpush.msra.mxu0 0.0
  %1151 = vmatpush.msra.mxu0 0.0
  %1152 = vmatpush.msra.mxu0 0.0
  %1153 = vmatpush.msra.mxu0 0.0
  %1154 = vmatpush.msra.mxu0 0.0
  %1155 = vmatpush.msra.mxu0 0.0
  %1156 = vmatpush.msra.mxu0 0.0
  %1157 = vmatpush.msra.mxu0 0.0
  %1158 = vmatpush.msra.mxu0 0.0
  %1159 = vmatpush.msra.mxu0 0.0
  %1160 = vmatpush.msra.mxu0 0.0
  %1161 = vmatpush.msra.mxu0 0.0
  %1162 = vmatpush.msra.mxu0 %v1096
  %1163 = vmatmul.f32.gmra.mxu0 %v1085
  %v1164 = vpop.f32.mrf.mxu0
  %v1165 = vadd.f32 0.0, %v1164
  %1166 = vmatmul.f32.gmra.mxu0 %v1087
  %v1167 = vpop.f32.mrf.mxu0
  %v1168 = vadd.f32 0.0, %v1167
  %1169 = vdwg.mxu0
  %1170 = vmatpush.msra.mxu0 0.0
  %1171 = vmatpush.msra.mxu0 0.0
  %1172 = vmatpush.msra.mxu0 0.0
  %1173 = vmatpush.msra.mxu0 0.0
  %1174 = vmatpush.msra.mxu0 0.0
  %1175 = vmatpush.msra.mxu0 0.0
  %1176 = vmatpush.msra.mxu0 0.0
  %1177 = vmatpush.msra.mxu0 0.0
  %1178 = vmatpush.msra.mxu0 0.0
  %1179 = vmatpush.msra.mxu0 0.0
  %1180 = vmatpush.msra.mxu0 0.0
  %1181 = vmatpush.msra.mxu0 0.0
  %1182 = vmatpush.msra.mxu0 0.0
  %1183 = vmatpush.msra.mxu0 0.0
  %1184 = vmatpush.msra.mxu0 0.0
  %1185 = vmatpush.msra.mxu0 %v1099
  %1186 = vmatmul.f32.gmra.mxu0 %v1085
  %v1187 = vpop.f32.mrf.mxu0
  %v1188 = vadd.f32 0.0, %v1187
  %1189 = vmatmul.f32.gmra.mxu0 %v1087
  %v1190 = vpop.f32.mrf.mxu0
  %v1191 = vadd.f32 0.0, %v1190
  %1192 = vdwg.mxu0
  %v1193 = vadd.f32 %v1073, %v1119
  %v1194 = vadd.f32 %v1074, %v1142
  %v1195 = vadd.f32 %v1075, %v1165
  %v1196 = vadd.f32 %v1076, %v1188
  %v1197 = vadd.f32 %v1077, %v1122
  %v1198 = vadd.f32 %v1078, %v1145
  %v1199 = vadd.f32 %v1079, %v1168
  %v1200 = vadd.f32 %v1080, %v1191
  %1201 = vrot.lane.b32.xlu0 %v374, 121
  %v1202 = vpop.permute.xlu0 %1201
  %1203 = vrot.lane.b32.xlu0 %v375, 121
  %v1204 = vpop.permute.xlu0 %1203
  %v1205 = vsel %vm382, %v1202, 0
  %v1207 = vsel %vm382, %v1204, 0
  %v1210 = vsel %vm387, %v342, 0
  %v1213 = vsel %vm387, %v343, 0
  %v1216 = vsel %vm387, %v344, 0
  %v1219 = vsel %vm387, %v345, 0
  %1221 = vmatpush.msra.mxu0 0.0
  %1222 = vmatpush.msra.mxu0 0.0
  %1223 = vmatpush.msra.mxu0 0.0
  %1224 = vmatpush.msra.mxu0 0.0
  %1225 = vmatpush.msra.mxu0 0.0
  %1226 = vmatpush.msra.mxu0 0.0
  %1227 = vmatpush.msra.mxu0 0.0
  %1228 = vmatpush.msra.mxu0 0.0
  %1229 = vmatpush.msra.mxu0 0.0
  %1230 = vmatpush.msra.mxu0 0.0
  %1231 = vmatpush.msra.mxu0 0.0
  %1232 = vmatpush.msra.mxu0 0.0
  %1233 = vmatpush.msra.mxu0 0.0
  %1234 = vmatpush.msra.mxu0 0.0
  %1235 = vmatpush.msra.mxu0 0.0
  %1236 = vmatpush.msra.mxu0 %v1210
  %1237 = vmatmul.f32.gmra.mxu0 %v1205
  %v1238 = vpop.f32.mrf.mxu0
  %v1239 = vadd.f32 0.0, %v1238
  %1240 = vmatmul.f32.gmra.mxu0 %v1207
  %v1241 = vpop.f32.mrf.mxu0
  %v1242 = vadd.f32 0.0, %v1241
  %1243 = vdwg.mxu0
  %1244 = vmatpush.msra.mxu0 0.0
  %1245 = vmatpush.msra.mxu0 0.0
  %1246 = vmatpush.msra.mxu0 0.0
  %1247 = vmatpush.msra.mxu0 0.0
  %1248 = vmatpush.msra.mxu0 0.0
  %1249 = vmatpush.msra.mxu0 0.0
  %1250 = vmatpush.msra.mxu0 0.0
  %1251 = vmatpush.msra.mxu0 0.0
  %1252 = vmatpush.msra.mxu0 0.0
  %1253 = vmatpush.msra.mxu0 0.0
  %1254 = vmatpush.msra.mxu0 0.0
  %1255 = vmatpush.msra.mxu0 0.0
  %1256 = vmatpush.msra.mxu0 0.0
  %1257 = vmatpush.msra.mxu0 0.0
  %1258 = vmatpush.msra.mxu0 0.0
  %1259 = vmatpush.msra.mxu0 %v1213
  %1260 = vmatmul.f32.gmra.mxu0 %v1205
  %v1261 = vpop.f32.mrf.mxu0
  %v1262 = vadd.f32 0.0, %v1261
  %1263 = vmatmul.f32.gmra.mxu0 %v1207
  %v1264 = vpop.f32.mrf.mxu0
  %v1265 = vadd.f32 0.0, %v1264
  %1266 = vdwg.mxu0
  %1267 = vmatpush.msra.mxu0 0.0
  %1268 = vmatpush.msra.mxu0 0.0
  %1269 = vmatpush.msra.mxu0 0.0
  %1270 = vmatpush.msra.mxu0 0.0
  %1271 = vmatpush.msra.mxu0 0.0
  %1272 = vmatpush.msra.mxu0 0.0
  %1273 = vmatpush.msra.mxu0 0.0
  %1274 = vmatpush.msra.mxu0 0.0
  %1275 = vmatpush.msra.mxu0 0.0
  %1276 = vmatpush.msra.mxu0 0.0
  %1277 = vmatpush.msra.mxu0 0.0
  %1278 = vmatpush.msra.mxu0 0.0
  %1279 = vmatpush.msra.mxu0 0.0
  %1280 = vmatpush.msra.mxu0 0.0
  %1281 = vmatpush.msra.mxu0 0.0
  %1282 = vmatpush.msra.mxu0 %v1216
  %1283 = vmatmul.f32.gmra.mxu0 %v1205
  %v1284 = vpop.f32.mrf.mxu0
  %v1285 = vadd.f32 0.0, %v1284
  %1286 = vmatmul.f32.gmra.mxu0 %v1207
  %v1287 = vpop.f32.mrf.mxu0
  %v1288 = vadd.f32 0.0, %v1287
  %1289 = vdwg.mxu0
  %1290 = vmatpush.msra.mxu0 0.0
  %1291 = vmatpush.msra.mxu0 0.0
  %1292 = vmatpush.msra.mxu0 0.0
  %1293 = vmatpush.msra.mxu0 0.0
  %1294 = vmatpush.msra.mxu0 0.0
  %1295 = vmatpush.msra.mxu0 0.0
  %1296 = vmatpush.msra.mxu0 0.0
  %1297 = vmatpush.msra.mxu0 0.0
  %1298 = vmatpush.msra.mxu0 0.0
  %1299 = vmatpush.msra.mxu0 0.0
  %1300 = vmatpush.msra.mxu0 0.0
  %1301 = vmatpush.msra.mxu0 0.0
  %1302 = vmatpush.msra.mxu0 0.0
  %1303 = vmatpush.msra.mxu0 0.0
  %1304 = vmatpush.msra.mxu0 0.0
  %1305 = vmatpush.msra.mxu0 %v1219
  %1306 = vmatmul.f32.gmra.mxu0 %v1205
  %v1307 = vpop.f32.mrf.mxu0
  %v1308 = vadd.f32 0.0, %v1307
  %1309 = vmatmul.f32.gmra.mxu0 %v1207
  %v1310 = vpop.f32.mrf.mxu0
  %v1311 = vadd.f32 0.0, %v1310
  %1312 = vdwg.mxu0
  %v1313 = vadd.f32 %v1193, %v1239
  %v1314 = vadd.f32 %v1194, %v1262
  %v1315 = vadd.f32 %v1195, %v1285
  %v1316 = vadd.f32 %v1196, %v1308
  %v1317 = vadd.f32 %v1197, %v1242
  %v1318 = vadd.f32 %v1198, %v1265
  %v1319 = vadd.f32 %v1199, %v1288
  %v1320 = vadd.f32 %v1200, %v1311
  %1321 = vrot.lane.b32.xlu0 %v374, 120
  %v1322 = vpop.permute.xlu0 %1321
  %1323 = vrot.lane.b32.xlu0 %v375, 120
  %v1324 = vpop.permute.xlu0 %1323
  %v1325 = vsel %vm382, %v1322, 0
  %v1327 = vsel %vm382, %v1324, 0
  %v1330 = vsel %vm387, %v370, 0
  %v1333 = vsel %vm387, %v371, 0
  %v1336 = vsel %vm387, %v372, 0
  %v1339 = vsel %vm387, %v373, 0
  %1341 = vmatpush.msra.mxu0 0.0
  %1342 = vmatpush.msra.mxu0 0.0
  %1343 = vmatpush.msra.mxu0 0.0
  %1344 = vmatpush.msra.mxu0 0.0
  %1345 = vmatpush.msra.mxu0 0.0
  %1346 = vmatpush.msra.mxu0 0.0
  %1347 = vmatpush.msra.mxu0 0.0
  %1348 = vmatpush.msra.mxu0 0.0
  %1349 = vmatpush.msra.mxu0 0.0
  %1350 = vmatpush.msra.mxu0 0.0
  %1351 = vmatpush.msra.mxu0 0.0
  %1352 = vmatpush.msra.mxu0 0.0
  %1353 = vmatpush.msra.mxu0 0.0
  %1354 = vmatpush.msra.mxu0 0.0
  %1355 = vmatpush.msra.mxu0 0.0
  %1356 = vmatpush.msra.mxu0 %v1330
  %1357 = vmatmul.f32.gmra.mxu0 %v1325
  %v1358 = vpop.f32.mrf.mxu0
  %v1359 = vadd.f32 0.0, %v1358
  %1360 = vmatmul.f32.gmra.mxu0 %v1327
  %v1361 = vpop.f32.mrf.mxu0
  %v1362 = vadd.f32 0.0, %v1361
  %1363 = vdwg.mxu0
  %1364 = vmatpush.msra.mxu0 0.0
  %1365 = vmatpush.msra.mxu0 0.0
  %1366 = vmatpush.msra.mxu0 0.0
  %1367 = vmatpush.msra.mxu0 0.0
  %1368 = vmatpush.msra.mxu0 0.0
  %1369 = vmatpush.msra.mxu0 0.0
  %1370 = vmatpush.msra.mxu0 0.0
  %1371 = vmatpush.msra.mxu0 0.0
  %1372 = vmatpush.msra.mxu0 0.0
  %1373 = vmatpush.msra.mxu0 0.0
  %1374 = vmatpush.msra.mxu0 0.0
  %1375 = vmatpush.msra.mxu0 0.0
  %1376 = vmatpush.msra.mxu0 0.0
  %1377 = vmatpush.msra.mxu0 0.0
  %1378 = vmatpush.msra.mxu0 0.0
  %1379 = vmatpush.msra.mxu0 %v1333
  %1380 = vmatmul.f32.gmra.mxu0 %v1325
  %v1381 = vpop.f32.mrf.mxu0
  %v1382 = vadd.f32 0.0, %v1381
  %1383 = vmatmul.f32.gmra.mxu0 %v1327
  %v1384 = vpop.f32.mrf.mxu0
  %v1385 = vadd.f32 0.0, %v1384
  %1386 = vdwg.mxu0
  %1387 = vmatpush.msra.mxu0 0.0
  %1388 = vmatpush.msra.mxu0 0.0
  %1389 = vmatpush.msra.mxu0 0.0
  %1390 = vmatpush.msra.mxu0 0.0
  %1391 = vmatpush.msra.mxu0 0.0
  %1392 = vmatpush.msra.mxu0 0.0
  %1393 = vmatpush.msra.mxu0 0.0
  %1394 = vmatpush.msra.mxu0 0.0
  %1395 = vmatpush.msra.mxu0 0.0
  %1396 = vmatpush.msra.mxu0 0.0
  %1397 = vmatpush.msra.mxu0 0.0
  %1398 = vmatpush.msra.mxu0 0.0
  %1399 = vmatpush.msra.mxu0 0.0
  %1400 = vmatpush.msra.mxu0 0.0
  %1401 = vmatpush.msra.mxu0 0.0
  %1402 = vmatpush.msra.mxu0 %v1336
  %1403 = vmatmul.f32.gmra.mxu0 %v1325
  %v1404 = vpop.f32.mrf.mxu0
  %v1405 = vadd.f32 0.0, %v1404
  %1406 = vmatmul.f32.gmra.mxu0 %v1327
  %v1407 = vpop.f32.mrf.mxu0
  %v1408 = vadd.f32 0.0, %v1407
  %1409 = vdwg.mxu0
  %1410 = vmatpush.msra.mxu0 0.0
  %1411 = vmatpush.msra.mxu0 0.0
  %1412 = vmatpush.msra.mxu0 0.0
  %1413 = vmatpush.msra.mxu0 0.0
  %1414 = vmatpush.msra.mxu0 0.0
  %1415 = vmatpush.msra.mxu0 0.0
  %1416 = vmatpush.msra.mxu0 0.0
  %1417 = vmatpush.msra.mxu0 0.0
  %1418 = vmatpush.msra.mxu0 0.0
  %1419 = vmatpush.msra.mxu0 0.0
  %1420 = vmatpush.msra.mxu0 0.0
  %1421 = vmatpush.msra.mxu0 0.0
  %1422 = vmatpush.msra.mxu0 0.0
  %1423 = vmatpush.msra.mxu0 0.0
  %1424 = vmatpush.msra.mxu0 0.0
  %1425 = vmatpush.msra.mxu0 %v1339
  %1426 = vmatmul.f32.gmra.mxu0 %v1325
  %v1427 = vpop.f32.mrf.mxu0
  %v1428 = vadd.f32 0.0, %v1427
  %1429 = vmatmul.f32.gmra.mxu0 %v1327
  %v1430 = vpop.f32.mrf.mxu0
  %v1431 = vadd.f32 0.0, %v1430
  %1432 = vdwg.mxu0
  %v1433 = vadd.f32 %v1313, %v1359
  %v1434 = vadd.f32 %v1314, %v1382
  %v1435 = vadd.f32 %v1315, %v1405
  %v1436 = vadd.f32 %v1316, %v1428
  %v1437 = vadd.f32 %v1317, %v1362
  %v1438 = vadd.f32 %v1318, %v1385
  %v1439 = vadd.f32 %v1319, %v1408
  %v1440 = vadd.f32 %v1320, %v1431
  %v1441 = vld [vmem:[%s19] sm:$0xff]
  %v1442 = vld [vmem:[%s19 + $0x8] sm:$0xff]
  %1444 = vset.pattern.permute.xlu0 0
  %1445 = vperm.xlu0 %1444, %v1441
  %v1446 = vpop.permute.xlu0 %1445
  %1449 = vset.pattern.permute.xlu0 0
  %1450 = vperm.xlu0 %1449, %v1442
  %v1451 = vpop.permute.xlu0 %1450
  %v1453 = vadd.f32 %v1433, %v1446
  %v1454 = vadd.f32 %v1434, %v1446
  %v1455 = vadd.f32 %v1435, %v1446
  %v1456 = vadd.f32 %v1436, %v1446
  %v1457 = vadd.f32 %v1437, %v1451
  %v1458 = vadd.f32 %v1438, %v1451
  %v1459 = vadd.f32 %v1439, %v1451
  %v1460 = vadd.f32 %v1440, %v1451
  %v1461 = vmax.f32 %v1453, 0.0
  %v1462 = vmax.f32 %v1454, 0.0
  %v1463 = vmax.f32 %v1455, 0.0
  %v1464 = vmax.f32 %v1456, 0.0
  %v1465 = vmax.f32 %v1457, 0.0
  %v1466 = vmax.f32 %v1458, 0.0
  %v1467 = vmax.f32 %v1459, 0.0
  %v1468 = vmax.f32 %v1460, 0.0
  %1469 = vrot.lane.b32.xlu0 %v1461, 17
  %v1470 = vpop.permute.xlu0 %1469
  %1471 = vrot.lane.b32.xlu0 %v1465, 17
  %v1472 = vpop.permute.xlu0 %1471
  %1473 = vrot.lane.b32.xlu0 %v1462, 17
  %v1474 = vpop.permute.xlu0 %1473
  %1475 = vrot.lane.b32.xlu0 %v1466, 17
  %v1476 = vpop.permute.xlu0 %1475
  %1477 = vrot.lane.b32.xlu0 %v1463, 17
  %v1478 = vpop.permute.xlu0 %1477
  %1479 = vrot.lane.b32.xlu0 %v1467, 17
  %v1480 = vpop.permute.xlu0 %1479
  %1481 = vrot.lane.b32.xlu0 %v1464, 17
  %v1482 = vpop.permute.xlu0 %1481
  %1483 = vrot.lane.b32.xlu0 %v1468, 17
  %v1484 = vpop.permute.xlu0 %1483
  %v1485 = vsel %vm156, %v1478, %v1482
  %v1486 = vsel %vm156, %v1480, %v1484
  %v1487 = vsel %vm156, %v1474, %v1478
  %v1488 = vsel %vm156, %v1476, %v1480
  %v1489 = vsel %vm156, %v1470, %v1474
  %v1490 = vsel %vm156, %v1472, %v1476
  %v1491 = vsel %vm156, %v1482, %v1470
  %v1492 = vsel %vm156, %v1484, %v1472
  %v1493 = vmul.f32 %v1491, %v163
  %v1494 = vmul.f32 %v1489, %v164
  %v1495 = vmul.f32 %v1487, %v165
  %v1496 = vmul.f32 %v1485, %v166
  %v1497 = vmul.f32 %v1492, %v163
  %v1498 = vmul.f32 %v1490, %v164
  %v1499 = vmul.f32 %v1488, %v165
  %v1500 = vmul.f32 %v1486, %v166
  %1501 = vrot.lane.b32.xlu0 %v1461, 16
  %v1502 = vpop.permute.xlu0 %1501
  %1503 = vrot.lane.b32.xlu0 %v1465, 16
  %v1504 = vpop.permute.xlu0 %1503
  %1505 = vrot.lane.b32.xlu0 %v1462, 16
  %v1506 = vpop.permute.xlu0 %1505
  %1507 = vrot.lane.b32.xlu0 %v1466, 16
  %v1508 = vpop.permute.xlu0 %1507
  %1509 = vrot.lane.b32.xlu0 %v1463, 16
  %v1510 = vpop.permute.xlu0 %1509
  %1511 = vrot.lane.b32.xlu0 %v1467, 16
  %v1512 = vpop.permute.xlu0 %1511
  %1513 = vrot.lane.b32.xlu0 %v1464, 16
  %v1514 = vpop.permute.xlu0 %1513
  %1515 = vrot.lane.b32.xlu0 %v1468, 16
  %v1516 = vpop.permute.xlu0 %1515
  %v1517 = vsel %vm183, %v1510, %v1514
  %v1518 = vsel %vm183, %v1512, %v1516
  %v1519 = vsel %vm183, %v1506, %v1510
  %v1520 = vsel %vm183, %v1508, %v1512
  %v1521 = vsel %vm183, %v1502, %v1506
  %v1522 = vsel %vm183, %v1504, %v1508
  %v1523 = vsel %vm183, %v1514, %v1502
  %v1524 = vsel %vm183, %v1516, %v1504
  %v1525 = vmul.f32 %v1523, %v191
  %v1526 = vmul.f32 %v1521, %v192
  %v1527 = vmul.f32 %v1519, %v193
  %v1528 = vmul.f32 %v1517, %v194
  %v1529 = vmul.f32 %v1524, %v191
  %v1530 = vmul.f32 %v1522, %v192
  %v1531 = vmul.f32 %v1520, %v193
  %v1532 = vmul.f32 %v1518, %v194
  %1533 = vrot.lane.b32.xlu0 %v1461, 15
  %v1534 = vpop.permute.xlu0 %1533
  %1535 = vrot.lane.b32.xlu0 %v1465, 15
  %v1536 = vpop.permute.xlu0 %1535
  %1537 = vrot.lane.b32.xlu0 %v1462, 15
  %v1538 = vpop.permute.xlu0 %1537
  %1539 = vrot.lane.b32.xlu0 %v1466, 15
  %v1540 = vpop.permute.xlu0 %1539
  %1541 = vrot.lane.b32.xlu0 %v1463, 15
  %v1542 = vpop.permute.xlu0 %1541
  %1543 = vrot.lane.b32.xlu0 %v1467, 15
  %v1544 = vpop.permute.xlu0 %1543
  %1545 = vrot.lane.b32.xlu0 %v1464, 15
  %v1546 = vpop.permute.xlu0 %1545
  %1547 = vrot.lane.b32.xlu0 %v1468, 15
  %v1548 = vpop.permute.xlu0 %1547
  %v1549 = vsel %vm211, %v1542, %v1546
  %v1550 = vsel %vm211, %v1544, %v1548
  %v1551 = vsel %vm211, %v1538, %v1542
  %v1552 = vsel %vm211, %v1540, %v1544
  %v1553 = vsel %vm211, %v1534, %v1538
  %v1554 = vsel %vm211, %v1536, %v1540
  %v1555 = vsel %vm211, %v1546, %v1534
  %v1556 = vsel %vm211, %v1548, %v1536
  %v1557 = vmul.f32 %v1555, %v219
  %v1558 = vmul.f32 %v1553, %v220
  %v1559 = vmul.f32 %v1551, %v221
  %v1560 = vmul.f32 %v1549, %v222
  %v1561 = vmul.f32 %v1556, %v219
  %v1562 = vmul.f32 %v1554, %v220
  %v1563 = vmul.f32 %v1552, %v221
  %v1564 = vmul.f32 %v1550, %v222
  %1565 = vrot.lane.b32.xlu0 %v1461, 1
  %v1566 = vpop.permute.xlu0 %1565
  %1567 = vrot.lane.b32.xlu0 %v1465, 1
  %v1568 = vpop.permute.xlu0 %1567
  %1569 = vrot.lane.b32.xlu0 %v1462, 1
  %v1570 = vpop.permute.xlu0 %1569
  %1571 = vrot.lane.b32.xlu0 %v1466, 1
  %v1572 = vpop.permute.xlu0 %1571
  %1573 = vrot.lane.b32.xlu0 %v1463, 1
  %v1574 = vpop.permute.xlu0 %1573
  %1575 = vrot.lane.b32.xlu0 %v1467, 1
  %v1576 = vpop.permute.xlu0 %1575
  %1577 = vrot.lane.b32.xlu0 %v1464, 1
  %v1578 = vpop.permute.xlu0 %1577
  %1579 = vrot.lane.b32.xlu0 %v1468, 1
  %v1580 = vpop.permute.xlu0 %1579
  %v1581 = vsel %vm239, %v1574, %v1578
  %v1582 = vsel %vm239, %v1576, %v1580
  %v1583 = vsel %vm239, %v1570, %v1574
  %v1584 = vsel %vm239, %v1572, %v1576
  %v1585 = vsel %vm239, %v1566, %v1570
  %v1586 = vsel %vm239, %v1568, %v1572
  %v1587 = vsel %vm239, %v1578, %v1566
  %v1588 = vsel %vm239, %v1580, %v1568
  %v1589 = vmul.f32 %v1587, %v247
  %v1590 = vmul.f32 %v1585, %v248
  %v1591 = vmul.f32 %v1583, %v249
  %v1592 = vmul.f32 %v1581, %v250
  %v1593 = vmul.f32 %v1588, %v247
  %v1594 = vmul.f32 %v1586, %v248
  %v1595 = vmul.f32 %v1584, %v249
  %v1596 = vmul.f32 %v1582, %v250
  %v1598 = vperm.slane %v260, 0
  %v1599 = vperm.slane %v260, 1
  %v1600 = vperm.slane %v260, 2
  %v1601 = vperm.slane %v260, 3
  %v1606 = vmul.f32 %v1461, %v1598
  %v1607 = vmul.f32 %v1462, %v1599
  %v1608 = vmul.f32 %v1463, %v1600
  %v1609 = vmul.f32 %v1464, %v1601
  %v1610 = vmul.f32 %v1465, %v1598
  %v1611 = vmul.f32 %v1466, %v1599
  %v1612 = vmul.f32 %v1467, %v1600
  %v1613 = vmul.f32 %v1468, %v1601
  %1614 = vrot.lane.b32.xlu0 %v1461, 127
  %v1615 = vpop.permute.xlu0 %1614
  %1616 = vrot.lane.b32.xlu0 %v1465, 127
  %v1617 = vpop.permute.xlu0 %1616
  %1618 = vrot.lane.b32.xlu0 %v1462, 127
  %v1619 = vpop.permute.xlu0 %1618
  %1620 = vrot.lane.b32.xlu0 %v1466, 127
  %v1621 = vpop.permute.xlu0 %1620
  %1622 = vrot.lane.b32.xlu0 %v1463, 127
  %v1623 = vpop.permute.xlu0 %1622
  %1624 = vrot.lane.b32.xlu0 %v1467, 127
  %v1625 = vpop.permute.xlu0 %1624
  %1626 = vrot.lane.b32.xlu0 %v1464, 127
  %v1627 = vpop.permute.xlu0 %1626
  %1628 = vrot.lane.b32.xlu0 %v1468, 127
  %v1629 = vpop.permute.xlu0 %1628
  %v1630 = vsel %vm270, %v1623, %v1627
  %v1631 = vsel %vm270, %v1625, %v1629
  %v1632 = vsel %vm270, %v1619, %v1623
  %v1633 = vsel %vm270, %v1621, %v1625
  %v1634 = vsel %vm270, %v1615, %v1619
  %v1635 = vsel %vm270, %v1617, %v1621
  %v1636 = vsel %vm270, %v1627, %v1615
  %v1637 = vsel %vm270, %v1629, %v1617
  %v1638 = vmul.f32 %v1634, %v278
  %v1639 = vmul.f32 %v1632, %v279
  %v1640 = vmul.f32 %v1630, %v280
  %v1641 = vmul.f32 %v1636, %v281
  %v1642 = vmul.f32 %v1635, %v278
  %v1643 = vmul.f32 %v1633, %v279
  %v1644 = vmul.f32 %v1631, %v280
  %v1645 = vmul.f32 %v1637, %v281
  %1646 = vrot.lane.b32.xlu0 %v1461, 113
  %v1647 = vpop.permute.xlu0 %1646
  %1648 = vrot.lane.b32.xlu0 %v1465, 113
  %v1649 = vpop.permute.xlu0 %1648
  %1650 = vrot.lane.b32.xlu0 %v1462, 113
  %v1651 = vpop.permute.xlu0 %1650
  %1652 = vrot.lane.b32.xlu0 %v1466, 113
  %v1653 = vpop.permute.xlu0 %1652
  %1654 = vrot.lane.b32.xlu0 %v1463, 113
  %v1655 = vpop.permute.xlu0 %1654
  %1656 = vrot.lane.b32.xlu0 %v1467, 113
  %v1657 = vpop.permute.xlu0 %1656
  %1658 = vrot.lane.b32.xlu0 %v1464, 113
  %v1659 = vpop.permute.xlu0 %1658
  %1660 = vrot.lane.b32.xlu0 %v1468, 113
  %v1661 = vpop.permute.xlu0 %1660
  %v1662 = vsel %vm298, %v1655, %v1659
  %v1663 = vsel %vm298, %v1657, %v1661
  %v1664 = vsel %vm298, %v1651, %v1655
  %v1665 = vsel %vm298, %v1653, %v1657
  %v1666 = vsel %vm298, %v1647, %v1651
  %v1667 = vsel %vm298, %v1649, %v1653
  %v1668 = vsel %vm298, %v1659, %v1647
  %v1669 = vsel %vm298, %v1661, %v1649
  %v1670 = vmul.f32 %v1666, %v306
  %v1671 = vmul.f32 %v1664, %v307
  %v1672 = vmul.f32 %v1662, %v308
  %v1673 = vmul.f32 %v1668, %v309
  %v1674 = vmul.f32 %v1667, %v306
  %v1675 = vmul.f32 %v1665, %v307
  %v1676 = vmul.f32 %v1663, %v308
  %v1677 = vmul.f32 %v1669, %v309
  %1678 = vrot.lane.b32.xlu0 %v1461, 112
  %v1679 = vpop.permute.xlu0 %1678
  %1680 = vrot.lane.b32.xlu0 %v1465, 112
  %v1681 = vpop.permute.xlu0 %1680
  %1682 = vrot.lane.b32.xlu0 %v1462, 112
  %v1683 = vpop.permute.xlu0 %1682
  %1684 = vrot.lane.b32.xlu0 %v1466, 112
  %v1685 = vpop.permute.xlu0 %1684
  %1686 = vrot.lane.b32.xlu0 %v1463, 112
  %v1687 = vpop.permute.xlu0 %1686
  %1688 = vrot.lane.b32.xlu0 %v1467, 112
  %v1689 = vpop.permute.xlu0 %1688
  %1690 = vrot.lane.b32.xlu0 %v1464, 112
  %v1691 = vpop.permute.xlu0 %1690
  %1692 = vrot.lane.b32.xlu0 %v1468, 112
  %v1693 = vpop.permute.xlu0 %1692
  %v1694 = vsel %vm326, %v1687, %v1691
  %v1695 = vsel %vm326, %v1689, %v1693
  %v1696 = vsel %vm326, %v1683, %v1687
  %v1697 = vsel %vm326, %v1685, %v1689
  %v1698 = vsel %vm326, %v1679, %v1683
  %v1699 = vsel %vm326, %v1681, %v1685
  %v1700 = vsel %vm326, %v1691, %v1679
  %v1701 = vsel %vm326, %v1693, %v1681
  %v1702 = vmul.f32 %v1698, %v334
  %v1703 = vmul.f32 %v1696, %v335
  %v1704 = vmul.f32 %v1694, %v336
  %v1705 = vmul.f32 %v1700, %v337
  %v1706 = vmul.f32 %v1699, %v334
  %v1707 = vmul.f32 %v1697, %v335
  %v1708 = vmul.f32 %v1695, %v336
  %v1709 = vmul.f32 %v1701, %v337
  %1710 = vrot.lane.b32.xlu0 %v1461, 111
  %v1711 = vpop.permute.xlu0 %1710
  %1712 = vrot.lane.b32.xlu0 %v1465, 111
  %v1713 = vpop.permute.xlu0 %1712
  %1714 = vrot.lane.b32.xlu0 %v1462, 111
  %v1715 = vpop.permute.xlu0 %1714
  %1716 = vrot.lane.b32.xlu0 %v1466, 111
  %v1717 = vpop.permute.xlu0 %1716
  %1718 = vrot.lane.b32.xlu0 %v1463, 111
  %v1719 = vpop.permute.xlu0 %1718
  %1720 = vrot.lane.b32.xlu0 %v1467, 111
  %v1721 = vpop.permute.xlu0 %1720
  %1722 = vrot.lane.b32.xlu0 %v1464, 111
  %v1723 = vpop.permute.xlu0 %1722
  %1724 = vrot.lane.b32.xlu0 %v1468, 111
  %v1725 = vpop.permute.xlu0 %1724
  %v1726 = vsel %vm354, %v1719, %v1723
  %v1727 = vsel %vm354, %v1721, %v1725
  %v1728 = vsel %vm354, %v1715, %v1719
  %v1729 = vsel %vm354, %v1717, %v1721
  %v1730 = vsel %vm354, %v1711, %v1715
  %v1731 = vsel %vm354, %v1713, %v1717
  %v1732 = vsel %vm354, %v1723, %v1711
  %v1733 = vsel %vm354, %v1725, %v1713
  %v1734 = vmul.f32 %v1730, %v362
  %v1735 = vmul.f32 %v1728, %v363
  %v1736 = vmul.f32 %v1726, %v364
  %v1737 = vmul.f32 %v1732, %v365
  %v1738 = vmul.f32 %v1731, %v362
  %v1739 = vmul.f32 %v1729, %v363
  %v1740 = vmul.f32 %v1727, %v364
  %v1741 = vmul.f32 %v1733, %v365
  %v1742 = vld [vmem:[%s21] sm:$0xff]
  %v1743 = vld [vmem:[%s21 + $0x8] sm:$0xff]
  %v1744 = vld [vmem:[%s21 + $0x10] sm:$0xff]
  %v1745 = vld [vmem:[%s21 + $0x18] sm:$0xff]
  %v1746 = vld [vmem:[%s23] sm:$0xff]
  %v1747 = vld [vmem:[%s23 + $0x8] sm:$0xff]
  %1749 = vset.pattern.permute.xlu0 0
  %1750 = vperm.xlu0 %1749, %v1746
  %v1751 = vpop.permute.xlu0 %1750
  %1754 = vset.pattern.permute.xlu0 0
  %1755 = vperm.xlu0 %1754, %v1747
  %v1756 = vpop.permute.xlu0 %1755
  %vm1758 = vcmask 130048
  %v1760 = vsel %vm1758, %v1743, 0
  %v1763 = vsel %vm1758, %v1745, 0
  %1765 = vmatpush.msra.mxu0 %v1706
  %1766 = vmatpush.msra.mxu0 %v1702
  %1767 = vmatpush.msra.mxu0 %v1674
  %1768 = vmatpush.msra.mxu0 %v1670
  %1769 = vmatpush.msra.mxu0 %v1642
  %1770 = vmatpush.msra.mxu0 %v1638
  %1771 = vmatpush.msra.mxu0 %v1610
  %1772 = vmatpush.msra.mxu0 %v1606
  %1773 = vmatpush.msra.mxu0 %v1593
  %1774 = vmatpush.msra.mxu0 %v1589
  %1775 = vmatpush.msra.mxu0 %v1561
  %1776 = vmatpush.msra.mxu0 %v1557
  %1777 = vmatpush.msra.mxu0 %v1529
  %1778 = vmatpush.msra.mxu0 %v1525
  %1779 = vmatpush.msra.mxu0 %v1497
  %1780 = vmatpush.msra.mxu0 %v1493
  %1781 = vmatmul.f32.gmra.mxu0 %v1742
  %v1782 = vpop.f32.mrf.mxu0
  %v1783 = vadd.f32 %v1751, %v1782
  %1784 = vmatmul.f32.gmra.mxu0 %v1744
  %v1785 = vpop.f32.mrf.mxu0
  %v1786 = vadd.f32 %v1756, %v1785
  %1787 = vdwg.mxu0
  %1788 = vmatpush.msra.mxu0 0.0
  %1789 = vmatpush.msra.mxu0 0.0
  %1790 = vmatpush.msra.mxu0 0.0
  %1791 = vmatpush.msra.mxu0 0.0
  %1792 = vmatpush.msra.mxu0 0.0
  %1793 = vmatpush.msra.mxu0 0.0
  %1794 = vmatpush.msra.mxu0 0.0
  %1795 = vmatpush.msra.mxu0 0.0
  %1796 = vmatpush.msra.mxu0 0.0
  %1797 = vmatpush.msra.mxu0 0.0
  %1798 = vmatpush.msra.mxu0 0.0
  %1799 = vmatpush.msra.mxu0 0.0
  %1800 = vmatpush.msra.mxu0 0.0
  %1801 = vmatpush.msra.mxu0 0.0
  %1802 = vmatpush.msra.mxu0 %v1738
  %1803 = vmatpush.msra.mxu0 %v1734
  %1804 = vmatmul.f32.gmra.mxu0 %v1760
  %v1805 = vpop.f32.mrf.mxu0
  %v1806 = vadd.f32 %v1783, %v1805
  %1807 = vmatmul.f32.gmra.mxu0 %v1763
  %v1808 = vpop.f32.mrf.mxu0
  %v1809 = vadd.f32 %v1786, %v1808
  %1810 = vdwg.mxu0
  %1811 = vmatpush.msra.mxu0 %v1707
  %1812 = vmatpush.msra.mxu0 %v1703
  %1813 = vmatpush.msra.mxu0 %v1675
  %1814 = vmatpush.msra.mxu0 %v1671
  %1815 = vmatpush.msra.mxu0 %v1643
  %1816 = vmatpush.msra.mxu0 %v1639
  %1817 = vmatpush.msra.mxu0 %v1611
  %1818 = vmatpush.msra.mxu0 %v1607
  %1819 = vmatpush.msra.mxu0 %v1594
  %1820 = vmatpush.msra.mxu0 %v1590
  %1821 = vmatpush.msra.mxu0 %v1562
  %1822 = vmatpush.msra.mxu0 %v1558
  %1823 = vmatpush.msra.mxu0 %v1530
  %1824 = vmatpush.msra.mxu0 %v1526
  %1825 = vmatpush.msra.mxu0 %v1498
  %1826 = vmatpush.msra.mxu0 %v1494
  %1827 = vmatmul.f32.gmra.mxu0 %v1742
  %v1828 = vpop.f32.mrf.mxu0
  %v1829 = vadd.f32 %v1751, %v1828
  %1830 = vmatmul.f32.gmra.mxu0 %v1744
  %v1831 = vpop.f32.mrf.mxu0
  %v1832 = vadd.f32 %v1756, %v1831
  %1833 = vdwg.mxu0
  %1834 = vmatpush.msra.mxu0 0.0
  %1835 = vmatpush.msra.mxu0 0.0
  %1836 = vmatpush.msra.mxu0 0.0
  %1837 = vmatpush.msra.mxu0 0.0
  %1838 = vmatpush.msra.mxu0 0.0
  %1839 = vmatpush.msra.mxu0 0.0
  %1840 = vmatpush.msra.mxu0 0.0
  %1841 = vmatpush.msra.mxu0 0.0
  %1842 = vmatpush.msra.mxu0 0.0
  %1843 = vmatpush.msra.mxu0 0.0
  %1844 = vmatpush.msra.mxu0 0.0
  %1845 = vmatpush.msra.mxu0 0.0
  %1846 = vmatpush.msra.mxu0 0.0
  %1847 = vmatpush.msra.mxu0 0.0
  %1848 = vmatpush.msra.mxu0 %v1739
  %1849 = vmatpush.msra.mxu0 %v1735
  %1850 = vmatmul.f32.gmra.mxu0 %v1760
  %v1851 = vpop.f32.mrf.mxu0
  %v1852 = vadd.f32 %v1829, %v1851
  %1853 = vmatmul.f32.gmra.mxu0 %v1763
  %v1854 = vpop.f32.mrf.mxu0
  %v1855 = vadd.f32 %v1832, %v1854
  %1856 = vdwg.mxu0
  %1857 = vmatpush.msra.mxu0 %v1708
  %1858 = vmatpush.msra.mxu0 %v1704
  %1859 = vmatpush.msra.mxu0 %v1676
  %1860 = vmatpush.msra.mxu0 %v1672
  %1861 = vmatpush.msra.mxu0 %v1644
  %1862 = vmatpush.msra.mxu0 %v1640
  %1863 = vmatpush.msra.mxu0 %v1612
  %1864 = vmatpush.msra.mxu0 %v1608
  %1865 = vmatpush.msra.mxu0 %v1595
  %1866 = vmatpush.msra.mxu0 %v1591
  %1867 = vmatpush.msra.mxu0 %v1563
  %1868 = vmatpush.msra.mxu0 %v1559
  %1869 = vmatpush.msra.mxu0 %v1531
  %1870 = vmatpush.msra.mxu0 %v1527
  %1871 = vmatpush.msra.mxu0 %v1499
  %1872 = vmatpush.msra.mxu0 %v1495
  %1873 = vmatmul.f32.gmra.mxu0 %v1742
  %v1874 = vpop.f32.mrf.mxu0
  %v1875 = vadd.f32 %v1751, %v1874
  %1876 = vmatmul.f32.gmra.mxu0 %v1744
  %v1877 = vpop.f32.mrf.mxu0
  %v1878 = vadd.f32 %v1756, %v1877
  %1879 = vdwg.mxu0
  %1880 = vmatpush.msra.mxu0 0.0
  %1881 = vmatpush.msra.mxu0 0.0
  %1882 = vmatpush.msra.mxu0 0.0
  %1883 = vmatpush.msra.mxu0 0.0
  %1884 = vmatpush.msra.mxu0 0.0
  %1885 = vmatpush.msra.mxu0 0.0
  %1886 = vmatpush.msra.mxu0 0.0
  %1887 = vmatpush.msra.mxu0 0.0
  %1888 = vmatpush.msra.mxu0 0.0
  %1889 = vmatpush.msra.mxu0 0.0
  %1890 = vmatpush.msra.mxu0 0.0
  %1891 = vmatpush.msra.mxu0 0.0
  %1892 = vmatpush.msra.mxu0 0.0
  %1893 = vmatpush.msra.mxu0 0.0
  %1894 = vmatpush.msra.mxu0 %v1740
  %1895 = vmatpush.msra.mxu0 %v1736
  %1896 = vmatmul.f32.gmra.mxu0 %v1760
  %v1897 = vpop.f32.mrf.mxu0
  %v1898 = vadd.f32 %v1875, %v1897
  %1899 = vmatmul.f32.gmra.mxu0 %v1763
  %v1900 = vpop.f32.mrf.mxu0
  %v1901 = vadd.f32 %v1878, %v1900
  %1902 = vdwg.mxu0
  %1903 = vmatpush.msra.mxu0 %v1709
  %1904 = vmatpush.msra.mxu0 %v1705
  %1905 = vmatpush.msra.mxu0 %v1677
  %1906 = vmatpush.msra.mxu0 %v1673
  %1907 = vmatpush.msra.mxu0 %v1645
  %1908 = vmatpush.msra.mxu0 %v1641
  %1909 = vmatpush.msra.mxu0 %v1613
  %1910 = vmatpush.msra.mxu0 %v1609
  %1911 = vmatpush.msra.mxu0 %v1596
  %1912 = vmatpush.msra.mxu0 %v1592
  %1913 = vmatpush.msra.mxu0 %v1564
  %1914 = vmatpush.msra.mxu0 %v1560
  %1915 = vmatpush.msra.mxu0 %v1532
  %1916 = vmatpush.msra.mxu0 %v1528
  %1917 = vmatpush.msra.mxu0 %v1500
  %1918 = vmatpush.msra.mxu0 %v1496
  %1919 = vmatmul.f32.gmra.mxu0 %v1742
  %v1920 = vpop.f32.mrf.mxu0
  %v1921 = vadd.f32 %v1751, %v1920
  %1922 = vmatmul.f32.gmra.mxu0 %v1744
  %v1923 = vpop.f32.mrf.mxu0
  %v1924 = vadd.f32 %v1756, %v1923
  %1925 = vdwg.mxu0
  %1926 = vmatpush.msra.mxu0 0.0
  %1927 = vmatpush.msra.mxu0 0.0
  %1928 = vmatpush.msra.mxu0 0.0
  %1929 = vmatpush.msra.mxu0 0.0
  %1930 = vmatpush.msra.mxu0 0.0
  %1931 = vmatpush.msra.mxu0 0.0
  %1932 = vmatpush.msra.mxu0 0.0
  %1933 = vmatpush.msra.mxu0 0.0
  %1934 = vmatpush.msra.mxu0 0.0
  %1935 = vmatpush.msra.mxu0 0.0
  %1936 = vmatpush.msra.mxu0 0.0
  %1937 = vmatpush.msra.mxu0 0.0
  %1938 = vmatpush.msra.mxu0 0.0
  %1939 = vmatpush.msra.mxu0 0.0
  %1940 = vmatpush.msra.mxu0 %v1741
  %1941 = vmatpush.msra.mxu0 %v1737
  %1942 = vmatmul.f32.gmra.mxu0 %v1760
  %v1943 = vpop.f32.mrf.mxu0
  %v1944 = vadd.f32 %v1921, %v1943
  %1945 = vmatmul.f32.gmra.mxu0 %v1763
  %v1946 = vpop.f32.mrf.mxu0
  %v1947 = vadd.f32 %v1924, %v1946
  %1948 = vdwg.mxu0
  %v1949 = vld [vmem:[%s25] sm:$0xff]
  %v1950 = vld [vmem:[%s25 + $0x8] sm:$0xff]
  %1952 = vset.pattern.permute.xlu0 0
  %1953 = vperm.xlu0 %1952, %v1949
  %v1954 = vpop.permute.xlu0 %1953
  %1957 = vset.pattern.permute.xlu0 0
  %1958 = vperm.xlu0 %1957, %v1950
  %v1959 = vpop.permute.xlu0 %1958
  %v1961 = vmul.f32 %v1806, %v1954
  %v1962 = vmul.f32 %v1852, %v1954
  %v1963 = vmul.f32 %v1898, %v1954
  %v1964 = vmul.f32 %v1944, %v1954
  %v1965 = vmul.f32 %v1809, %v1959
  %v1966 = vmul.f32 %v1855, %v1959
  %v1967 = vmul.f32 %v1901, %v1959
  %v1968 = vmul.f32 %v1947, %v1959
  %v1969 = vld [vmem:[%s27] sm:$0xff]
  %v1970 = vld [vmem:[%s27 + $0x8] sm:$0xff]
  %1972 = vset.pattern.permute.xlu0 0
  %1973 = vperm.xlu0 %1972, %v1969
  %v1974 = vpop.permute.xlu0 %1973
  %1977 = vset.pattern.permute.xlu0 0
  %1978 = vperm.xlu0 %1977, %v1970
  %v1979 = vpop.permute.xlu0 %1978
  %v1981 = vadd.f32 %v1961, %v1974
  %v1982 = vadd.f32 %v1962, %v1974
  %v1983 = vadd.f32 %v1963, %v1974
  %v1984 = vadd.f32 %v1964, %v1974
  %v1985 = vadd.f32 %v1965, %v1979
  %v1986 = vadd.f32 %v1966, %v1979
  %v1987 = vadd.f32 %v1967, %v1979
  %v1988 = vadd.f32 %v1968, %v1979
  %v1989 = vadd.f32 %v1453, %v1981
  %v1990 = vadd.f32 %v1454, %v1982
  %v1991 = vadd.f32 %v1455, %v1983
  %v1992 = vadd.f32 %v1456, %v1984
  %v1993 = vadd.f32 %v1457, %v1985
  %v1994 = vadd.f32 %v1458, %v1986
  %v1995 = vadd.f32 %v1459, %v1987
  %v1996 = vadd.f32 %v1460, %v1988
  %1997 = vrot.lane.b32.xlu0 %v1989, 17
  %v1998 = vpop.permute.xlu0 %1997
  %1999 = vrot.lane.b32.xlu0 %v1993, 17
  %v2000 = vpop.permute.xlu0 %1999
  %2001 = vrot.lane.b32.xlu0 %v1990, 17
  %v2002 = vpop.permute.xlu0 %2001
  %2003 = vrot.lane.b32.xlu0 %v1994, 17
  %v2004 = vpop.permute.xlu0 %2003
  %2005 = vrot.lane.b32.xlu0 %v1991, 17
  %v2006 = vpop.permute.xlu0 %2005
  %2007 = vrot.lane.b32.xlu0 %v1995, 17
  %v2008 = vpop.permute.xlu0 %2007
  %2009 = vrot.lane.b32.xlu0 %v1992, 17
  %v2010 = vpop.permute.xlu0 %2009
  %2011 = vrot.lane.b32.xlu0 %v1996, 17
  %v2012 = vpop.permute.xlu0 %2011
  %v2013 = vsel %vm156, %v2006, %v2010
  %v2014 = vsel %vm156, %v2008, %v2012
  %v2015 = vsel %vm156, %v2002, %v2006
  %v2016 = vsel %vm156, %v2004, %v2008
  %v2017 = vsel %vm156, %v1998, %v2002
  %v2018 = vsel %vm156, %v2000, %v2004
  %v2019 = vsel %vm156, %v2010, %v1998
  %v2020 = vsel %vm156, %v2012, %v2000
  %v2021 = vmul.f32 %v2019, %v163
  %v2022 = vmul.f32 %v2017, %v164
  %v2023 = vmul.f32 %v2015, %v165
  %v2024 = vmul.f32 %v2013, %v166
  %v2025 = vmul.f32 %v2020, %v163
  %v2026 = vmul.f32 %v2018, %v164
  %v2027 = vmul.f32 %v2016, %v165
  %v2028 = vmul.f32 %v2014, %v166
  %2029 = vrot.lane.b32.xlu0 %v1989, 16
  %v2030 = vpop.permute.xlu0 %2029
  %2031 = vrot.lane.b32.xlu0 %v1993, 16
  %v2032 = vpop.permute.xlu0 %2031
  %2033 = vrot.lane.b32.xlu0 %v1990, 16
  %v2034 = vpop.permute.xlu0 %2033
  %2035 = vrot.lane.b32.xlu0 %v1994, 16
  %v2036 = vpop.permute.xlu0 %2035
  %2037 = vrot.lane.b32.xlu0 %v1991, 16
  %v2038 = vpop.permute.xlu0 %2037
  %2039 = vrot.lane.b32.xlu0 %v1995, 16
  %v2040 = vpop.permute.xlu0 %2039
  %2041 = vrot.lane.b32.xlu0 %v1992, 16
  %v2042 = vpop.permute.xlu0 %2041
  %2043 = vrot.lane.b32.xlu0 %v1996, 16
  %v2044 = vpop.permute.xlu0 %2043
  %v2045 = vsel %vm183, %v2038, %v2042
  %v2046 = vsel %vm183, %v2040, %v2044
  %v2047 = vsel %vm183, %v2034, %v2038
  %v2048 = vsel %vm183, %v2036, %v2040
  %v2049 = vsel %vm183, %v2030, %v2034
  %v2050 = vsel %vm183, %v2032, %v2036
  %v2051 = vsel %vm183, %v2042, %v2030
  %v2052 = vsel %vm183, %v2044, %v2032
  %v2053 = vmul.f32 %v2051, %v191
  %v2054 = vmul.f32 %v2049, %v192
  %v2055 = vmul.f32 %v2047, %v193
  %v2056 = vmul.f32 %v2045, %v194
  %v2057 = vmul.f32 %v2052, %v191
  %v2058 = vmul.f32 %v2050, %v192
  %v2059 = vmul.f32 %v2048, %v193
  %v2060 = vmul.f32 %v2046, %v194
  %2061 = vrot.lane.b32.xlu0 %v1989, 15
  %v2062 = vpop.permute.xlu0 %2061
  %2063 = vrot.lane.b32.xlu0 %v1993, 15
  %v2064 = vpop.permute.xlu0 %2063
  %2065 = vrot.lane.b32.xlu0 %v1990, 15
  %v2066 = vpop.permute.xlu0 %2065
  %2067 = vrot.lane.b32.xlu0 %v1994, 15
  %v2068 = vpop.permute.xlu0 %2067
  %2069 = vrot.lane.b32.xlu0 %v1991, 15
  %v2070 = vpop.permute.xlu0 %2069
  %2071 = vrot.lane.b32.xlu0 %v1995, 15
  %v2072 = vpop.permute.xlu0 %2071
  %2073 = vrot.lane.b32.xlu0 %v1992, 15
  %v2074 = vpop.permute.xlu0 %2073
  %2075 = vrot.lane.b32.xlu0 %v1996, 15
  %v2076 = vpop.permute.xlu0 %2075
  %v2077 = vsel %vm211, %v2070, %v2074
  %v2078 = vsel %vm211, %v2072, %v2076
  %v2079 = vsel %vm211, %v2066, %v2070
  %v2080 = vsel %vm211, %v2068, %v2072
  %v2081 = vsel %vm211, %v2062, %v2066
  %v2082 = vsel %vm211, %v2064, %v2068
  %v2083 = vsel %vm211, %v2074, %v2062
  %v2084 = vsel %vm211, %v2076, %v2064
  %v2085 = vmul.f32 %v2083, %v219
  %v2086 = vmul.f32 %v2081, %v220
  %v2087 = vmul.f32 %v2079, %v221
  %v2088 = vmul.f32 %v2077, %v222
  %v2089 = vmul.f32 %v2084, %v219
  %v2090 = vmul.f32 %v2082, %v220
  %v2091 = vmul.f32 %v2080, %v221
  %v2092 = vmul.f32 %v2078, %v222
  %2093 = vrot.lane.b32.xlu0 %v1989, 1
  %v2094 = vpop.permute.xlu0 %2093
  %2095 = vrot.lane.b32.xlu0 %v1993, 1
  %v2096 = vpop.permute.xlu0 %2095
  %2097 = vrot.lane.b32.xlu0 %v1990, 1
  %v2098 = vpop.permute.xlu0 %2097
  %2099 = vrot.lane.b32.xlu0 %v1994, 1
  %v2100 = vpop.permute.xlu0 %2099
  %2101 = vrot.lane.b32.xlu0 %v1991, 1
  %v2102 = vpop.permute.xlu0 %2101
  %2103 = vrot.lane.b32.xlu0 %v1995, 1
  %v2104 = vpop.permute.xlu0 %2103
  %2105 = vrot.lane.b32.xlu0 %v1992, 1
  %v2106 = vpop.permute.xlu0 %2105
  %2107 = vrot.lane.b32.xlu0 %v1996, 1
  %v2108 = vpop.permute.xlu0 %2107
  %v2109 = vsel %vm239, %v2102, %v2106
  %v2110 = vsel %vm239, %v2104, %v2108
  %v2111 = vsel %vm239, %v2098, %v2102
  %v2112 = vsel %vm239, %v2100, %v2104
  %v2113 = vsel %vm239, %v2094, %v2098
  %v2114 = vsel %vm239, %v2096, %v2100
  %v2115 = vsel %vm239, %v2106, %v2094
  %v2116 = vsel %vm239, %v2108, %v2096
  %v2117 = vmul.f32 %v2115, %v247
  %v2118 = vmul.f32 %v2113, %v248
  %v2119 = vmul.f32 %v2111, %v249
  %v2120 = vmul.f32 %v2109, %v250
  %v2121 = vmul.f32 %v2116, %v247
  %v2122 = vmul.f32 %v2114, %v248
  %v2123 = vmul.f32 %v2112, %v249
  %v2124 = vmul.f32 %v2110, %v250
  %v2125 = vmul.f32 %v1989, %v1598
  %v2126 = vmul.f32 %v1990, %v1599
  %v2127 = vmul.f32 %v1991, %v1600
  %v2128 = vmul.f32 %v1992, %v1601
  %v2129 = vmul.f32 %v1993, %v1598
  %v2130 = vmul.f32 %v1994, %v1599
  %v2131 = vmul.f32 %v1995, %v1600
  %v2132 = vmul.f32 %v1996, %v1601
  %2133 = vrot.lane.b32.xlu0 %v1989, 127
  %v2134 = vpop.permute.xlu0 %2133
  %2135 = vrot.lane.b32.xlu0 %v1993, 127
  %v2136 = vpop.permute.xlu0 %2135
  %2137 = vrot.lane.b32.xlu0 %v1990, 127
  %v2138 = vpop.permute.xlu0 %2137
  %2139 = vrot.lane.b32.xlu0 %v1994, 127
  %v2140 = vpop.permute.xlu0 %2139
  %2141 = vrot.lane.b32.xlu0 %v1991, 127
  %v2142 = vpop.permute.xlu0 %2141
  %2143 = vrot.lane.b32.xlu0 %v1995, 127
  %v2144 = vpop.permute.xlu0 %2143
  %2145 = vrot.lane.b32.xlu0 %v1992, 127
  %v2146 = vpop.permute.xlu0 %2145
  %2147 = vrot.lane.b32.xlu0 %v1996, 127
  %v2148 = vpop.permute.xlu0 %2147
  %v2149 = vsel %vm270, %v2142, %v2146
  %v2150 = vsel %vm270, %v2144, %v2148
  %v2151 = vsel %vm270, %v2138, %v2142
  %v2152 = vsel %vm270, %v2140, %v2144
  %v2153 = vsel %vm270, %v2134, %v2138
  %v2154 = vsel %vm270, %v2136, %v2140
  %v2155 = vsel %vm270, %v2146, %v2134
  %v2156 = vsel %vm270, %v2148, %v2136
  %v2157 = vmul.f32 %v2153, %v278
  %v2158 = vmul.f32 %v2151, %v279
  %v2159 = vmul.f32 %v2149, %v280
  %v2160 = vmul.f32 %v2155, %v281
  %v2161 = vmul.f32 %v2154, %v278
  %v2162 = vmul.f32 %v2152, %v279
  %v2163 = vmul.f32 %v2150, %v280
  %v2164 = vmul.f32 %v2156, %v281
  %2165 = vrot.lane.b32.xlu0 %v1989, 113
  %v2166 = vpop.permute.xlu0 %2165
  %2167 = vrot.lane.b32.xlu0 %v1993, 113
  %v2168 = vpop.permute.xlu0 %2167
  %2169 = vrot.lane.b32.xlu0 %v1990, 113
  %v2170 = vpop.permute.xlu0 %2169
  %2171 = vrot.lane.b32.xlu0 %v1994, 113
  %v2172 = vpop.permute.xlu0 %2171
  %2173 = vrot.lane.b32.xlu0 %v1991, 113
  %v2174 = vpop.permute.xlu0 %2173
  %2175 = vrot.lane.b32.xlu0 %v1995, 113
  %v2176 = vpop.permute.xlu0 %2175
  %2177 = vrot.lane.b32.xlu0 %v1992, 113
  %v2178 = vpop.permute.xlu0 %2177
  %2179 = vrot.lane.b32.xlu0 %v1996, 113
  %v2180 = vpop.permute.xlu0 %2179
  %v2181 = vsel %vm298, %v2174, %v2178
  %v2182 = vsel %vm298, %v2176, %v2180
  %v2183 = vsel %vm298, %v2170, %v2174
  %v2184 = vsel %vm298, %v2172, %v2176
  %v2185 = vsel %vm298, %v2166, %v2170
  %v2186 = vsel %vm298, %v2168, %v2172
  %v2187 = vsel %vm298, %v2178, %v2166
  %v2188 = vsel %vm298, %v2180, %v2168
  %v2189 = vmul.f32 %v2185, %v306
  %v2190 = vmul.f32 %v2183, %v307
  %v2191 = vmul.f32 %v2181, %v308
  %v2192 = vmul.f32 %v2187, %v309
  %v2193 = vmul.f32 %v2186, %v306
  %v2194 = vmul.f32 %v2184, %v307
  %v2195 = vmul.f32 %v2182, %v308
  %v2196 = vmul.f32 %v2188, %v309
  %2197 = vrot.lane.b32.xlu0 %v1989, 112
  %v2198 = vpop.permute.xlu0 %2197
  %2199 = vrot.lane.b32.xlu0 %v1993, 112
  %v2200 = vpop.permute.xlu0 %2199
  %2201 = vrot.lane.b32.xlu0 %v1990, 112
  %v2202 = vpop.permute.xlu0 %2201
  %2203 = vrot.lane.b32.xlu0 %v1994, 112
  %v2204 = vpop.permute.xlu0 %2203
  %2205 = vrot.lane.b32.xlu0 %v1991, 112
  %v2206 = vpop.permute.xlu0 %2205
  %2207 = vrot.lane.b32.xlu0 %v1995, 112
  %v2208 = vpop.permute.xlu0 %2207
  %2209 = vrot.lane.b32.xlu0 %v1992, 112
  %v2210 = vpop.permute.xlu0 %2209
  %2211 = vrot.lane.b32.xlu0 %v1996, 112
  %v2212 = vpop.permute.xlu0 %2211
  %v2213 = vsel %vm326, %v2206, %v2210
  %v2214 = vsel %vm326, %v2208, %v2212
  %v2215 = vsel %vm326, %v2202, %v2206
  %v2216 = vsel %vm326, %v2204, %v2208
  %v2217 = vsel %vm326, %v2198, %v2202
  %v2218 = vsel %vm326, %v2200, %v2204
  %v2219 = vsel %vm326, %v2210, %v2198
  %v2220 = vsel %vm326, %v2212, %v2200
  %v2221 = vmul.f32 %v2217, %v334
  %v2222 = vmul.f32 %v2215, %v335
  %v2223 = vmul.f32 %v2213, %v336
  %v2224 = vmul.f32 %v2219, %v337
  %v2225 = vmul.f32 %v2218, %v334
  %v2226 = vmul.f32 %v2216, %v335
  %v2227 = vmul.f32 %v2214, %v336
  %v2228 = vmul.f32 %v2220, %v337
  %2229 = vrot.lane.b32.xlu0 %v1989, 111
  %v2230 = vpop.permute.xlu0 %2229
  %2231 = vrot.lane.b32.xlu0 %v1993, 111
  %v2232 = vpop.permute.xlu0 %2231
  %2233 = vrot.lane.b32.xlu0 %v1990, 111
  %v2234 = vpop.permute.xlu0 %2233
  %2235 = vrot.lane.b32.xlu0 %v1994, 111
  %v2236 = vpop.permute.xlu0 %2235
  %2237 = vrot.lane.b32.xlu0 %v1991, 111
  %v2238 = vpop.permute.xlu0 %2237
  %2239 = vrot.lane.b32.xlu0 %v1995, 111
  %v2240 = vpop.permute.xlu0 %2239
  %2241 = vrot.lane.b32.xlu0 %v1992, 111
  %v2242 = vpop.permute.xlu0 %2241
  %2243 = vrot.lane.b32.xlu0 %v1996, 111
  %v2244 = vpop.permute.xlu0 %2243
  %v2245 = vsel %vm354, %v2238, %v2242
  %v2246 = vsel %vm354, %v2240, %v2244
  %v2247 = vsel %vm354, %v2234, %v2238
  %v2248 = vsel %vm354, %v2236, %v2240
  %v2249 = vsel %vm354, %v2230, %v2234
  %v2250 = vsel %vm354, %v2232, %v2236
  %v2251 = vsel %vm354, %v2242, %v2230
  %v2252 = vsel %vm354, %v2244, %v2232
  %v2253 = vmul.f32 %v2249, %v362
  %v2254 = vmul.f32 %v2247, %v363
  %v2255 = vmul.f32 %v2245, %v364
  %v2256 = vmul.f32 %v2251, %v365
  %v2257 = vmul.f32 %v2250, %v362
  %v2258 = vmul.f32 %v2248, %v363
  %v2259 = vmul.f32 %v2246, %v364
  %v2260 = vmul.f32 %v2252, %v365
  %v2261 = vld [vmem:[%s29] sm:$0xff]
  %v2262 = vld [vmem:[%s29 + $0x8] sm:$0xff]
  %v2263 = vld [vmem:[%s29 + $0x10] sm:$0xff]
  %v2264 = vld [vmem:[%s29 + $0x18] sm:$0xff]
  %v2265 = vld [vmem:[%s29 + $0x20] sm:$0xff]
  %v2266 = vld [vmem:[%s29 + $0x28] sm:$0xff]
  %v2267 = vld [vmem:[%s29 + $0x30] sm:$0xff]
  %v2268 = vld [vmem:[%s29 + $0x38] sm:$0xff]
  %v2269 = vld [vmem:[%s31] sm:$0xff]
  %v2270 = vld [vmem:[%s31 + $0x8] sm:$0xff]
  %v2271 = vld [vmem:[%s31 + $0x10] sm:$0xff]
  %v2272 = vld [vmem:[%s31 + $0x18] sm:$0xff]
  %2274 = vset.pattern.permute.xlu0 0
  %2275 = vperm.xlu0 %2274, %v2269
  %v2276 = vpop.permute.xlu0 %2275
  %2279 = vset.pattern.permute.xlu0 0
  %2280 = vperm.xlu0 %2279, %v2270
  %v2281 = vpop.permute.xlu0 %2280
  %2284 = vset.pattern.permute.xlu0 0
  %2285 = vperm.xlu0 %2284, %v2271
  %v2286 = vpop.permute.xlu0 %2285
  %2289 = vset.pattern.permute.xlu0 0
  %2290 = vperm.xlu0 %2289, %v2272
  %v2291 = vpop.permute.xlu0 %2290
  %v2294 = vsel %vm1758, %v2262, 0
  %v2297 = vsel %vm1758, %v2264, 0
  %v2300 = vsel %vm1758, %v2266, 0
  %v2303 = vsel %vm1758, %v2268, 0
  %2305 = vmatpush.msra.mxu0 %v2225
  %2306 = vmatpush.msra.mxu0 %v2221
  %2307 = vmatpush.msra.mxu0 %v2193
  %2308 = vmatpush.msra.mxu0 %v2189
  %2309 = vmatpush.msra.mxu0 %v2161
  %2310 = vmatpush.msra.mxu0 %v2157
  %2311 = vmatpush.msra.mxu0 %v2129
  %2312 = vmatpush.msra.mxu0 %v2125
  %2313 = vmatpush.msra.mxu0 %v2121
  %2314 = vmatpush.msra.mxu0 %v2117
  %2315 = vmatpush.msra.mxu0 %v2089
  %2316 = vmatpush.msra.mxu0 %v2085
  %2317 = vmatpush.msra.mxu0 %v2057
  %2318 = vmatpush.msra.mxu0 %v2053
  %2319 = vmatpush.msra.mxu0 %v2025
  %2320 = vmatpush.msra.mxu0 %v2021
  %2321 = vmatmul.f32.gmra.mxu0 %v2261
  %v2322 = vpop.f32.mrf.mxu0
  %v2323 = vadd.f32 %v2276, %v2322
  %2324 = vmatmul.f32.gmra.mxu0 %v2263
  %v2325 = vpop.f32.mrf.mxu0
  %v2326 = vadd.f32 %v2281, %v2325
  %2327 = vmatmul.f32.gmra.mxu0 %v2265
  %v2328 = vpop.f32.mrf.mxu0
  %v2329 = vadd.f32 %v2286, %v2328
  %2330 = vmatmul.f32.gmra.mxu0 %v2267
  %v2331 = vpop.f32.mrf.mxu0
  %v2332 = vadd.f32 %v2291, %v2331
  %2333 = vdwg.mxu0
  %2334 = vmatpush.msra.mxu0 0.0
  %2335 = vmatpush.msra.mxu0 0.0
  %2336 = vmatpush.msra.mxu0 0.0
  %2337 = vmatpush.msra.mxu0 0.0
  %2338 = vmatpush.msra.mxu0 0.0
  %2339 = vmatpush.msra.mxu0 0.0
  %2340 = vmatpush.msra.mxu0 0.0
  %2341 = vmatpush.msra.mxu0 0.0
  %2342 = vmatpush.msra.mxu0 0.0
  %2343 = vmatpush.msra.mxu0 0.0
  %2344 = vmatpush.msra.mxu0 0.0
  %2345 = vmatpush.msra.mxu0 0.0
  %2346 = vmatpush.msra.mxu0 0.0
  %2347 = vmatpush.msra.mxu0 0.0
  %2348 = vmatpush.msra.mxu0 %v2257
  %2349 = vmatpush.msra.mxu0 %v2253
  %2350 = vmatmul.f32.gmra.mxu0 %v2294
  %v2351 = vpop.f32.mrf.mxu0
  %v2352 = vadd.f32 %v2323, %v2351
  %2353 = vmatmul.f32.gmra.mxu0 %v2297
  %v2354 = vpop.f32.mrf.mxu0
  %v2355 = vadd.f32 %v2326, %v2354
  %2356 = vmatmul.f32.gmra.mxu0 %v2300
  %v2357 = vpop.f32.mrf.mxu0
  %v2358 = vadd.f32 %v2329, %v2357
  %2359 = vmatmul.f32.gmra.mxu0 %v2303
  %v2360 = vpop.f32.mrf.mxu0
  %v2361 = vadd.f32 %v2332, %v2360
  %2362 = vdwg.mxu0
  %2363 = vmatpush.msra.mxu0 %v2226
  %2364 = vmatpush.msra.mxu0 %v2222
  %2365 = vmatpush.msra.mxu0 %v2194
  %2366 = vmatpush.msra.mxu0 %v2190
  %2367 = vmatpush.msra.mxu0 %v2162
  %2368 = vmatpush.msra.mxu0 %v2158
  %2369 = vmatpush.msra.mxu0 %v2130
  %2370 = vmatpush.msra.mxu0 %v2126
  %2371 = vmatpush.msra.mxu0 %v2122
  %2372 = vmatpush.msra.mxu0 %v2118
  %2373 = vmatpush.msra.mxu0 %v2090
  %2374 = vmatpush.msra.mxu0 %v2086
  %2375 = vmatpush.msra.mxu0 %v2058
  %2376 = vmatpush.msra.mxu0 %v2054
  %2377 = vmatpush.msra.mxu0 %v2026
  %2378 = vmatpush.msra.mxu0 %v2022
  %2379 = vmatmul.f32.gmra.mxu0 %v2261
  %v2380 = vpop.f32.mrf.mxu0
  %v2381 = vadd.f32 %v2276, %v2380
  %2382 = vmatmul.f32.gmra.mxu0 %v2263
  %v2383 = vpop.f32.mrf.mxu0
  %v2384 = vadd.f32 %v2281, %v2383
  %2385 = vmatmul.f32.gmra.mxu0 %v2265
  %v2386 = vpop.f32.mrf.mxu0
  %v2387 = vadd.f32 %v2286, %v2386
  %2388 = vmatmul.f32.gmra.mxu0 %v2267
  %v2389 = vpop.f32.mrf.mxu0
  %v2390 = vadd.f32 %v2291, %v2389
  %2391 = vdwg.mxu0
  %2392 = vmatpush.msra.mxu0 0.0
  %2393 = vmatpush.msra.mxu0 0.0
  %2394 = vmatpush.msra.mxu0 0.0
  %2395 = vmatpush.msra.mxu0 0.0
  %2396 = vmatpush.msra.mxu0 0.0
  %2397 = vmatpush.msra.mxu0 0.0
  %2398 = vmatpush.msra.mxu0 0.0
  %2399 = vmatpush.msra.mxu0 0.0
  %2400 = vmatpush.msra.mxu0 0.0
  %2401 = vmatpush.msra.mxu0 0.0
  %2402 = vmatpush.msra.mxu0 0.0
  %2403 = vmatpush.msra.mxu0 0.0
  %2404 = vmatpush.msra.mxu0 0.0
  %2405 = vmatpush.msra.mxu0 0.0
  %2406 = vmatpush.msra.mxu0 %v2258
  %2407 = vmatpush.msra.mxu0 %v2254
  %2408 = vmatmul.f32.gmra.mxu0 %v2294
  %v2409 = vpop.f32.mrf.mxu0
  %v2410 = vadd.f32 %v2381, %v2409
  %2411 = vmatmul.f32.gmra.mxu0 %v2297
  %v2412 = vpop.f32.mrf.mxu0
  %v2413 = vadd.f32 %v2384, %v2412
  %2414 = vmatmul.f32.gmra.mxu0 %v2300
  %v2415 = vpop.f32.mrf.mxu0
  %v2416 = vadd.f32 %v2387, %v2415
  %2417 = vmatmul.f32.gmra.mxu0 %v2303
  %v2418 = vpop.f32.mrf.mxu0
  %v2419 = vadd.f32 %v2390, %v2418
  %2420 = vdwg.mxu0
  %2421 = vmatpush.msra.mxu0 %v2227
  %2422 = vmatpush.msra.mxu0 %v2223
  %2423 = vmatpush.msra.mxu0 %v2195
  %2424 = vmatpush.msra.mxu0 %v2191
  %2425 = vmatpush.msra.mxu0 %v2163
  %2426 = vmatpush.msra.mxu0 %v2159
  %2427 = vmatpush.msra.mxu0 %v2131
  %2428 = vmatpush.msra.mxu0 %v2127
  %2429 = vmatpush.msra.mxu0 %v2123
  %2430 = vmatpush.msra.mxu0 %v2119
  %2431 = vmatpush.msra.mxu0 %v2091
  %2432 = vmatpush.msra.mxu0 %v2087
  %2433 = vmatpush.msra.mxu0 %v2059
  %2434 = vmatpush.msra.mxu0 %v2055
  %2435 = vmatpush.msra.mxu0 %v2027
  %2436 = vmatpush.msra.mxu0 %v2023
  %2437 = vmatmul.f32.gmra.mxu0 %v2261
  %v2438 = vpop.f32.mrf.mxu0
  %v2439 = vadd.f32 %v2276, %v2438
  %2440 = vmatmul.f32.gmra.mxu0 %v2263
  %v2441 = vpop.f32.mrf.mxu0
  %v2442 = vadd.f32 %v2281, %v2441
  %2443 = vmatmul.f32.gmra.mxu0 %v2265
  %v2444 = vpop.f32.mrf.mxu0
  %v2445 = vadd.f32 %v2286, %v2444
  %2446 = vmatmul.f32.gmra.mxu0 %v2267
  %v2447 = vpop.f32.mrf.mxu0
  %v2448 = vadd.f32 %v2291, %v2447
  %2449 = vdwg.mxu0
  %2450 = vmatpush.msra.mxu0 0.0
  %2451 = vmatpush.msra.mxu0 0.0
  %2452 = vmatpush.msra.mxu0 0.0
  %2453 = vmatpush.msra.mxu0 0.0
  %2454 = vmatpush.msra.mxu0 0.0
  %2455 = vmatpush.msra.mxu0 0.0
  %2456 = vmatpush.msra.mxu0 0.0
  %2457 = vmatpush.msra.mxu0 0.0
  %2458 = vmatpush.msra.mxu0 0.0
  %2459 = vmatpush.msra.mxu0 0.0
  %2460 = vmatpush.msra.mxu0 0.0
  %2461 = vmatpush.msra.mxu0 0.0
  %2462 = vmatpush.msra.mxu0 0.0
  %2463 = vmatpush.msra.mxu0 0.0
  %2464 = vmatpush.msra.mxu0 %v2259
  %2465 = vmatpush.msra.mxu0 %v2255
  %2466 = vmatmul.f32.gmra.mxu0 %v2294
  %v2467 = vpop.f32.mrf.mxu0
  %v2468 = vadd.f32 %v2439, %v2467
  %2469 = vmatmul.f32.gmra.mxu0 %v2297
  %v2470 = vpop.f32.mrf.mxu0
  %v2471 = vadd.f32 %v2442, %v2470
  %2472 = vmatmul.f32.gmra.mxu0 %v2300
  %v2473 = vpop.f32.mrf.mxu0
  %v2474 = vadd.f32 %v2445, %v2473
  %2475 = vmatmul.f32.gmra.mxu0 %v2303
  %v2476 = vpop.f32.mrf.mxu0
  %v2477 = vadd.f32 %v2448, %v2476
  %2478 = vdwg.mxu0
  %2479 = vmatpush.msra.mxu0 %v2228
  %2480 = vmatpush.msra.mxu0 %v2224
  %2481 = vmatpush.msra.mxu0 %v2196
  %2482 = vmatpush.msra.mxu0 %v2192
  %2483 = vmatpush.msra.mxu0 %v2164
  %2484 = vmatpush.msra.mxu0 %v2160
  %2485 = vmatpush.msra.mxu0 %v2132
  %2486 = vmatpush.msra.mxu0 %v2128
  %2487 = vmatpush.msra.mxu0 %v2124
  %2488 = vmatpush.msra.mxu0 %v2120
  %2489 = vmatpush.msra.mxu0 %v2092
  %2490 = vmatpush.msra.mxu0 %v2088
  %2491 = vmatpush.msra.mxu0 %v2060
  %2492 = vmatpush.msra.mxu0 %v2056
  %2493 = vmatpush.msra.mxu0 %v2028
  %2494 = vmatpush.msra.mxu0 %v2024
  %2495 = vmatmul.f32.gmra.mxu0 %v2261
  %v2496 = vpop.f32.mrf.mxu0
  %v2497 = vadd.f32 %v2276, %v2496
  %2498 = vmatmul.f32.gmra.mxu0 %v2263
  %v2499 = vpop.f32.mrf.mxu0
  %v2500 = vadd.f32 %v2281, %v2499
  %2501 = vmatmul.f32.gmra.mxu0 %v2265
  %v2502 = vpop.f32.mrf.mxu0
  %v2503 = vadd.f32 %v2286, %v2502
  %2504 = vmatmul.f32.gmra.mxu0 %v2267
  %v2505 = vpop.f32.mrf.mxu0
  %v2506 = vadd.f32 %v2291, %v2505
  %2507 = vdwg.mxu0
  %2508 = vmatpush.msra.mxu0 0.0
  %2509 = vmatpush.msra.mxu0 0.0
  %2510 = vmatpush.msra.mxu0 0.0
  %2511 = vmatpush.msra.mxu0 0.0
  %2512 = vmatpush.msra.mxu0 0.0
  %2513 = vmatpush.msra.mxu0 0.0
  %2514 = vmatpush.msra.mxu0 0.0
  %2515 = vmatpush.msra.mxu0 0.0
  %2516 = vmatpush.msra.mxu0 0.0
  %2517 = vmatpush.msra.mxu0 0.0
  %2518 = vmatpush.msra.mxu0 0.0
  %2519 = vmatpush.msra.mxu0 0.0
  %2520 = vmatpush.msra.mxu0 0.0
  %2521 = vmatpush.msra.mxu0 0.0
  %2522 = vmatpush.msra.mxu0 %v2260
  %2523 = vmatpush.msra.mxu0 %v2256
  %2524 = vmatmul.f32.gmra.mxu0 %v2294
  %v2525 = vpop.f32.mrf.mxu0
  %v2526 = vadd.f32 %v2497, %v2525
  %2527 = vmatmul.f32.gmra.mxu0 %v2297
  %v2528 = vpop.f32.mrf.mxu0
  %v2529 = vadd.f32 %v2500, %v2528
  %2530 = vmatmul.f32.gmra.mxu0 %v2300
  %v2531 = vpop.f32.mrf.mxu0
  %v2532 = vadd.f32 %v2503, %v2531
  %2533 = vmatmul.f32.gmra.mxu0 %v2303
  %v2534 = vpop.f32.mrf.mxu0
  %v2535 = vadd.f32 %v2506, %v2534
  %2536 = vdwg.mxu0
  %v2537 = vld [vmem:[%s9] sm:$0xff]
  %v2538 = vld [vmem:[%s9 + $0x8] sm:$0xff]
  %v2539 = vld [vmem:[%s9 + $0x10] sm:$0xff]
  %v2540 = vld [vmem:[%s9 + $0x18] sm:$0xff]
  %v2541 = vld [vmem:[%s9 + $0x20] sm:$0xff]
  %v2542 = vld [vmem:[%s9 + $0x28] sm:$0xff]
  %v2543 = vld [vmem:[%s9 + $0x30] sm:$0xff]
  %v2544 = vld [vmem:[%s9 + $0x38] sm:$0xff]
  %v2545 = vld [vmem:[%s9 + $0x40] sm:$0xff]
  %v2546 = vld [vmem:[%s9 + $0x48] sm:$0xff]
  %v2547 = vld [vmem:[%s9 + $0x50] sm:$0xff]
  %v2548 = vld [vmem:[%s9 + $0x58] sm:$0xff]
  %v2549 = vld [vmem:[%s9 + $0x60] sm:$0xff]
  %v2550 = vld [vmem:[%s9 + $0x68] sm:$0xff]
  %v2551 = vld [vmem:[%s9 + $0x70] sm:$0xff]
  %v2552 = vld [vmem:[%s9 + $0x78] sm:$0xff]
  %v2553 = vld [vmem:[%s9 + $0x80] sm:$0xff]
  %v2554 = vld [vmem:[%s9 + $0x88] sm:$0xff]
  %v2555 = vld [vmem:[%s9 + $0x90] sm:$0xff]
  %v2556 = vld [vmem:[%s9 + $0x98] sm:$0xff]
  %v2557 = vld [vmem:[%s9 + $0xa0] sm:$0xff]
  %v2558 = vld [vmem:[%s9 + $0xa8] sm:$0xff]
  %v2559 = vld [vmem:[%s9 + $0xb0] sm:$0xff]
  %v2560 = vld [vmem:[%s9 + $0xb8] sm:$0xff]
  %v2561 = vld [vmem:[%s9 + $0xc0] sm:$0xff]
  %v2562 = vld [vmem:[%s9 + $0xc8] sm:$0xff]
  %v2563 = vld [vmem:[%s9 + $0xd0] sm:$0xff]
  %v2564 = vld [vmem:[%s9 + $0xd8] sm:$0xff]
  %v2565 = vld [vmem:[%s9 + $0xe0] sm:$0xff]
  %v2566 = vld [vmem:[%s9 + $0xe8] sm:$0xff]
  %v2567 = vld [vmem:[%s9 + $0xf0] sm:$0xff]
  %v2568 = vld [vmem:[%s9 + $0xf8] sm:$0xff]
  %v2569 = vld [vmem:[%s9 + $0x100] sm:$0xff]
  %v2570 = vld [vmem:[%s9 + $0x108] sm:$0xff]
  %v2571 = vld [vmem:[%s9 + $0x110] sm:$0xff]
  %v2572 = vld [vmem:[%s9 + $0x118] sm:$0xff]
  %v2573 = vld [vmem:[%s9 + $0x120] sm:$0xff]
  %v2574 = vld [vmem:[%s9 + $0x128] sm:$0xff]
  %v2575 = vld [vmem:[%s9 + $0x130] sm:$0xff]
  %v2576 = vld [vmem:[%s9 + $0x138] sm:$0xff]
  %v2577 = vld [vmem:[%s9 + $0x140] sm:$0xff]
  %v2578 = vld [vmem:[%s9 + $0x148] sm:$0xff]
  %v2579 = vld [vmem:[%s9 + $0x150] sm:$0xff]
  %v2580 = vld [vmem:[%s9 + $0x158] sm:$0xff]
  %v2581 = vld [vmem:[%s9 + $0x160] sm:$0xff]
  %v2582 = vld [vmem:[%s9 + $0x168] sm:$0xff]
  %v2583 = vld [vmem:[%s9 + $0x170] sm:$0xff]
  %v2584 = vld [vmem:[%s9 + $0x178] sm:$0xff]
  %v2585 = vld [vmem:[%s9 + $0x180] sm:$0xff]
  %v2586 = vld [vmem:[%s9 + $0x188] sm:$0xff]
  %v2587 = vld [vmem:[%s9 + $0x190] sm:$0xff]
  %v2588 = vld [vmem:[%s9 + $0x198] sm:$0xff]
  %v2589 = vld [vmem:[%s9 + $0x1a0] sm:$0xff]
  %v2590 = vld [vmem:[%s9 + $0x1a8] sm:$0xff]
  %v2591 = vld [vmem:[%s9 + $0x1b0] sm:$0xff]
  %v2592 = vld [vmem:[%s9 + $0x1b8] sm:$0xff]
  %v2593 = vld [vmem:[%s9 + $0x1c0] sm:$0xff]
  %v2594 = vld [vmem:[%s9 + $0x1c8] sm:$0xff]
  %v2595 = vld [vmem:[%s9 + $0x1d0] sm:$0xff]
  %v2596 = vld [vmem:[%s9 + $0x1d8] sm:$0xff]
  %v2597 = vld [vmem:[%s9 + $0x1e0] sm:$0xff]
  %v2598 = vld [vmem:[%s9 + $0x1e8] sm:$0xff]
  %v2599 = vld [vmem:[%s9 + $0x1f0] sm:$0xff]
  %v2600 = vld [vmem:[%s9 + $0x1f8] sm:$0xff]
  %2601 = vmatpush.msra.mxu0 %v2552
  %2602 = vmatpush.msra.mxu0 %v2551
  %2603 = vmatpush.msra.mxu0 %v2550
  %2604 = vmatpush.msra.mxu0 %v2549
  %2605 = vmatpush.msra.mxu0 %v2548
  %2606 = vmatpush.msra.mxu0 %v2547
  %2607 = vmatpush.msra.mxu0 %v2546
  %2608 = vmatpush.msra.mxu0 %v2545
  %2609 = vmatpush.msra.mxu0 %v2544
  %2610 = vmatpush.msra.mxu0 %v2543
  %2611 = vmatpush.msra.mxu0 %v2542
  %2612 = vmatpush.msra.mxu0 %v2541
  %2613 = vmatpush.msra.mxu0 %v2540
  %2614 = vmatpush.msra.mxu0 %v2539
  %2615 = vmatpush.msra.mxu0 %v2538
  %2616 = vmatpush.msra.mxu0 %v2537
  %2617 = vmatmul.f32.gmra.mxu0 %v2352
  %v2618 = vpop.f32.mrf.mxu0
  %v2619 = vadd.f32 0.0, %v2618
  %2620 = vmatmul.f32.gmra.mxu0 %v2355
  %v2621 = vpop.f32.mrf.mxu0
  %v2622 = vadd.f32 0.0, %v2621
  %2623 = vmatmul.f32.gmra.mxu0 %v2358
  %v2624 = vpop.f32.mrf.mxu0
  %v2625 = vadd.f32 0.0, %v2624
  %2626 = vmatmul.f32.gmra.mxu0 %v2361
  %v2627 = vpop.f32.mrf.mxu0
  %v2628 = vadd.f32 0.0, %v2627
  %2629 = vdwg.mxu0
  %2630 = vmatpush.msra.mxu0 %v2568
  %2631 = vmatpush.msra.mxu0 %v2567
  %2632 = vmatpush.msra.mxu0 %v2566
  %2633 = vmatpush.msra.mxu0 %v2565
  %2634 = vmatpush.msra.mxu0 %v2564
  %2635 = vmatpush.msra.mxu0 %v2563
  %2636 = vmatpush.msra.mxu0 %v2562
  %2637 = vmatpush.msra.mxu0 %v2561
  %2638 = vmatpush.msra.mxu0 %v2560
  %2639 = vmatpush.msra.mxu0 %v2559
  %2640 = vmatpush.msra.mxu0 %v2558
  %2641 = vmatpush.msra.mxu0 %v2557
  %2642 = vmatpush.msra.mxu0 %v2556
  %2643 = vmatpush.msra.mxu0 %v2555
  %2644 = vmatpush.msra.mxu0 %v2554
  %2645 = vmatpush.msra.mxu0 %v2553
  %2646 = vmatmul.f32.gmra.mxu0 %v2410
  %v2647 = vpop.f32.mrf.mxu0
  %v2648 = vadd.f32 %v2619, %v2647
  %2649 = vmatmul.f32.gmra.mxu0 %v2413
  %v2650 = vpop.f32.mrf.mxu0
  %v2651 = vadd.f32 %v2622, %v2650
  %2652 = vmatmul.f32.gmra.mxu0 %v2416
  %v2653 = vpop.f32.mrf.mxu0
  %v2654 = vadd.f32 %v2625, %v2653
  %2655 = vmatmul.f32.gmra.mxu0 %v2419
  %v2656 = vpop.f32.mrf.mxu0
  %v2657 = vadd.f32 %v2628, %v2656
  %2658 = vdwg.mxu0
  %2659 = vmatpush.msra.mxu0 %v2584
  %2660 = vmatpush.msra.mxu0 %v2583
  %2661 = vmatpush.msra.mxu0 %v2582
  %2662 = vmatpush.msra.mxu0 %v2581
  %2663 = vmatpush.msra.mxu0 %v2580
  %2664 = vmatpush.msra.mxu0 %v2579
  %2665 = vmatpush.msra.mxu0 %v2578
  %2666 = vmatpush.msra.mxu0 %v2577
  %2667 = vmatpush.msra.mxu0 %v2576
  %2668 = vmatpush.msra.mxu0 %v2575
  %2669 = vmatpush.msra.mxu0 %v2574
  %2670 = vmatpush.msra.mxu0 %v2573
  %2671 = vmatpush.msra.mxu0 %v2572
  %2672 = vmatpush.msra.mxu0 %v2571
  %2673 = vmatpush.msra.mxu0 %v2570
  %2674 = vmatpush.msra.mxu0 %v2569
  %2675 = vmatmul.f32.gmra.mxu0 %v2468
  %v2676 = vpop.f32.mrf.mxu0
  %v2677 = vadd.f32 %v2648, %v2676
  %2678 = vmatmul.f32.gmra.mxu0 %v2471
  %v2679 = vpop.f32.mrf.mxu0
  %v2680 = vadd.f32 %v2651, %v2679
  %2681 = vmatmul.f32.gmra.mxu0 %v2474
  %v2682 = vpop.f32.mrf.mxu0
  %v2683 = vadd.f32 %v2654, %v2682
  %2684 = vmatmul.f32.gmra.mxu0 %v2477
  %v2685 = vpop.f32.mrf.mxu0
  %v2686 = vadd.f32 %v2657, %v2685
  %2687 = vdwg.mxu0
  %2688 = vmatpush.msra.mxu0 %v2600
  %2689 = vmatpush.msra.mxu0 %v2599
  %2690 = vmatpush.msra.mxu0 %v2598
  %2691 = vmatpush.msra.mxu0 %v2597
  %2692 = vmatpush.msra.mxu0 %v2596
  %2693 = vmatpush.msra.mxu0 %v2595
  %2694 = vmatpush.msra.mxu0 %v2594
  %2695 = vmatpush.msra.mxu0 %v2593
  %2696 = vmatpush.msra.mxu0 %v2592
  %2697 = vmatpush.msra.mxu0 %v2591
  %2698 = vmatpush.msra.mxu0 %v2590
  %2699 = vmatpush.msra.mxu0 %v2589
  %2700 = vmatpush.msra.mxu0 %v2588
  %2701 = vmatpush.msra.mxu0 %v2587
  %2702 = vmatpush.msra.mxu0 %v2586
  %2703 = vmatpush.msra.mxu0 %v2585
  %2704 = vmatmul.f32.gmra.mxu0 %v2526
  %v2705 = vpop.f32.mrf.mxu0
  %v2706 = vadd.f32 %v2677, %v2705
  %2707 = vmatmul.f32.gmra.mxu0 %v2529
  %v2708 = vpop.f32.mrf.mxu0
  %v2709 = vadd.f32 %v2680, %v2708
  %2710 = vmatmul.f32.gmra.mxu0 %v2532
  %v2711 = vpop.f32.mrf.mxu0
  %v2712 = vadd.f32 %v2683, %v2711
  %2713 = vmatmul.f32.gmra.mxu0 %v2535
  %v2714 = vpop.f32.mrf.mxu0
  %v2715 = vadd.f32 %v2686, %v2714
  %2716 = vdwg.mxu0
  %v2717 = vmax.f32 %v2706, 0.0
  %v2718 = vmax.f32 %v2709, 0.0
  %v2719 = vmax.f32 %v2712, 0.0
  %v2720 = vmax.f32 %v2715, 0.0
  %2721 = vrot.lane.b32.xlu0 %v2717, 9
  %v2722 = vpop.permute.xlu0 %2721
  %2723 = vrot.lane.b32.xlu0 %v2718, 9
  %v2724 = vpop.permute.xlu0 %2723
  %2725 = vrot.lane.b32.xlu0 %v2719, 9
  %v2726 = vpop.permute.xlu0 %2725
  %2727 = vrot.lane.b32.xlu0 %v2720, 9
  %v2728 = vpop.permute.xlu0 %2727
  %v2729 = vld [vmem:[%s5] sm:$0x1]
  %v2730 = vperm.slane %v2729, 0
  %v2731 = vmul.f32 %v2722, %v2730
  %v2732 = vmul.f32 %v2724, %v2730
  %v2733 = vmul.f32 %v2726, %v2730
  %v2734 = vmul.f32 %v2728, %v2730
  %2735 = vrot.lane.b32.xlu0 %v2717, 8
  %v2736 = vpop.permute.xlu0 %2735
  %2737 = vrot.lane.b32.xlu0 %v2718, 8
  %v2738 = vpop.permute.xlu0 %2737
  %2739 = vrot.lane.b32.xlu0 %v2719, 8
  %v2740 = vpop.permute.xlu0 %2739
  %2741 = vrot.lane.b32.xlu0 %v2720, 8
  %v2742 = vpop.permute.xlu0 %2741
  %v2743 = vld [vmem:[%s5 + $0x1] sm:$0x1]
  %v2744 = vperm.slane %v2743, 0
  %v2745 = vmul.f32 %v2736, %v2744
  %v2746 = vmul.f32 %v2738, %v2744
  %v2747 = vmul.f32 %v2740, %v2744
  %v2748 = vmul.f32 %v2742, %v2744
  %2749 = vrot.lane.b32.xlu0 %v2717, 7
  %v2750 = vpop.permute.xlu0 %2749
  %2751 = vrot.lane.b32.xlu0 %v2718, 7
  %v2752 = vpop.permute.xlu0 %2751
  %2753 = vrot.lane.b32.xlu0 %v2719, 7
  %v2754 = vpop.permute.xlu0 %2753
  %2755 = vrot.lane.b32.xlu0 %v2720, 7
  %v2756 = vpop.permute.xlu0 %2755
  %v2757 = vld [vmem:[%s5 + $0x2] sm:$0x1]
  %v2758 = vperm.slane %v2757, 0
  %v2759 = vmul.f32 %v2750, %v2758
  %v2760 = vmul.f32 %v2752, %v2758
  %v2761 = vmul.f32 %v2754, %v2758
  %v2762 = vmul.f32 %v2756, %v2758
  %2763 = vrot.lane.b32.xlu0 %v2717, 1
  %v2764 = vpop.permute.xlu0 %2763
  %2765 = vrot.lane.b32.xlu0 %v2718, 1
  %v2766 = vpop.permute.xlu0 %2765
  %2767 = vrot.lane.b32.xlu0 %v2719, 1
  %v2768 = vpop.permute.xlu0 %2767
  %2769 = vrot.lane.b32.xlu0 %v2720, 1
  %v2770 = vpop.permute.xlu0 %2769
  %v2771 = vld [vmem:[%s5 + $0x3] sm:$0x1]
  %v2772 = vperm.slane %v2771, 0
  %v2773 = vmul.f32 %v2764, %v2772
  %v2774 = vmul.f32 %v2766, %v2772
  %v2775 = vmul.f32 %v2768, %v2772
  %v2776 = vmul.f32 %v2770, %v2772
  %v2777 = vld [vmem:[%s5 + $0x4] sm:$0x1]
  %v2778 = vperm.slane %v2777, 0
  %v2779 = vmul.f32 %v2717, %v2778
  %v2780 = vmul.f32 %v2718, %v2778
  %v2781 = vmul.f32 %v2719, %v2778
  %v2782 = vmul.f32 %v2720, %v2778
  %2783 = vrot.lane.b32.xlu0 %v2717, 127
  %v2784 = vpop.permute.xlu0 %2783
  %2785 = vrot.lane.b32.xlu0 %v2718, 127
  %v2786 = vpop.permute.xlu0 %2785
  %2787 = vrot.lane.b32.xlu0 %v2719, 127
  %v2788 = vpop.permute.xlu0 %2787
  %2789 = vrot.lane.b32.xlu0 %v2720, 127
  %v2790 = vpop.permute.xlu0 %2789
  %v2791 = vld [vmem:[%s5 + $0x5] sm:$0x1]
  %v2792 = vperm.slane %v2791, 0
  %v2793 = vmul.f32 %v2784, %v2792
  %v2794 = vmul.f32 %v2786, %v2792
  %v2795 = vmul.f32 %v2788, %v2792
  %v2796 = vmul.f32 %v2790, %v2792
  %2797 = vrot.lane.b32.xlu0 %v2717, 121
  %v2798 = vpop.permute.xlu0 %2797
  %2799 = vrot.lane.b32.xlu0 %v2718, 121
  %v2800 = vpop.permute.xlu0 %2799
  %2801 = vrot.lane.b32.xlu0 %v2719, 121
  %v2802 = vpop.permute.xlu0 %2801
  %2803 = vrot.lane.b32.xlu0 %v2720, 121
  %v2804 = vpop.permute.xlu0 %2803
  %v2805 = vld [vmem:[%s5 + $0x6] sm:$0x1]
  %v2806 = vperm.slane %v2805, 0
  %v2807 = vmul.f32 %v2798, %v2806
  %v2808 = vmul.f32 %v2800, %v2806
  %v2809 = vmul.f32 %v2802, %v2806
  %v2810 = vmul.f32 %v2804, %v2806
  %2811 = vrot.lane.b32.xlu0 %v2717, 120
  %v2812 = vpop.permute.xlu0 %2811
  %2813 = vrot.lane.b32.xlu0 %v2718, 120
  %v2814 = vpop.permute.xlu0 %2813
  %2815 = vrot.lane.b32.xlu0 %v2719, 120
  %v2816 = vpop.permute.xlu0 %2815
  %2817 = vrot.lane.b32.xlu0 %v2720, 120
  %v2818 = vpop.permute.xlu0 %2817
  %v2819 = vld [vmem:[%s5 + $0x7] sm:$0x1]
  %v2820 = vperm.slane %v2819, 0
  %v2821 = vmul.f32 %v2812, %v2820
  %v2822 = vmul.f32 %v2814, %v2820
  %v2823 = vmul.f32 %v2816, %v2820
  %v2824 = vmul.f32 %v2818, %v2820
  %2825 = vrot.lane.b32.xlu0 %v2717, 119
  %v2826 = vpop.permute.xlu0 %2825
  %2827 = vrot.lane.b32.xlu0 %v2718, 119
  %v2828 = vpop.permute.xlu0 %2827
  %2829 = vrot.lane.b32.xlu0 %v2719, 119
  %v2830 = vpop.permute.xlu0 %2829
  %2831 = vrot.lane.b32.xlu0 %v2720, 119
  %v2832 = vpop.permute.xlu0 %2831
  %v2833 = vld [vmem:[%s5 + $0x8] sm:$0x1]
  %v2834 = vperm.slane %v2833, 0
  %v2835 = vmul.f32 %v2826, %v2834
  %v2836 = vmul.f32 %v2828, %v2834
  %v2837 = vmul.f32 %v2830, %v2834
  %v2838 = vmul.f32 %v2832, %v2834
  %v2839 = vld [vmem:[%s33] sm:$0xff]
  %v2840 = vld [vmem:[%s33 + $0x8] sm:$0xff]
  %v2841 = vld [vmem:[%s33 + $0x10] sm:$0xff]
  %v2842 = vld [vmem:[%s33 + $0x18] sm:$0xff]
  %v2843 = vld [vmem:[%s33 + $0x20] sm:$0xff]
  %v2844 = vld [vmem:[%s33 + $0x28] sm:$0xff]
  %v2845 = vld [vmem:[%s33 + $0x30] sm:$0xff]
  %v2846 = vld [vmem:[%s33 + $0x38] sm:$0xff]
  %v2847 = vld [vmem:[%s33 + $0x40] sm:$0xff]
  %v2848 = vld [vmem:[%s33 + $0x48] sm:$0xff]
  %v2849 = vld [vmem:[%s33 + $0x50] sm:$0xff]
  %v2850 = vld [vmem:[%s33 + $0x58] sm:$0xff]
  %v2851 = vld [vmem:[%s35] sm:$0xff]
  %v2852 = vld [vmem:[%s35 + $0x8] sm:$0xff]
  %v2853 = vld [vmem:[%s35 + $0x10] sm:$0xff]
  %v2854 = vld [vmem:[%s35 + $0x18] sm:$0xff]
  %2856 = vset.pattern.permute.xlu0 0
  %2857 = vperm.xlu0 %2856, %v2851
  %v2858 = vpop.permute.xlu0 %2857
  %2861 = vset.pattern.permute.xlu0 0
  %2862 = vperm.xlu0 %2861, %v2852
  %v2863 = vpop.permute.xlu0 %2862
  %2866 = vset.pattern.permute.xlu0 0
  %2867 = vperm.xlu0 %2866, %v2853
  %v2868 = vpop.permute.xlu0 %2867
  %2871 = vset.pattern.permute.xlu0 0
  %2872 = vperm.xlu0 %2871, %v2854
  %v2873 = vpop.permute.xlu0 %2872
  %vm2875 = vcmask 261120
  %v2877 = vsel %vm2875, %v2841, 0
  %v2880 = vsel %vm2875, %v2844, 0
  %v2883 = vsel %vm2875, %v2847, 0
  %v2886 = vsel %vm2875, %v2850, 0
  %2888 = vmatpush.msra.mxu0 %v2776
  %2889 = vmatpush.msra.mxu0 %v2775
  %2890 = vmatpush.msra.mxu0 %v2774
  %2891 = vmatpush.msra.mxu0 %v2773
  %2892 = vmatpush.msra.mxu0 %v2762
  %2893 = vmatpush.msra.mxu0 %v2761
  %2894 = vmatpush.msra.mxu0 %v2760
  %2895 = vmatpush.msra.mxu0 %v2759
  %2896 = vmatpush.msra.mxu0 %v2748
  %2897 = vmatpush.msra.mxu0 %v2747
  %2898 = vmatpush.msra.mxu0 %v2746
  %2899 = vmatpush.msra.mxu0 %v2745
  %2900 = vmatpush.msra.mxu0 %v2734
  %2901 = vmatpush.msra.mxu0 %v2733
  %2902 = vmatpush.msra.mxu0 %v2732
  %2903 = vmatpush.msra.mxu0 %v2731
  %2904 = vmatmul.f32.gmra.mxu0 %v2839
  %v2905 = vpop.f32.mrf.mxu0
  %v2906 = vadd.f32 %v2858, %v2905
  %2907 = vmatmul.f32.gmra.mxu0 %v2842
  %v2908 = vpop.f32.mrf.mxu0
  %v2909 = vadd.f32 %v2863, %v2908
  %2910 = vmatmul.f32.gmra.mxu0 %v2845
  %v2911 = vpop.f32.mrf.mxu0
  %v2912 = vadd.f32 %v2868, %v2911
  %2913 = vmatmul.f32.gmra.mxu0 %v2848
  %v2914 = vpop.f32.mrf.mxu0
  %v2915 = vadd.f32 %v2873, %v2914
  %2916 = vdwg.mxu0
  %2917 = vmatpush.msra.mxu0 %v2824
  %2918 = vmatpush.msra.mxu0 %v2823
  %2919 = vmatpush.msra.mxu0 %v2822
  %2920 = vmatpush.msra.mxu0 %v2821
  %2921 = vmatpush.msra.mxu0 %v2810
  %2922 = vmatpush.msra.mxu0 %v2809
  %2923 = vmatpush.msra.mxu0 %v2808
  %2924 = vmatpush.msra.mxu0 %v2807
  %2925 = vmatpush.msra.mxu0 %v2796
  %2926 = vmatpush.msra.mxu0 %v2795
  %2927 = vmatpush.msra.mxu0 %v2794
  %2928 = vmatpush.msra.mxu0 %v2793
  %2929 = vmatpush.msra.mxu0 %v2782
  %2930 = vmatpush.msra.mxu0 %v2781
  %2931 = vmatpush.msra.mxu0 %v2780
  %2932 = vmatpush.msra.mxu0 %v2779
  %2933 = vmatmul.f32.gmra.mxu0 %v2840
  %v2934 = vpop.f32.mrf.mxu0
  %v2935 = vadd.f32 %v2906, %v2934
  %2936 = vmatmul.f32.gmra.mxu0 %v2843
  %v2937 = vpop.f32.mrf.mxu0
  %v2938 = vadd.f32 %v2909, %v2937
  %2939 = vmatmul.f32.gmra.mxu0 %v2846
  %v2940 = vpop.f32.mrf.mxu0
  %v2941 = vadd.f32 %v2912, %v2940
  %2942 = vmatmul.f32.gmra.mxu0 %v2849
  %v2943 = vpop.f32.mrf.mxu0
  %v2944 = vadd.f32 %v2915, %v2943
  %2945 = vdwg.mxu0
  %2946 = vmatpush.msra.mxu0 0.0
  %2947 = vmatpush.msra.mxu0 0.0
  %2948 = vmatpush.msra.mxu0 0.0
  %2949 = vmatpush.msra.mxu0 0.0
  %2950 = vmatpush.msra.mxu0 0.0
  %2951 = vmatpush.msra.mxu0 0.0
  %2952 = vmatpush.msra.mxu0 0.0
  %2953 = vmatpush.msra.mxu0 0.0
  %2954 = vmatpush.msra.mxu0 0.0
  %2955 = vmatpush.msra.mxu0 0.0
  %2956 = vmatpush.msra.mxu0 0.0
  %2957 = vmatpush.msra.mxu0 0.0
  %2958 = vmatpush.msra.mxu0 %v2838
  %2959 = vmatpush.msra.mxu0 %v2837
  %2960 = vmatpush.msra.mxu0 %v2836
  %2961 = vmatpush.msra.mxu0 %v2835
  %2962 = vmatmul.f32.gmra.mxu0 %v2877
  %v2963 = vpop.f32.mrf.mxu0
  %v2964 = vadd.f32 %v2935, %v2963
  %2965 = vmatmul.f32.gmra.mxu0 %v2880
  %v2966 = vpop.f32.mrf.mxu0
  %v2967 = vadd.f32 %v2938, %v2966
  %2968 = vmatmul.f32.gmra.mxu0 %v2883
  %v2969 = vpop.f32.mrf.mxu0
  %v2970 = vadd.f32 %v2941, %v2969
  %2971 = vmatmul.f32.gmra.mxu0 %v2886
  %v2972 = vpop.f32.mrf.mxu0
  %v2973 = vadd.f32 %v2944, %v2972
  %2974 = vdwg.mxu0
  %v2975 = vld [vmem:[%s37] sm:$0xff]
  %v2976 = vld [vmem:[%s37 + $0x8] sm:$0xff]
  %v2977 = vld [vmem:[%s37 + $0x10] sm:$0xff]
  %v2978 = vld [vmem:[%s37 + $0x18] sm:$0xff]
  %2980 = vset.pattern.permute.xlu0 0
  %2981 = vperm.xlu0 %2980, %v2975
  %v2982 = vpop.permute.xlu0 %2981
  %2985 = vset.pattern.permute.xlu0 0
  %2986 = vperm.xlu0 %2985, %v2976
  %v2987 = vpop.permute.xlu0 %2986
  %2990 = vset.pattern.permute.xlu0 0
  %2991 = vperm.xlu0 %2990, %v2977
  %v2992 = vpop.permute.xlu0 %2991
  %2995 = vset.pattern.permute.xlu0 0
  %2996 = vperm.xlu0 %2995, %v2978
  %v2997 = vpop.permute.xlu0 %2996
  %v2999 = vmul.f32 %v2964, %v2982
  %v3000 = vmul.f32 %v2967, %v2987
  %v3001 = vmul.f32 %v2970, %v2992
  %v3002 = vmul.f32 %v2973, %v2997
  %v3003 = vld [vmem:[%s39] sm:$0xff]
  %v3004 = vld [vmem:[%s39 + $0x8] sm:$0xff]
  %v3005 = vld [vmem:[%s39 + $0x10] sm:$0xff]
  %v3006 = vld [vmem:[%s39 + $0x18] sm:$0xff]
  %3008 = vset.pattern.permute.xlu0 0
  %3009 = vperm.xlu0 %3008, %v3003
  %v3010 = vpop.permute.xlu0 %3009
  %3013 = vset.pattern.permute.xlu0 0
  %3014 = vperm.xlu0 %3013, %v3004
  %v3015 = vpop.permute.xlu0 %3014
  %3018 = vset.pattern.permute.xlu0 0
  %3019 = vperm.xlu0 %3018, %v3005
  %v3020 = vpop.permute.xlu0 %3019
  %3023 = vset.pattern.permute.xlu0 0
  %3024 = vperm.xlu0 %3023, %v3006
  %v3025 = vpop.permute.xlu0 %3024
  %v3027 = vadd.f32 %v2999, %v3010
  %v3028 = vadd.f32 %v3000, %v3015
  %v3029 = vadd.f32 %v3001, %v3020
  %v3030 = vadd.f32 %v3002, %v3025
  %v3031 = vadd.f32 %v2706, %v3027
  %v3032 = vadd.f32 %v2709, %v3028
  %v3033 = vadd.f32 %v2712, %v3029
  %v3034 = vadd.f32 %v2715, %v3030
  %3035 = vrot.lane.b32.xlu0 %v3031, 9
  %v3036 = vpop.permute.xlu0 %3035
  %3037 = vrot.lane.b32.xlu0 %v3032, 9
  %v3038 = vpop.permute.xlu0 %3037
  %3039 = vrot.lane.b32.xlu0 %v3033, 9
  %v3040 = vpop.permute.xlu0 %3039
  %3041 = vrot.lane.b32.xlu0 %v3034, 9
  %v3042 = vpop.permute.xlu0 %3041
  %v3043 = vmul.f32 %v3036, %v2730
  %v3044 = vmul.f32 %v3038, %v2730
  %v3045 = vmul.f32 %v3040, %v2730
  %v3046 = vmul.f32 %v3042, %v2730
  %3047 = vrot.lane.b32.xlu0 %v3031, 8
  %v3048 = vpop.permute.xlu0 %3047
  %3049 = vrot.lane.b32.xlu0 %v3032, 8
  %v3050 = vpop.permute.xlu0 %3049
  %3051 = vrot.lane.b32.xlu0 %v3033, 8
  %v3052 = vpop.permute.xlu0 %3051
  %3053 = vrot.lane.b32.xlu0 %v3034, 8
  %v3054 = vpop.permute.xlu0 %3053
  %v3055 = vmul.f32 %v3048, %v2744
  %v3056 = vmul.f32 %v3050, %v2744
  %v3057 = vmul.f32 %v3052, %v2744
  %v3058 = vmul.f32 %v3054, %v2744
  %3059 = vrot.lane.b32.xlu0 %v3031, 7
  %v3060 = vpop.permute.xlu0 %3059
  %3061 = vrot.lane.b32.xlu0 %v3032, 7
  %v3062 = vpop.permute.xlu0 %3061
  %3063 = vrot.lane.b32.xlu0 %v3033, 7
  %v3064 = vpop.permute.xlu0 %3063
  %3065 = vrot.lane.b32.xlu0 %v3034, 7
  %v3066 = vpop.permute.xlu0 %3065
  %v3067 = vmul.f32 %v3060, %v2758
  %v3068 = vmul.f32 %v3062, %v2758
  %v3069 = vmul.f32 %v3064, %v2758
  %v3070 = vmul.f32 %v3066, %v2758
  %3071 = vrot.lane.b32.xlu0 %v3031, 1
  %v3072 = vpop.permute.xlu0 %3071
  %3073 = vrot.lane.b32.xlu0 %v3032, 1
  %v3074 = vpop.permute.xlu0 %3073
  %3075 = vrot.lane.b32.xlu0 %v3033, 1
  %v3076 = vpop.permute.xlu0 %3075
  %3077 = vrot.lane.b32.xlu0 %v3034, 1
  %v3078 = vpop.permute.xlu0 %3077
  %v3079 = vmul.f32 %v3072, %v2772
  %v3080 = vmul.f32 %v3074, %v2772
  %v3081 = vmul.f32 %v3076, %v2772
  %v3082 = vmul.f32 %v3078, %v2772
  %v3083 = vmul.f32 %v3031, %v2778
  %v3084 = vmul.f32 %v3032, %v2778
  %v3085 = vmul.f32 %v3033, %v2778
  %v3086 = vmul.f32 %v3034, %v2778
  %3087 = vrot.lane.b32.xlu0 %v3031, 127
  %v3088 = vpop.permute.xlu0 %3087
  %3089 = vrot.lane.b32.xlu0 %v3032, 127
  %v3090 = vpop.permute.xlu0 %3089
  %3091 = vrot.lane.b32.xlu0 %v3033, 127
  %v3092 = vpop.permute.xlu0 %3091
  %3093 = vrot.lane.b32.xlu0 %v3034, 127
  %v3094 = vpop.permute.xlu0 %3093
  %v3095 = vmul.f32 %v3088, %v2792
  %v3096 = vmul.f32 %v3090, %v2792
  %v3097 = vmul.f32 %v3092, %v2792
  %v3098 = vmul.f32 %v3094, %v2792
  %3099 = vrot.lane.b32.xlu0 %v3031, 121
  %v3100 = vpop.permute.xlu0 %3099
  %3101 = vrot.lane.b32.xlu0 %v3032, 121
  %v3102 = vpop.permute.xlu0 %3101
  %3103 = vrot.lane.b32.xlu0 %v3033, 121
  %v3104 = vpop.permute.xlu0 %3103
  %3105 = vrot.lane.b32.xlu0 %v3034, 121
  %v3106 = vpop.permute.xlu0 %3105
  %v3107 = vmul.f32 %v3100, %v2806
  %v3108 = vmul.f32 %v3102, %v2806
  %v3109 = vmul.f32 %v3104, %v2806
  %v3110 = vmul.f32 %v3106, %v2806
  %3111 = vrot.lane.b32.xlu0 %v3031, 120
  %v3112 = vpop.permute.xlu0 %3111
  %3113 = vrot.lane.b32.xlu0 %v3032, 120
  %v3114 = vpop.permute.xlu0 %3113
  %3115 = vrot.lane.b32.xlu0 %v3033, 120
  %v3116 = vpop.permute.xlu0 %3115
  %3117 = vrot.lane.b32.xlu0 %v3034, 120
  %v3118 = vpop.permute.xlu0 %3117
  %v3119 = vmul.f32 %v3112, %v2820
  %v3120 = vmul.f32 %v3114, %v2820
  %v3121 = vmul.f32 %v3116, %v2820
  %v3122 = vmul.f32 %v3118, %v2820
  %3123 = vrot.lane.b32.xlu0 %v3031, 119
  %v3124 = vpop.permute.xlu0 %3123
  %3125 = vrot.lane.b32.xlu0 %v3032, 119
  %v3126 = vpop.permute.xlu0 %3125
  %3127 = vrot.lane.b32.xlu0 %v3033, 119
  %v3128 = vpop.permute.xlu0 %3127
  %3129 = vrot.lane.b32.xlu0 %v3034, 119
  %v3130 = vpop.permute.xlu0 %3129
  %v3131 = vmul.f32 %v3124, %v2834
  %v3132 = vmul.f32 %v3126, %v2834
  %v3133 = vmul.f32 %v3128, %v2834
  %v3134 = vmul.f32 %v3130, %v2834
  %v3135 = vld [vmem:[%s41] sm:$0xff]
  %v3136 = vld [vmem:[%s41 + $0x8] sm:$0xff]
  %v3137 = vld [vmem:[%s41 + $0x10] sm:$0xff]
  %v3138 = vld [vmem:[%s41 + $0x18] sm:$0xff]
  %v3139 = vld [vmem:[%s41 + $0x20] sm:$0xff]
  %v3140 = vld [vmem:[%s41 + $0x28] sm:$0xff]
  %v3141 = vld [vmem:[%s41 + $0x30] sm:$0xff]
  %v3142 = vld [vmem:[%s41 + $0x38] sm:$0xff]
  %v3143 = vld [vmem:[%s41 + $0x40] sm:$0xff]
  %v3144 = vld [vmem:[%s41 + $0x48] sm:$0xff]
  %v3145 = vld [vmem:[%s41 + $0x50] sm:$0xff]
  %v3146 = vld [vmem:[%s41 + $0x58] sm:$0xff]
  %v3147 = vld [vmem:[%s41 + $0x60] sm:$0xff]
  %v3148 = vld [vmem:[%s41 + $0x68] sm:$0xff]
  %v3149 = vld [vmem:[%s41 + $0x70] sm:$0xff]
  %v3150 = vld [vmem:[%s41 + $0x78] sm:$0xff]
  %v3151 = vld [vmem:[%s41 + $0x80] sm:$0xff]
  %v3152 = vld [vmem:[%s41 + $0x88] sm:$0xff]
  %v3153 = vld [vmem:[%s43] sm:$0xff]
  %v3154 = vld [vmem:[%s43 + $0x8] sm:$0xff]
  %v3155 = vld [vmem:[%s43 + $0x10] sm:$0xff]
  %v3156 = vld [vmem:[%s43 + $0x18] sm:$0xff]
  %v3157 = vld [vmem:[%s43 + $0x20] sm:$0xff]
  %v3158 = vld [vmem:[%s43 + $0x28] sm:$0xff]
  %3160 = vset.pattern.permute.xlu0 0
  %3161 = vperm.xlu0 %3160, %v3153
  %v3162 = vpop.permute.xlu0 %3161
  %3165 = vset.pattern.permute.xlu0 0
  %3166 = vperm.xlu0 %3165, %v3154
  %v3167 = vpop.permute.xlu0 %3166
  %3170 = vset.pattern.permute.xlu0 0
  %3171 = vperm.xlu0 %3170, %v3155
  %v3172 = vpop.permute.xlu0 %3171
  %3175 = vset.pattern.permute.xlu0 0
  %3176 = vperm.xlu0 %3175, %v3156
  %v3177 = vpop.permute.xlu0 %3176
  %3180 = vset.pattern.permute.xlu0 0
  %3181 = vperm.xlu0 %3180, %v3157
  %v3182 = vpop.permute.xlu0 %3181
  %3185 = vset.pattern.permute.xlu0 0
  %3186 = vperm.xlu0 %3185, %v3158
  %v3187 = vpop.permute.xlu0 %3186
  %v3190 = vsel %vm2875, %v3137, 0
  %v3193 = vsel %vm2875, %v3140, 0
  %v3196 = vsel %vm2875, %v3143, 0
  %v3199 = vsel %vm2875, %v3146, 0
  %v3202 = vsel %vm2875, %v3149, 0
  %v3205 = vsel %vm2875, %v3152, 0
  %3207 = vmatpush.msra.mxu0 %v3082
  %3208 = vmatpush.msra.mxu0 %v3081
  %3209 = vmatpush.msra.mxu0 %v3080
  %3210 = vmatpush.msra.mxu0 %v3079
  %3211 = vmatpush.msra.mxu0 %v3070
  %3212 = vmatpush.msra.mxu0 %v3069
  %3213 = vmatpush.msra.mxu0 %v3068
  %3214 = vmatpush.msra.mxu0 %v3067
  %3215 = vmatpush.msra.mxu0 %v3058
  %3216 = vmatpush.msra.mxu0 %v3057
  %3217 = vmatpush.msra.mxu0 %v3056
  %3218 = vmatpush.msra.mxu0 %v3055
  %3219 = vmatpush.msra.mxu0 %v3046
  %3220 = vmatpush.msra.mxu0 %v3045
  %3221 = vmatpush.msra.mxu0 %v3044
  %3222 = vmatpush.msra.mxu0 %v3043
  %3223 = vmatmul.f32.gmra.mxu0 %v3135
  %v3224 = vpop.f32.mrf.mxu0
  %v3225 = vadd.f32 %v3162, %v3224
  %3226 = vmatmul.f32.gmra.mxu0 %v3138
  %v3227 = vpop.f32.mrf.mxu0
  %v3228 = vadd.f32 %v3167, %v3227
  %3229 = vmatmul.f32.gmra.mxu0 %v3141
  %v3230 = vpop.f32.mrf.mxu0
  %v3231 = vadd.f32 %v3172, %v3230
  %3232 = vmatmul.f32.gmra.mxu0 %v3144
  %v3233 = vpop.f32.mrf.mxu0
  %v3234 = vadd.f32 %v3177, %v3233
  %3235 = vmatmul.f32.gmra.mxu0 %v3147
  %v3236 = vpop.f32.mrf.mxu0
  %v3237 = vadd.f32 %v3182, %v3236
  %3238 = vmatmul.f32.gmra.mxu0 %v3150
  %v3239 = vpop.f32.mrf.mxu0
  %v3240 = vadd.f32 %v3187, %v3239
  %3241 = vdwg.mxu0
  %3242 = vmatpush.msra.mxu0 %v3122
  %3243 = vmatpush.msra.mxu0 %v3121
  %3244 = vmatpush.msra.mxu0 %v3120
  %3245 = vmatpush.msra.mxu0 %v3119
  %3246 = vmatpush.msra.mxu0 %v3110
  %3247 = vmatpush.msra.mxu0 %v3109
  %3248 = vmatpush.msra.mxu0 %v3108
  %3249 = vmatpush.msra.mxu0 %v3107
  %3250 = vmatpush.msra.mxu0 %v3098
  %3251 = vmatpush.msra.mxu0 %v3097
  %3252 = vmatpush.msra.mxu0 %v3096
  %3253 = vmatpush.msra.mxu0 %v3095
  %3254 = vmatpush.msra.mxu0 %v3086
  %3255 = vmatpush.msra.mxu0 %v3085
  %3256 = vmatpush.msra.mxu0 %v3084
  %3257 = vmatpush.msra.mxu0 %v3083
  %3258 = vmatmul.f32.gmra.mxu0 %v3136
  %v3259 = vpop.f32.mrf.mxu0
  %v3260 = vadd.f32 %v3225, %v3259
  %3261 = vmatmul.f32.gmra.mxu0 %v3139
  %v3262 = vpop.f32.mrf.mxu0
  %v3263 = vadd.f32 %v3228, %v3262
  %3264 = vmatmul.f32.gmra.mxu0 %v3142
  %v3265 = vpop.f32.mrf.mxu0
  %v3266 = vadd.f32 %v3231, %v3265
  %3267 = vmatmul.f32.gmra.mxu0 %v3145
  %v3268 = vpop.f32.mrf.mxu0
  %v3269 = vadd.f32 %v3234, %v3268
  %3270 = vmatmul.f32.gmra.mxu0 %v3148
  %v3271 = vpop.f32.mrf.mxu0
  %v3272 = vadd.f32 %v3237, %v3271
  %3273 = vmatmul.f32.gmra.mxu0 %v3151
  %v3274 = vpop.f32.mrf.mxu0
  %v3275 = vadd.f32 %v3240, %v3274
  %3276 = vdwg.mxu0
  %3277 = vmatpush.msra.mxu0 0.0
  %3278 = vmatpush.msra.mxu0 0.0
  %3279 = vmatpush.msra.mxu0 0.0
  %3280 = vmatpush.msra.mxu0 0.0
  %3281 = vmatpush.msra.mxu0 0.0
  %3282 = vmatpush.msra.mxu0 0.0
  %3283 = vmatpush.msra.mxu0 0.0
  %3284 = vmatpush.msra.mxu0 0.0
  %3285 = vmatpush.msra.mxu0 0.0
  %3286 = vmatpush.msra.mxu0 0.0
  %3287 = vmatpush.msra.mxu0 0.0
  %3288 = vmatpush.msra.mxu0 0.0
  %3289 = vmatpush.msra.mxu0 %v3134
  %3290 = vmatpush.msra.mxu0 %v3133
  %3291 = vmatpush.msra.mxu0 %v3132
  %3292 = vmatpush.msra.mxu0 %v3131
  %3293 = vmatmul.f32.gmra.mxu0 %v3190
  %v3294 = vpop.f32.mrf.mxu0
  %v3295 = vadd.f32 %v3260, %v3294
  %3296 = vmatmul.f32.gmra.mxu0 %v3193
  %v3297 = vpop.f32.mrf.mxu0
  %v3298 = vadd.f32 %v3263, %v3297
  %3299 = vmatmul.f32.gmra.mxu0 %v3196
  %v3300 = vpop.f32.mrf.mxu0
  %v3301 = vadd.f32 %v3266, %v3300
  %3302 = vmatmul.f32.gmra.mxu0 %v3199
  %v3303 = vpop.f32.mrf.mxu0
  %v3304 = vadd.f32 %v3269, %v3303
  %3305 = vmatmul.f32.gmra.mxu0 %v3202
  %v3306 = vpop.f32.mrf.mxu0
  %v3307 = vadd.f32 %v3272, %v3306
  %3308 = vmatmul.f32.gmra.mxu0 %v3205
  %v3309 = vpop.f32.mrf.mxu0
  %v3310 = vadd.f32 %v3275, %v3309
  %3311 = vdwg.mxu0
  %v3312 = vld [vmem:[%s11] sm:$0xff]
  %v3313 = vld [vmem:[%s11 + $0x8] sm:$0xff]
  %v3314 = vld [vmem:[%s11 + $0x10] sm:$0xff]
  %v3315 = vld [vmem:[%s11 + $0x18] sm:$0xff]
  %v3316 = vld [vmem:[%s11 + $0x20] sm:$0xff]
  %v3317 = vld [vmem:[%s11 + $0x28] sm:$0xff]
  %v3318 = vld [vmem:[%s11 + $0x30] sm:$0xff]
  %v3319 = vld [vmem:[%s11 + $0x38] sm:$0xff]
  %v3320 = vld [vmem:[%s11 + $0x40] sm:$0xff]
  %v3321 = vld [vmem:[%s11 + $0x48] sm:$0xff]
  %v3322 = vld [vmem:[%s11 + $0x50] sm:$0xff]
  %v3323 = vld [vmem:[%s11 + $0x58] sm:$0xff]
  %v3324 = vld [vmem:[%s11 + $0x60] sm:$0xff]
  %v3325 = vld [vmem:[%s11 + $0x68] sm:$0xff]
  %v3326 = vld [vmem:[%s11 + $0x70] sm:$0xff]
  %v3327 = vld [vmem:[%s11 + $0x78] sm:$0xff]
  %3328 = vmatpush.msra.mxu0 %v3327
  %3329 = vmatpush.msra.mxu0 %v3326
  %3330 = vmatpush.msra.mxu0 %v3325
  %3331 = vmatpush.msra.mxu0 %v3324
  %3332 = vmatpush.msra.mxu0 %v3323
  %3333 = vmatpush.msra.mxu0 %v3322
  %3334 = vmatpush.msra.mxu0 %v3321
  %3335 = vmatpush.msra.mxu0 %v3320
  %3336 = vmatpush.msra.mxu0 %v3319
  %3337 = vmatpush.msra.mxu0 %v3318
  %3338 = vmatpush.msra.mxu0 %v3317
  %3339 = vmatpush.msra.mxu0 %v3316
  %3340 = vmatpush.msra.mxu0 %v3315
  %3341 = vmatpush.msra.mxu0 %v3314
  %3342 = vmatpush.msra.mxu0 %v3313
  %3343 = vmatpush.msra.mxu0 %v3312
  %3344 = vmatmul.f32.gmra.mxu0 %v3295
  %v3345 = vpop.f32.mrf.mxu0
  %v3346 = vadd.f32 0.0, %v3345
  %3347 = vmatmul.f32.gmra.mxu0 %v3298
  %v3348 = vpop.f32.mrf.mxu0
  %v3349 = vadd.f32 0.0, %v3348
  %3350 = vmatmul.f32.gmra.mxu0 %v3301
  %v3351 = vpop.f32.mrf.mxu0
  %v3352 = vadd.f32 0.0, %v3351
  %3353 = vmatmul.f32.gmra.mxu0 %v3304
  %v3354 = vpop.f32.mrf.mxu0
  %v3355 = vadd.f32 0.0, %v3354
  %3356 = vmatmul.f32.gmra.mxu0 %v3307
  %v3357 = vpop.f32.mrf.mxu0
  %v3358 = vadd.f32 0.0, %v3357
  %3359 = vmatmul.f32.gmra.mxu0 %v3310
  %v3360 = vpop.f32.mrf.mxu0
  %v3361 = vadd.f32 0.0, %v3360
  %3362 = vdwg.mxu0
  %v3363 = vmax.f32 %v3346, 0.0
  %v3364 = vmax.f32 %v3349, 0.0
  %v3365 = vmax.f32 %v3352, 0.0
  %v3366 = vmax.f32 %v3355, 0.0
  %v3367 = vmax.f32 %v3358, 0.0
  %v3368 = vmax.f32 %v3361, 0.0
  %3369 = vrot.lane.b32.xlu0 %v3363, 5
  %v3370 = vpop.permute.xlu0 %3369
  %3371 = vrot.lane.b32.xlu0 %v3364, 5
  %v3372 = vpop.permute.xlu0 %3371
  %3373 = vrot.lane.b32.xlu0 %v3365, 5
  %v3374 = vpop.permute.xlu0 %3373
  %3375 = vrot.lane.b32.xlu0 %v3366, 5
  %v3376 = vpop.permute.xlu0 %3375
  %3377 = vrot.lane.b32.xlu0 %v3367, 5
  %v3378 = vpop.permute.xlu0 %3377
  %3379 = vrot.lane.b32.xlu0 %v3368, 5
  %v3380 = vpop.permute.xlu0 %3379
  %v3381 = vld [vmem:[%s7] sm:$0x1]
  %v3382 = vperm.slane %v3381, 0
  %v3383 = vmul.f32 %v3370, %v3382
  %v3384 = vmul.f32 %v3372, %v3382
  %v3385 = vmul.f32 %v3374, %v3382
  %v3386 = vmul.f32 %v3376, %v3382
  %v3387 = vmul.f32 %v3378, %v3382
  %v3388 = vmul.f32 %v3380, %v3382
  %3389 = vrot.lane.b32.xlu0 %v3363, 4
  %v3390 = vpop.permute.xlu0 %3389
  %3391 = vrot.lane.b32.xlu0 %v3364, 4
  %v3392 = vpop.permute.xlu0 %3391
  %3393 = vrot.lane.b32.xlu0 %v3365, 4
  %v3394 = vpop.permute.xlu0 %3393
  %3395 = vrot.lane.b32.xlu0 %v3366, 4
  %v3396 = vpop.permute.xlu0 %3395
  %3397 = vrot.lane.b32.xlu0 %v3367, 4
  %v3398 = vpop.permute.xlu0 %3397
  %3399 = vrot.lane.b32.xlu0 %v3368, 4
  %v3400 = vpop.permute.xlu0 %3399
  %v3401 = vld [vmem:[%s7 + $0x1] sm:$0x1]
  %v3402 = vperm.slane %v3401, 0
  %v3403 = vmul.f32 %v3390, %v3402
  %v3404 = vmul.f32 %v3392, %v3402
  %v3405 = vmul.f32 %v3394, %v3402
  %v3406 = vmul.f32 %v3396, %v3402
  %v3407 = vmul.f32 %v3398, %v3402
  %v3408 = vmul.f32 %v3400, %v3402
  %3409 = vrot.lane.b32.xlu0 %v3363, 3
  %v3410 = vpop.permute.xlu0 %3409
  %3411 = vrot.lane.b32.xlu0 %v3364, 3
  %v3412 = vpop.permute.xlu0 %3411
  %3413 = vrot.lane.b32.xlu0 %v3365, 3
  %v3414 = vpop.permute.xlu0 %3413
  %3415 = vrot.lane.b32.xlu0 %v3366, 3
  %v3416 = vpop.permute.xlu0 %3415
  %3417 = vrot.lane.b32.xlu0 %v3367, 3
  %v3418 = vpop.permute.xlu0 %3417
  %3419 = vrot.lane.b32.xlu0 %v3368, 3
  %v3420 = vpop.permute.xlu0 %3419
  %v3421 = vld [vmem:[%s7 + $0x2] sm:$0x1]
  %v3422 = vperm.slane %v3421, 0
  %v3423 = vmul.f32 %v3410, %v3422
  %v3424 = vmul.f32 %v3412, %v3422
  %v3425 = vmul.f32 %v3414, %v3422
  %v3426 = vmul.f32 %v3416, %v3422
  %v3427 = vmul.f32 %v3418, %v3422
  %v3428 = vmul.f32 %v3420, %v3422
  %3429 = vrot.lane.b32.xlu0 %v3363, 1
  %v3430 = vpop.permute.xlu0 %3429
  %3431 = vrot.lane.b32.xlu0 %v3364, 1
  %v3432 = vpop.permute.xlu0 %3431
  %3433 = vrot.lane.b32.xlu0 %v3365, 1
  %v3434 = vpop.permute.xlu0 %3433
  %3435 = vrot.lane.b32.xlu0 %v3366, 1
  %v3436 = vpop.permute.xlu0 %3435
  %3437 = vrot.lane.b32.xlu0 %v3367, 1
  %v3438 = vpop.permute.xlu0 %3437
  %3439 = vrot.lane.b32.xlu0 %v3368, 1
  %v3440 = vpop.permute.xlu0 %3439
  %v3441 = vld [vmem:[%s7 + $0x3] sm:$0x1]
  %v3442 = vperm.slane %v3441, 0
  %v3443 = vmul.f32 %v3430, %v3442
  %v3444 = vmul.f32 %v3432, %v3442
  %v3445 = vmul.f32 %v3434, %v3442
  %v3446 = vmul.f32 %v3436, %v3442
  %v3447 = vmul.f32 %v3438, %v3442
  %v3448 = vmul.f32 %v3440, %v3442
  %v3449 = vld [vmem:[%s7 + $0x4] sm:$0x1]
  %v3450 = vperm.slane %v3449, 0
  %v3451 = vmul.f32 %v3363, %v3450
  %v3452 = vmul.f32 %v3364, %v3450
  %v3453 = vmul.f32 %v3365, %v3450
  %v3454 = vmul.f32 %v3366, %v3450
  %v3455 = vmul.f32 %v3367, %v3450
  %v3456 = vmul.f32 %v3368, %v3450
  %3457 = vrot.lane.b32.xlu0 %v3363, 127
  %v3458 = vpop.permute.xlu0 %3457
  %3459 = vrot.lane.b32.xlu0 %v3364, 127
  %v3460 = vpop.permute.xlu0 %3459
  %3461 = vrot.lane.b32.xlu0 %v3365, 127
  %v3462 = vpop.permute.xlu0 %3461
  %3463 = vrot.lane.b32.xlu0 %v3366, 127
  %v3464 = vpop.permute.xlu0 %3463
  %3465 = vrot.lane.b32.xlu0 %v3367, 127
  %v3466 = vpop.permute.xlu0 %3465
  %3467 = vrot.lane.b32.xlu0 %v3368, 127
  %v3468 = vpop.permute.xlu0 %3467
  %v3469 = vld [vmem:[%s7 + $0x5] sm:$0x1]
  %v3470 = vperm.slane %v3469, 0
  %v3471 = vmul.f32 %v3458, %v3470
  %v3472 = vmul.f32 %v3460, %v3470
  %v3473 = vmul.f32 %v3462, %v3470
  %v3474 = vmul.f32 %v3464, %v3470
  %v3475 = vmul.f32 %v3466, %v3470
  %v3476 = vmul.f32 %v3468, %v3470
  %3477 = vrot.lane.b32.xlu0 %v3363, 125
  %v3478 = vpop.permute.xlu0 %3477
  %3479 = vrot.lane.b32.xlu0 %v3364, 125
  %v3480 = vpop.permute.xlu0 %3479
  %3481 = vrot.lane.b32.xlu0 %v3365, 125
  %v3482 = vpop.permute.xlu0 %3481
  %3483 = vrot.lane.b32.xlu0 %v3366, 125
  %v3484 = vpop.permute.xlu0 %3483
  %3485 = vrot.lane.b32.xlu0 %v3367, 125
  %v3486 = vpop.permute.xlu0 %3485
  %3487 = vrot.lane.b32.xlu0 %v3368, 125
  %v3488 = vpop.permute.xlu0 %3487
  %v3489 = vld [vmem:[%s7 + $0x6] sm:$0x1]
  %v3490 = vperm.slane %v3489, 0
  %v3491 = vmul.f32 %v3478, %v3490
  %v3492 = vmul.f32 %v3480, %v3490
  %v3493 = vmul.f32 %v3482, %v3490
  %v3494 = vmul.f32 %v3484, %v3490
  %v3495 = vmul.f32 %v3486, %v3490
  %v3496 = vmul.f32 %v3488, %v3490
  %3497 = vrot.lane.b32.xlu0 %v3363, 124
  %v3498 = vpop.permute.xlu0 %3497
  %3499 = vrot.lane.b32.xlu0 %v3364, 124
  %v3500 = vpop.permute.xlu0 %3499
  %3501 = vrot.lane.b32.xlu0 %v3365, 124
  %v3502 = vpop.permute.xlu0 %3501
  %3503 = vrot.lane.b32.xlu0 %v3366, 124
  %v3504 = vpop.permute.xlu0 %3503
  %3505 = vrot.lane.b32.xlu0 %v3367, 124
  %v3506 = vpop.permute.xlu0 %3505
  %3507 = vrot.lane.b32.xlu0 %v3368, 124
  %v3508 = vpop.permute.xlu0 %3507
  %v3509 = vld [vmem:[%s7 + $0x7] sm:$0x1]
  %v3510 = vperm.slane %v3509, 0
  %v3511 = vmul.f32 %v3498, %v3510
  %v3512 = vmul.f32 %v3500, %v3510
  %v3513 = vmul.f32 %v3502, %v3510
  %v3514 = vmul.f32 %v3504, %v3510
  %v3515 = vmul.f32 %v3506, %v3510
  %v3516 = vmul.f32 %v3508, %v3510
  %3517 = vrot.lane.b32.xlu0 %v3363, 123
  %v3518 = vpop.permute.xlu0 %3517
  %3519 = vrot.lane.b32.xlu0 %v3364, 123
  %v3520 = vpop.permute.xlu0 %3519
  %3521 = vrot.lane.b32.xlu0 %v3365, 123
  %v3522 = vpop.permute.xlu0 %3521
  %3523 = vrot.lane.b32.xlu0 %v3366, 123
  %v3524 = vpop.permute.xlu0 %3523
  %3525 = vrot.lane.b32.xlu0 %v3367, 123
  %v3526 = vpop.permute.xlu0 %3525
  %3527 = vrot.lane.b32.xlu0 %v3368, 123
  %v3528 = vpop.permute.xlu0 %3527
  %v3529 = vld [vmem:[%s7 + $0x8] sm:$0x1]
  %v3530 = vperm.slane %v3529, 0
  %v3531 = vmul.f32 %v3518, %v3530
  %v3532 = vmul.f32 %v3520, %v3530
  %v3533 = vmul.f32 %v3522, %v3530
  %v3534 = vmul.f32 %v3524, %v3530
  %v3535 = vmul.f32 %v3526, %v3530
  %v3536 = vmul.f32 %v3528, %v3530
  %v3537 = vld [vmem:[%s45] sm:$0xff]
  %v3538 = vld [vmem:[%s45 + $0x8] sm:$0xff]
  %v3539 = vld [vmem:[%s45 + $0x10] sm:$0xff]
  %v3540 = vld [vmem:[%s45 + $0x18] sm:$0xff]
  %v3541 = vld [vmem:[%s45 + $0x20] sm:$0xff]
  %v3542 = vld [vmem:[%s45 + $0x28] sm:$0xff]
  %v3543 = vld [vmem:[%s45 + $0x30] sm:$0xff]
  %v3544 = vld [vmem:[%s45 + $0x38] sm:$0xff]
  %v3545 = vld [vmem:[%s45 + $0x40] sm:$0xff]
  %v3546 = vld [vmem:[%s45 + $0x48] sm:$0xff]
  %v3547 = vld [vmem:[%s45 + $0x50] sm:$0xff]
  %v3548 = vld [vmem:[%s45 + $0x58] sm:$0xff]
  %v3549 = vld [vmem:[%s45 + $0x60] sm:$0xff]
  %v3550 = vld [vmem:[%s45 + $0x68] sm:$0xff]
  %v3551 = vld [vmem:[%s45 + $0x70] sm:$0xff]
  %v3552 = vld [vmem:[%s45 + $0x78] sm:$0xff]
  %v3553 = vld [vmem:[%s45 + $0x80] sm:$0xff]
  %v3554 = vld [vmem:[%s45 + $0x88] sm:$0xff]
  %v3555 = vld [vmem:[%s45 + $0x90] sm:$0xff]
  %v3556 = vld [vmem:[%s45 + $0x98] sm:$0xff]
  %v3557 = vld [vmem:[%s45 + $0xa0] sm:$0xff]
  %v3558 = vld [vmem:[%s45 + $0xa8] sm:$0xff]
  %v3559 = vld [vmem:[%s45 + $0xb0] sm:$0xff]
  %v3560 = vld [vmem:[%s45 + $0xb8] sm:$0xff]
  %v3561 = vld [vmem:[%s47] sm:$0xff]
  %v3562 = vld [vmem:[%s47 + $0x8] sm:$0xff]
  %v3563 = vld [vmem:[%s47 + $0x10] sm:$0xff]
  %v3564 = vld [vmem:[%s47 + $0x18] sm:$0xff]
  %v3565 = vld [vmem:[%s47 + $0x20] sm:$0xff]
  %v3566 = vld [vmem:[%s47 + $0x28] sm:$0xff]
  %3568 = vset.pattern.permute.xlu0 0
  %3569 = vperm.xlu0 %3568, %v3561
  %v3570 = vpop.permute.xlu0 %3569
  %3573 = vset.pattern.permute.xlu0 0
  %3574 = vperm.xlu0 %3573, %v3562
  %v3575 = vpop.permute.xlu0 %3574
  %3578 = vset.pattern.permute.xlu0 0
  %3579 = vperm.xlu0 %3578, %v3563
  %v3580 = vpop.permute.xlu0 %3579
  %3583 = vset.pattern.permute.xlu0 0
  %3584 = vperm.xlu0 %3583, %v3564
  %v3585 = vpop.permute.xlu0 %3584
  %3588 = vset.pattern.permute.xlu0 0
  %3589 = vperm.xlu0 %3588, %v3565
  %v3590 = vpop.permute.xlu0 %3589
  %3593 = vset.pattern.permute.xlu0 0
  %3594 = vperm.xlu0 %3593, %v3566
  %v3595 = vpop.permute.xlu0 %3594
  %vm3597 = vcmask 392192
  %v3599 = vsel %vm3597, %v3540, 0
  %v3602 = vsel %vm3597, %v3544, 0
  %v3605 = vsel %vm3597, %v3548, 0
  %v3608 = vsel %vm3597, %v3552, 0
  %v3611 = vsel %vm3597, %v3556, 0
  %v3614 = vsel %vm3597, %v3560, 0
  %3616 = vmatpush.msra.mxu0 %v3426
  %3617 = vmatpush.msra.mxu0 %v3425
  %3618 = vmatpush.msra.mxu0 %v3424
  %3619 = vmatpush.msra.mxu0 %v3423
  %3620 = vmatpush.msra.mxu0 %v3408
  %3621 = vmatpush.msra.mxu0 %v3407
  %3622 = vmatpush.msra.mxu0 %v3406
  %3623 = vmatpush.msra.mxu0 %v3405
  %3624 = vmatpush.msra.mxu0 %v3404
  %3625 = vmatpush.msra.mxu0 %v3403
  %3626 = vmatpush.msra.mxu0 %v3388
  %3627 = vmatpush.msra.mxu0 %v3387
  %3628 = vmatpush.msra.mxu0 %v3386
  %3629 = vmatpush.msra.mxu0 %v3385
  %3630 = vmatpush.msra.mxu0 %v3384
  %3631 = vmatpush.msra.mxu0 %v3383
  %3632 = vmatmul.f32.gmra.mxu0 %v3537
  %v3633 = vpop.f32.mrf.mxu0
  %v3634 = vadd.f32 %v3570, %v3633
  %3635 = vmatmul.f32.gmra.mxu0 %v3541
  %v3636 = vpop.f32.mrf.mxu0
  %v3637 = vadd.f32 %v3575, %v3636
  %3638 = vmatmul.f32.gmra.mxu0 %v3545
  %v3639 = vpop.f32.mrf.mxu0
  %v3640 = vadd.f32 %v3580, %v3639
  %3641 = vmatmul.f32.gmra.mxu0 %v3549
  %v3642 = vpop.f32.mrf.mxu0
  %v3643 = vadd.f32 %v3585, %v3642
  %3644 = vmatmul.f32.gmra.mxu0 %v3553
  %v3645 = vpop.f32.mrf.mxu0
  %v3646 = vadd.f32 %v3590, %v3645
  %3647 = vmatmul.f32.gmra.mxu0 %v3557
  %v3648 = vpop.f32.mrf.mxu0
  %v3649 = vadd.f32 %v3595, %v3648
  %3650 = vdwg.mxu0
  %3651 = vmatpush.msra.mxu0 %v3472
  %3652 = vmatpush.msra.mxu0 %v3471
  %3653 = vmatpush.msra.mxu0 %v3456
  %3654 = vmatpush.msra.mxu0 %v3455
  %3655 = vmatpush.msra.mxu0 %v3454
  %3656 = vmatpush.msra.mxu0 %v3453
  %3657 = vmatpush.msra.mxu0 %v3452
  %3658 = vmatpush.msra.mxu0 %v3451
  %3659 = vmatpush.msra.mxu0 %v3448
  %3660 = vmatpush.msra.mxu0 %v3447
  %3661 = vmatpush.msra.mxu0 %v3446
  %3662 = vmatpush.msra.mxu0 %v3445
  %3663 = vmatpush.msra.mxu0 %v3444
  %3664 = vmatpush.msra.mxu0 %v3443
  %3665 = vmatpush.msra.mxu0 %v3428
  %3666 = vmatpush.msra.mxu0 %v3427
  %3667 = vmatmul.f32.gmra.mxu0 %v3538
  %v3668 = vpop.f32.mrf.mxu0
  %v3669 = vadd.f32 %v3634, %v3668
  %3670 = vmatmul.f32.gmra.mxu0 %v3542
  %v3671 = vpop.f32.mrf.mxu0
  %v3672 = vadd.f32 %v3637, %v3671
  %3673 = vmatmul.f32.gmra.mxu0 %v3546
  %v3674 = vpop.f32.mrf.mxu0
  %v3675 = vadd.f32 %v3640, %v3674
  %3676 = vmatmul.f32.gmra.mxu0 %v3550
  %v3677 = vpop.f32.mrf.mxu0
  %v3678 = vadd.f32 %v3643, %v3677
  %3679 = vmatmul.f32.gmra.mxu0 %v3554
  %v3680 = vpop.f32.mrf.mxu0
  %v3681 = vadd.f32 %v3646, %v3680
  %3682 = vmatmul.f32.gmra.mxu0 %v3558
  %v3683 = vpop.f32.mrf.mxu0
  %v3684 = vadd.f32 %v3649, %v3683
  %3685 = vdwg.mxu0
  %3686 = vmatpush.msra.mxu0 %v3516
  %3687 = vmatpush.msra.mxu0 %v3515
  %3688 = vmatpush.msra.mxu0 %v3514
  %3689 = vmatpush.msra.mxu0 %v3513
  %3690 = vmatpush.msra.mxu0 %v3512
  %3691 = vmatpush.msra.mxu0 %v3511
  %3692 = vmatpush.msra.mxu0 %v3496
  %3693 = vmatpush.msra.mxu0 %v3495
  %3694 = vmatpush.msra.mxu0 %v3494
  %3695 = vmatpush.msra.mxu0 %v3493
  %3696 = vmatpush.msra.mxu0 %v3492
  %3697 = vmatpush.msra.mxu0 %v3491
  %3698 = vmatpush.msra.mxu0 %v3476
  %3699 = vmatpush.msra.mxu0 %v3475
  %3700 = vmatpush.msra.mxu0 %v3474
  %3701 = vmatpush.msra.mxu0 %v3473
  %3702 = vmatmul.f32.gmra.mxu0 %v3539
  %v3703 = vpop.f32.mrf.mxu0
  %v3704 = vadd.f32 %v3669, %v3703
  %3705 = vmatmul.f32.gmra.mxu0 %v3543
  %v3706 = vpop.f32.mrf.mxu0
  %v3707 = vadd.f32 %v3672, %v3706
  %3708 = vmatmul.f32.gmra.mxu0 %v3547
  %v3709 = vpop.f32.mrf.mxu0
  %v3710 = vadd.f32 %v3675, %v3709
  %3711 = vmatmul.f32.gmra.mxu0 %v3551
  %v3712 = vpop.f32.mrf.mxu0
  %v3713 = vadd.f32 %v3678, %v3712
  %3714 = vmatmul.f32.gmra.mxu0 %v3555
  %v3715 = vpop.f32.mrf.mxu0
  %v3716 = vadd.f32 %v3681, %v3715
  %3717 = vmatmul.f32.gmra.mxu0 %v3559
  %v3718 = vpop.f32.mrf.mxu0
  %v3719 = vadd.f32 %v3684, %v3718
  %3720 = vdwg.mxu0
  %3721 = vmatpush.msra.mxu0 0.0
  %3722 = vmatpush.msra.mxu0 0.0
  %3723 = vmatpush.msra.mxu0 0.0
  %3724 = vmatpush.msra.mxu0 0.0
  %3725 = vmatpush.msra.mxu0 0.0
  %3726 = vmatpush.msra.mxu0 0.0
  %3727 = vmatpush.msra.mxu0 0.0
  %3728 = vmatpush.msra.mxu0 0.0
  %3729 = vmatpush.msra.mxu0 0.0
  %3730 = vmatpush.msra.mxu0 0.0
  %3731 = vmatpush.msra.mxu0 %v3536
  %3732 = vmatpush.msra.mxu0 %v3535
  %3733 = vmatpush.msra.mxu0 %v3534
  %3734 = vmatpush.msra.mxu0 %v3533
  %3735 = vmatpush.msra.mxu0 %v3532
  %3736 = vmatpush.msra.mxu0 %v3531
  %3737 = vmatmul.f32.gmra.mxu0 %v3599
  %v3738 = vpop.f32.mrf.mxu0
  %v3739 = vadd.f32 %v3704, %v3738
  %3740 = vmatmul.f32.gmra.mxu0 %v3602
  %v3741 = vpop.f32.mrf.mxu0
  %v3742 = vadd.f32 %v3707, %v3741
  %3743 = vmatmul.f32.gmra.mxu0 %v3605
  %v3744 = vpop.f32.mrf.mxu0
  %v3745 = vadd.f32 %v3710, %v3744
  %3746 = vmatmul.f32.gmra.mxu0 %v3608
  %v3747 = vpop.f32.mrf.mxu0
  %v3748 = vadd.f32 %v3713, %v3747
  %3749 = vmatmul.f32.gmra.mxu0 %v3611
  %v3750 = vpop.f32.mrf.mxu0
  %v3751 = vadd.f32 %v3716, %v3750
  %3752 = vmatmul.f32.gmra.mxu0 %v3614
  %v3753 = vpop.f32.mrf.mxu0
  %v3754 = vadd.f32 %v3719, %v3753
  %3755 = vdwg.mxu0
  %v3756 = vld [vmem:[%s49] sm:$0xff]
  %v3757 = vld [vmem:[%s49 + $0x8] sm:$0xff]
  %v3758 = vld [vmem:[%s49 + $0x10] sm:$0xff]
  %v3759 = vld [vmem:[%s49 + $0x18] sm:$0xff]
  %v3760 = vld [vmem:[%s49 + $0x20] sm:$0xff]
  %v3761 = vld [vmem:[%s49 + $0x28] sm:$0xff]
  %3763 = vset.pattern.permute.xlu0 0
  %3764 = vperm.xlu0 %3763, %v3756
  %v3765 = vpop.permute.xlu0 %3764
  %3768 = vset.pattern.permute.xlu0 0
  %3769 = vperm.xlu0 %3768, %v3757
  %v3770 = vpop.permute.xlu0 %3769
  %3773 = vset.pattern.permute.xlu0 0
  %3774 = vperm.xlu0 %3773, %v3758
  %v3775 = vpop.permute.xlu0 %3774
  %3778 = vset.pattern.permute.xlu0 0
  %3779 = vperm.xlu0 %3778, %v3759
  %v3780 = vpop.permute.xlu0 %3779
  %3783 = vset.pattern.permute.xlu0 0
  %3784 = vperm.xlu0 %3783, %v3760
  %v3785 = vpop.permute.xlu0 %3784
  %3788 = vset.pattern.permute.xlu0 0
  %3789 = vperm.xlu0 %3788, %v3761
  %v3790 = vpop.permute.xlu0 %3789
  %v3792 = vmul.f32 %v3739, %v3765
  %v3793 = vmul.f32 %v3742, %v3770
  %v3794 = vmul.f32 %v3745, %v3775
  %v3795 = vmul.f32 %v3748, %v3780
  %v3796 = vmul.f32 %v3751, %v3785
  %v3797 = vmul.f32 %v3754, %v3790
  %v3798 = vld [vmem:[%s51] sm:$0xff]
  %v3799 = vld [vmem:[%s51 + $0x8] sm:$0xff]
  %v3800 = vld [vmem:[%s51 + $0x10] sm:$0xff]
  %v3801 = vld [vmem:[%s51 + $0x18] sm:$0xff]
  %v3802 = vld [vmem:[%s51 + $0x20] sm:$0xff]
  %v3803 = vld [vmem:[%s51 + $0x28] sm:$0xff]
  %3805 = vset.pattern.permute.xlu0 0
  %3806 = vperm.xlu0 %3805, %v3798
  %v3807 = vpop.permute.xlu0 %3806
  %3810 = vset.pattern.permute.xlu0 0
  %3811 = vperm.xlu0 %3810, %v3799
  %v3812 = vpop.permute.xlu0 %3811
  %3815 = vset.pattern.permute.xlu0 0
  %3816 = vperm.xlu0 %3815, %v3800
  %v3817 = vpop.permute.xlu0 %3816
  %3820 = vset.pattern.permute.xlu0 0
  %3821 = vperm.xlu0 %3820, %v3801
  %v3822 = vpop.permute.xlu0 %3821
  %3825 = vset.pattern.permute.xlu0 0
  %3826 = vperm.xlu0 %3825, %v3802
  %v3827 = vpop.permute.xlu0 %3826
  %3830 = vset.pattern.permute.xlu0 0
  %3831 = vperm.xlu0 %3830, %v3803
  %v3832 = vpop.permute.xlu0 %3831
  %v3834 = vadd.f32 %v3792, %v3807
  %v3835 = vadd.f32 %v3793, %v3812
  %v3836 = vadd.f32 %v3794, %v3817
  %v3837 = vadd.f32 %v3795, %v3822
  %v3838 = vadd.f32 %v3796, %v3827
  %v3839 = vadd.f32 %v3797, %v3832
  %v3840 = vadd.f32 %v3346, %v3834
  %v3841 = vadd.f32 %v3349, %v3835
  %v3842 = vadd.f32 %v3352, %v3836
  %v3843 = vadd.f32 %v3355, %v3837
  %v3844 = vadd.f32 %v3358, %v3838
  %v3845 = vadd.f32 %v3361, %v3839
  %v3846 = vld [vmem:[%s13] sm:$0xff]
  %v3847 = vld [vmem:[%s13 + $0x8] sm:$0xff]
  %v3848 = vld [vmem:[%s13 + $0x10] sm:$0xff]
  %v3849 = vld [vmem:[%s13 + $0x18] sm:$0xff]
  %v3850 = vld [vmem:[%s13 + $0x20] sm:$0xff]
  %v3851 = vld [vmem:[%s13 + $0x28] sm:$0xff]
  %v3852 = vld [vmem:[%s13 + $0x30] sm:$0xff]
  %v3853 = vld [vmem:[%s13 + $0x38] sm:$0xff]
  %v3854 = vld [vmem:[%s13 + $0x40] sm:$0xff]
  %v3855 = vld [vmem:[%s13 + $0x48] sm:$0xff]
  %v3856 = vld [vmem:[%s13 + $0x50] sm:$0xff]
  %v3857 = vld [vmem:[%s13 + $0x58] sm:$0xff]
  %v3858 = vld [vmem:[%s13 + $0x60] sm:$0xff]
  %v3859 = vld [vmem:[%s13 + $0x68] sm:$0xff]
  %v3860 = vld [vmem:[%s13 + $0x70] sm:$0xff]
  %v3861 = vld [vmem:[%s13 + $0x78] sm:$0xff]
  %3862 = vmatpush.msra.mxu0 %v3861
  %3863 = vmatpush.msra.mxu0 %v3860
  %3864 = vmatpush.msra.mxu0 %v3859
  %3865 = vmatpush.msra.mxu0 %v3858
  %3866 = vmatpush.msra.mxu0 %v3857
  %3867 = vmatpush.msra.mxu0 %v3856
  %3868 = vmatpush.msra.mxu0 %v3855
  %3869 = vmatpush.msra.mxu0 %v3854
  %3870 = vmatpush.msra.mxu0 %v3853
  %3871 = vmatpush.msra.mxu0 %v3852
  %3872 = vmatpush.msra.mxu0 %v3851
  %3873 = vmatpush.msra.mxu0 %v3850
  %3874 = vmatpush.msra.mxu0 %v3849
  %3875 = vmatpush.msra.mxu0 %v3848
  %3876 = vmatpush.msra.mxu0 %v3847
  %3877 = vmatpush.msra.mxu0 %v3846
  %3878 = vmatmul.f32.gmra.mxu0 %v3840
  %v3879 = vpop.f32.mrf.mxu0
  %v3880 = vadd.f32 0.0, %v3879
  %3881 = vmatmul.f32.gmra.mxu0 %v3841
  %v3882 = vpop.f32.mrf.mxu0
  %v3883 = vadd.f32 0.0, %v3882
  %3884 = vmatmul.f32.gmra.mxu0 %v3842
  %v3885 = vpop.f32.mrf.mxu0
  %v3886 = vadd.f32 0.0, %v3885
  %3887 = vmatmul.f32.gmra.mxu0 %v3843
  %v3888 = vpop.f32.mrf.mxu0
  %v3889 = vadd.f32 0.0, %v3888
  %3890 = vmatmul.f32.gmra.mxu0 %v3844
  %v3891 = vpop.f32.mrf.mxu0
  %v3892 = vadd.f32 0.0, %v3891
  %3893 = vmatmul.f32.gmra.mxu0 %v3845
  %v3894 = vpop.f32.mrf.mxu0
  %v3895 = vadd.f32 0.0, %v3894
  %3896 = vdwg.mxu0
  %3897 = vrot.lane.b32.xlu0 %v3880, 9
  %v3898 = vpop.permute.xlu0 %3897
  %3899 = vrot.lane.b32.xlu0 %v3883, 9
  %v3900 = vpop.permute.xlu0 %3899
  %3901 = vrot.lane.b32.xlu0 %v3886, 9
  %v3902 = vpop.permute.xlu0 %3901
  %3903 = vrot.lane.b32.xlu0 %v3889, 9
  %v3904 = vpop.permute.xlu0 %3903
  %3905 = vrot.lane.b32.xlu0 %v3892, 9
  %v3906 = vpop.permute.xlu0 %3905
  %3907 = vrot.lane.b32.xlu0 %v3895, 9
  %v3908 = vpop.permute.xlu0 %3907
  %v3909 = vmul.f32 %v3898, %v2730
  %v3910 = vmul.f32 %v3900, %v2730
  %v3911 = vmul.f32 %v3902, %v2730
  %v3912 = vmul.f32 %v3904, %v2730
  %v3913 = vmul.f32 %v3906, %v2730
  %v3914 = vmul.f32 %v3908, %v2730
  %3915 = vrot.lane.b32.xlu0 %v3880, 8
  %v3916 = vpop.permute.xlu0 %3915
  %3917 = vrot.lane.b32.xlu0 %v3883, 8
  %v3918 = vpop.permute.xlu0 %3917
  %3919 = vrot.lane.b32.xlu0 %v3886, 8
  %v3920 = vpop.permute.xlu0 %3919
  %3921 = vrot.lane.b32.xlu0 %v3889, 8
  %v3922 = vpop.permute.xlu0 %3921
  %3923 = vrot.lane.b32.xlu0 %v3892, 8
  %v3924 = vpop.permute.xlu0 %3923
  %3925 = vrot.lane.b32.xlu0 %v3895, 8
  %v3926 = vpop.permute.xlu0 %3925
  %v3927 = vmul.f32 %v3916, %v2744
  %v3928 = vmul.f32 %v3918, %v2744
  %v3929 = vmul.f32 %v3920, %v2744
  %v3930 = vmul.f32 %v3922, %v2744
  %v3931 = vmul.f32 %v3924, %v2744
  %v3932 = vmul.f32 %v3926, %v2744
  %3933 = vrot.lane.b32.xlu0 %v3880, 7
  %v3934 = vpop.permute.xlu0 %3933
  %3935 = vrot.lane.b32.xlu0 %v3883, 7
  %v3936 = vpop.permute.xlu0 %3935
  %3937 = vrot.lane.b32.xlu0 %v3886, 7
  %v3938 = vpop.permute.xlu0 %3937
  %3939 = vrot.lane.b32.xlu0 %v3889, 7
  %v3940 = vpop.permute.xlu0 %3939
  %3941 = vrot.lane.b32.xlu0 %v3892, 7
  %v3942 = vpop.permute.xlu0 %3941
  %3943 = vrot.lane.b32.xlu0 %v3895, 7
  %v3944 = vpop.permute.xlu0 %3943
  %v3945 = vmul.f32 %v3934, %v2758
  %v3946 = vmul.f32 %v3936, %v2758
  %v3947 = vmul.f32 %v3938, %v2758
  %v3948 = vmul.f32 %v3940, %v2758
  %v3949 = vmul.f32 %v3942, %v2758
  %v3950 = vmul.f32 %v3944, %v2758
  %3951 = vrot.lane.b32.xlu0 %v3880, 1
  %v3952 = vpop.permute.xlu0 %3951
  %3953 = vrot.lane.b32.xlu0 %v3883, 1
  %v3954 = vpop.permute.xlu0 %3953
  %3955 = vrot.lane.b32.xlu0 %v3886, 1
  %v3956 = vpop.permute.xlu0 %3955
  %3957 = vrot.lane.b32.xlu0 %v3889, 1
  %v3958 = vpop.permute.xlu0 %3957
  %3959 = vrot.lane.b32.xlu0 %v3892, 1
  %v3960 = vpop.permute.xlu0 %3959
  %3961 = vrot.lane.b32.xlu0 %v3895, 1
  %v3962 = vpop.permute.xlu0 %3961
  %v3963 = vmul.f32 %v3952, %v2772
  %v3964 = vmul.f32 %v3954, %v2772
  %v3965 = vmul.f32 %v3956, %v2772
  %v3966 = vmul.f32 %v3958, %v2772
  %v3967 = vmul.f32 %v3960, %v2772
  %v3968 = vmul.f32 %v3962, %v2772
  %v3969 = vmul.f32 %v3880, %v2778
  %v3970 = vmul.f32 %v3883, %v2778
  %v3971 = vmul.f32 %v3886, %v2778
  %v3972 = vmul.f32 %v3889, %v2778
  %v3973 = vmul.f32 %v3892, %v2778
  %v3974 = vmul.f32 %v3895, %v2778
  %3975 = vrot.lane.b32.xlu0 %v3880, 127
  %v3976 = vpop.permute.xlu0 %3975
  %3977 = vrot.lane.b32.xlu0 %v3883, 127
  %v3978 = vpop.permute.xlu0 %3977
  %3979 = vrot.lane.b32.xlu0 %v3886, 127
  %v3980 = vpop.permute.xlu0 %3979
  %3981 = vrot.lane.b32.xlu0 %v3889, 127
  %v3982 = vpop.permute.xlu0 %3981
  %3983 = vrot.lane.b32.xlu0 %v3892, 127
  %v3984 = vpop.permute.xlu0 %3983
  %3985 = vrot.lane.b32.xlu0 %v3895, 127
  %v3986 = vpop.permute.xlu0 %3985
  %v3987 = vmul.f32 %v3976, %v2792
  %v3988 = vmul.f32 %v3978, %v2792
  %v3989 = vmul.f32 %v3980, %v2792
  %v3990 = vmul.f32 %v3982, %v2792
  %v3991 = vmul.f32 %v3984, %v2792
  %v3992 = vmul.f32 %v3986, %v2792
  %3993 = vrot.lane.b32.xlu0 %v3880, 121
  %v3994 = vpop.permute.xlu0 %3993
  %3995 = vrot.lane.b32.xlu0 %v3883, 121
  %v3996 = vpop.permute.xlu0 %3995
  %3997 = vrot.lane.b32.xlu0 %v3886, 121
  %v3998 = vpop.permute.xlu0 %3997
  %3999 = vrot.lane.b32.xlu0 %v3889, 121
  %v4000 = vpop.permute.xlu0 %3999
  %4001 = vrot.lane.b32.xlu0 %v3892, 121
  %v4002 = vpop.permute.xlu0 %4001
  %4003 = vrot.lane.b32.xlu0 %v3895, 121
  %v4004 = vpop.permute.xlu0 %4003
  %v4005 = vmul.f32 %v3994, %v2806
  %v4006 = vmul.f32 %v3996, %v2806
  %v4007 = vmul.f32 %v3998, %v2806
  %v4008 = vmul.f32 %v4000, %v2806
  %v4009 = vmul.f32 %v4002, %v2806
  %v4010 = vmul.f32 %v4004, %v2806
  %4011 = vrot.lane.b32.xlu0 %v3880, 120
  %v4012 = vpop.permute.xlu0 %4011
  %4013 = vrot.lane.b32.xlu0 %v3883, 120
  %v4014 = vpop.permute.xlu0 %4013
  %4015 = vrot.lane.b32.xlu0 %v3886, 120
  %v4016 = vpop.permute.xlu0 %4015
  %4017 = vrot.lane.b32.xlu0 %v3889, 120
  %v4018 = vpop.permute.xlu0 %4017
  %4019 = vrot.lane.b32.xlu0 %v3892, 120
  %v4020 = vpop.permute.xlu0 %4019
  %4021 = vrot.lane.b32.xlu0 %v3895, 120
  %v4022 = vpop.permute.xlu0 %4021
  %v4023 = vmul.f32 %v4012, %v2820
  %v4024 = vmul.f32 %v4014, %v2820
  %v4025 = vmul.f32 %v4016, %v2820
  %v4026 = vmul.f32 %v4018, %v2820
  %v4027 = vmul.f32 %v4020, %v2820
  %v4028 = vmul.f32 %v4022, %v2820
  %4029 = vrot.lane.b32.xlu0 %v3880, 119
  %v4030 = vpop.permute.xlu0 %4029
  %4031 = vrot.lane.b32.xlu0 %v3883, 119
  %v4032 = vpop.permute.xlu0 %4031
  %4033 = vrot.lane.b32.xlu0 %v3886, 119
  %v4034 = vpop.permute.xlu0 %4033
  %4035 = vrot.lane.b32.xlu0 %v3889, 119
  %v4036 = vpop.permute.xlu0 %4035
  %4037 = vrot.lane.b32.xlu0 %v3892, 119
  %v4038 = vpop.permute.xlu0 %4037
  %4039 = vrot.lane.b32.xlu0 %v3895, 119
  %v4040 = vpop.permute.xlu0 %4039
  %v4041 = vmul.f32 %v4030, %v2834
  %v4042 = vmul.f32 %v4032, %v2834
  %v4043 = vmul.f32 %v4034, %v2834
  %v4044 = vmul.f32 %v4036, %v2834
  %v4045 = vmul.f32 %v4038, %v2834
  %v4046 = vmul.f32 %v4040, %v2834
  %v4047 = vld [vmem:[%s53] sm:$0xff]
  %v4048 = vld [vmem:[%s53 + $0x8] sm:$0xff]
  %v4049 = vld [vmem:[%s53 + $0x10] sm:$0xff]
  %v4050 = vld [vmem:[%s53 + $0x18] sm:$0xff]
  %v4051 = vld [vmem:[%s53 + $0x20] sm:$0xff]
  %v4052 = vld [vmem:[%s53 + $0x28] sm:$0xff]
  %v4053 = vld [vmem:[%s53 + $0x30] sm:$0xff]
  %v4054 = vld [vmem:[%s53 + $0x38] sm:$0xff]
  %v4055 = vld [vmem:[%s53 + $0x40] sm:$0xff]
  %v4056 = vld [vmem:[%s53 + $0x48] sm:$0xff]
  %v4057 = vld [vmem:[%s53 + $0x50] sm:$0xff]
  %v4058 = vld [vmem:[%s53 + $0x58] sm:$0xff]
  %v4059 = vld [vmem:[%s53 + $0x60] sm:$0xff]
  %v4060 = vld [vmem:[%s53 + $0x68] sm:$0xff]
  %v4061 = vld [vmem:[%s53 + $0x70] sm:$0xff]
  %v4062 = vld [vmem:[%s53 + $0x78] sm:$0xff]
  %v4063 = vld [vmem:[%s55] sm:$0xff]
  %v4064 = vld [vmem:[%s55 + $0x8] sm:$0xff]
  %v4065 = vld [vmem:[%s55 + $0x10] sm:$0xff]
  %v4066 = vld [vmem:[%s55 + $0x18] sm:$0xff]
  %4068 = vset.pattern.permute.xlu0 0
  %4069 = vperm.xlu0 %4068, %v4063
  %v4070 = vpop.permute.xlu0 %4069
  %4073 = vset.pattern.permute.xlu0 0
  %4074 = vperm.xlu0 %4073, %v4064
  %v4075 = vpop.permute.xlu0 %4074
  %4078 = vset.pattern.permute.xlu0 0
  %4079 = vperm.xlu0 %4078, %v4065
  %v4080 = vpop.permute.xlu0 %4079
  %4083 = vset.pattern.permute.xlu0 0
  %4084 = vperm.xlu0 %4083, %v4066
  %v4085 = vpop.permute.xlu0 %4084
  %v4088 = vsel %vm3597, %v4050, 0
  %v4091 = vsel %vm3597, %v4054, 0
  %v4094 = vsel %vm3597, %v4058, 0
  %v4097 = vsel %vm3597, %v4062, 0
  %4099 = vmatpush.msra.mxu0 %v3948
  %4100 = vmatpush.msra.mxu0 %v3947
  %4101 = vmatpush.msra.mxu0 %v3946
  %4102 = vmatpush.msra.mxu0 %v3945
  %4103 = vmatpush.msra.mxu0 %v3932
  %4104 = vmatpush.msra.mxu0 %v3931
  %4105 = vmatpush.msra.mxu0 %v3930
  %4106 = vmatpush.msra.mxu0 %v3929
  %4107 = vmatpush.msra.mxu0 %v3928
  %4108 = vmatpush.msra.mxu0 %v3927
  %4109 = vmatpush.msra.mxu0 %v3914
  %4110 = vmatpush.msra.mxu0 %v3913
  %4111 = vmatpush.msra.mxu0 %v3912
  %4112 = vmatpush.msra.mxu0 %v3911
  %4113 = vmatpush.msra.mxu0 %v3910
  %4114 = vmatpush.msra.mxu0 %v3909
  %4115 = vmatmul.f32.gmra.mxu0 %v4047
  %v4116 = vpop.f32.mrf.mxu0
  %v4117 = vadd.f32 %v4070, %v4116
  %4118 = vmatmul.f32.gmra.mxu0 %v4051
  %v4119 = vpop.f32.mrf.mxu0
  %v4120 = vadd.f32 %v4075, %v4119
  %4121 = vmatmul.f32.gmra.mxu0 %v4055
  %v4122 = vpop.f32.mrf.mxu0
  %v4123 = vadd.f32 %v4080, %v4122
  %4124 = vmatmul.f32.gmra.mxu0 %v4059
  %v4125 = vpop.f32.mrf.mxu0
  %v4126 = vadd.f32 %v4085, %v4125
  %4127 = vdwg.mxu0
  %4128 = vmatpush.msra.mxu0 %v3988
  %4129 = vmatpush.msra.mxu0 %v3987
  %4130 = vmatpush.msra.mxu0 %v3974
  %4131 = vmatpush.msra.mxu0 %v3973
  %4132 = vmatpush.msra.mxu0 %v3972
  %4133 = vmatpush.msra.mxu0 %v3971
  %4134 = vmatpush.msra.mxu0 %v3970
  %4135 = vmatpush.msra.mxu0 %v3969
  %4136 = vmatpush.msra.mxu0 %v3968
  %4137 = vmatpush.msra.mxu0 %v3967
  %4138 = vmatpush.msra.mxu0 %v3966
  %4139 = vmatpush.msra.mxu0 %v3965
  %4140 = vmatpush.msra.mxu0 %v3964
  %4141 = vmatpush.msra.mxu0 %v3963
  %4142 = vmatpush.msra.mxu0 %v3950
  %4143 = vmatpush.msra.mxu0 %v3949
  %4144 = vmatmul.f32.gmra.mxu0 %v4048
  %v4145 = vpop.f32.mrf.mxu0
  %v4146 = vadd.f32 %v4117, %v4145
  %4147 = vmatmul.f32.gmra.mxu0 %v4052
  %v4148 = vpop.f32.mrf.mxu0
  %v4149 = vadd.f32 %v4120, %v4148
  %4150 = vmatmul.f32.gmra.mxu0 %v4056
  %v4151 = vpop.f32.mrf.mxu0
  %v4152 = vadd.f32 %v4123, %v4151
  %4153 = vmatmul.f32.gmra.mxu0 %v4060
  %v4154 = vpop.f32.mrf.mxu0
  %v4155 = vadd.f32 %v4126, %v4154
  %4156 = vdwg.mxu0
  %4157 = vmatpush.msra.mxu0 %v4028
  %4158 = vmatpush.msra.mxu0 %v4027
  %4159 = vmatpush.msra.mxu0 %v4026
  %4160 = vmatpush.msra.mxu0 %v4025
  %4161 = vmatpush.msra.mxu0 %v4024
  %4162 = vmatpush.msra.mxu0 %v4023
  %4163 = vmatpush.msra.mxu0 %v4010
  %4164 = vmatpush.msra.mxu0 %v4009
  %4165 = vmatpush.msra.mxu0 %v4008
  %4166 = vmatpush.msra.mxu0 %v4007
  %4167 = vmatpush.msra.mxu0 %v4006
  %4168 = vmatpush.msra.mxu0 %v4005
  %4169 = vmatpush.msra.mxu0 %v3992
  %4170 = vmatpush.msra.mxu0 %v3991
  %4171 = vmatpush.msra.mxu0 %v3990
  %4172 = vmatpush.msra.mxu0 %v3989
  %4173 = vmatmul.f32.gmra.mxu0 %v4049
  %v4174 = vpop.f32.mrf.mxu0
  %v4175 = vadd.f32 %v4146, %v4174
  %4176 = vmatmul.f32.gmra.mxu0 %v4053
  %v4177 = vpop.f32.mrf.mxu0
  %v4178 = vadd.f32 %v4149, %v4177
  %4179 = vmatmul.f32.gmra.mxu0 %v4057
  %v4180 = vpop.f32.mrf.mxu0
  %v4181 = vadd.f32 %v4152, %v4180
  %4182 = vmatmul.f32.gmra.mxu0 %v4061
  %v4183 = vpop.f32.mrf.mxu0
  %v4184 = vadd.f32 %v4155, %v4183
  %4185 = vdwg.mxu0
  %4186 = vmatpush.msra.mxu0 0.0
  %4187 = vmatpush.msra.mxu0 0.0
  %4188 = vmatpush.msra.mxu0 0.0
  %4189 = vmatpush.msra.mxu0 0.0
  %4190 = vmatpush.msra.mxu0 0.0
  %4191 = vmatpush.msra.mxu0 0.0
  %4192 = vmatpush.msra.mxu0 0.0
  %4193 = vmatpush.msra.mxu0 0.0
  %4194 = vmatpush.msra.mxu0 0.0
  %4195 = vmatpush.msra.mxu0 0.0
  %4196 = vmatpush.msra.mxu0 %v4046
  %4197 = vmatpush.msra.mxu0 %v4045
  %4198 = vmatpush.msra.mxu0 %v4044
  %4199 = vmatpush.msra.mxu0 %v4043
  %4200 = vmatpush.msra.mxu0 %v4042
  %4201 = vmatpush.msra.mxu0 %v4041
  %4202 = vmatmul.f32.gmra.mxu0 %v4088
  %v4203 = vpop.f32.mrf.mxu0
  %v4204 = vadd.f32 %v4175, %v4203
  %4205 = vmatmul.f32.gmra.mxu0 %v4091
  %v4206 = vpop.f32.mrf.mxu0
  %v4207 = vadd.f32 %v4178, %v4206
  %4208 = vmatmul.f32.gmra.mxu0 %v4094
  %v4209 = vpop.f32.mrf.mxu0
  %v4210 = vadd.f32 %v4181, %v4209
  %4211 = vmatmul.f32.gmra.mxu0 %v4097
  %v4212 = vpop.f32.mrf.mxu0
  %v4213 = vadd.f32 %v4184, %v4212
  %4214 = vdwg.mxu0
  %v4215 = vadd.f32 %v3031, %v4204
  %v4216 = vadd.f32 %v3032, %v4207
  %v4217 = vadd.f32 %v3033, %v4210
  %v4218 = vadd.f32 %v3034, %v4213
  %v4219 = vld [vmem:[%s15] sm:$0xff]
  %v4220 = vld [vmem:[%s15 + $0x8] sm:$0xff]
  %v4221 = vld [vmem:[%s15 + $0x10] sm:$0xff]
  %v4222 = vld [vmem:[%s15 + $0x18] sm:$0xff]
  %v4223 = vld [vmem:[%s15 + $0x20] sm:$0xff]
  %v4224 = vld [vmem:[%s15 + $0x28] sm:$0xff]
  %v4225 = vld [vmem:[%s15 + $0x30] sm:$0xff]
  %v4226 = vld [vmem:[%s15 + $0x38] sm:$0xff]
  %v4227 = vld [vmem:[%s15 + $0x40] sm:$0xff]
  %v4228 = vld [vmem:[%s15 + $0x48] sm:$0xff]
  %v4229 = vld [vmem:[%s15 + $0x50] sm:$0xff]
  %v4230 = vld [vmem:[%s15 + $0x58] sm:$0xff]
  %v4231 = vld [vmem:[%s15 + $0x60] sm:$0xff]
  %v4232 = vld [vmem:[%s15 + $0x68] sm:$0xff]
  %v4233 = vld [vmem:[%s15 + $0x70] sm:$0xff]
  %v4234 = vld [vmem:[%s15 + $0x78] sm:$0xff]
  %v4235 = vld [vmem:[%s15 + $0x80] sm:$0xff]
  %v4236 = vld [vmem:[%s15 + $0x88] sm:$0xff]
  %v4237 = vld [vmem:[%s15 + $0x90] sm:$0xff]
  %v4238 = vld [vmem:[%s15 + $0x98] sm:$0xff]
  %v4239 = vld [vmem:[%s15 + $0xa0] sm:$0xff]
  %v4240 = vld [vmem:[%s15 + $0xa8] sm:$0xff]
  %v4241 = vld [vmem:[%s15 + $0xb0] sm:$0xff]
  %v4242 = vld [vmem:[%s15 + $0xb8] sm:$0xff]
  %v4243 = vld [vmem:[%s15 + $0xc0] sm:$0xff]
  %v4244 = vld [vmem:[%s15 + $0xc8] sm:$0xff]
  %v4245 = vld [vmem:[%s15 + $0xd0] sm:$0xff]
  %v4246 = vld [vmem:[%s15 + $0xd8] sm:$0xff]
  %v4247 = vld [vmem:[%s15 + $0xe0] sm:$0xff]
  %v4248 = vld [vmem:[%s15 + $0xe8] sm:$0xff]
  %v4249 = vld [vmem:[%s15 + $0xf0] sm:$0xff]
  %v4250 = vld [vmem:[%s15 + $0xf8] sm:$0xff]
  %v4251 = vld [vmem:[%s15 + $0x100] sm:$0xff]
  %v4252 = vld [vmem:[%s15 + $0x108] sm:$0xff]
  %v4253 = vld [vmem:[%s15 + $0x110] sm:$0xff]
  %v4254 = vld [vmem:[%s15 + $0x118] sm:$0xff]
  %v4255 = vld [vmem:[%s15 + $0x120] sm:$0xff]
  %v4256 = vld [vmem:[%s15 + $0x128] sm:$0xff]
  %v4257 = vld [vmem:[%s15 + $0x130] sm:$0xff]
  %v4258 = vld [vmem:[%s15 + $0x138] sm:$0xff]
  %v4259 = vld [vmem:[%s15 + $0x140] sm:$0xff]
  %v4260 = vld [vmem:[%s15 + $0x148] sm:$0xff]
  %v4261 = vld [vmem:[%s15 + $0x150] sm:$0xff]
  %v4262 = vld [vmem:[%s15 + $0x158] sm:$0xff]
  %v4263 = vld [vmem:[%s15 + $0x160] sm:$0xff]
  %v4264 = vld [vmem:[%s15 + $0x168] sm:$0xff]
  %v4265 = vld [vmem:[%s15 + $0x170] sm:$0xff]
  %v4266 = vld [vmem:[%s15 + $0x178] sm:$0xff]
  %v4267 = vld [vmem:[%s15 + $0x180] sm:$0xff]
  %v4268 = vld [vmem:[%s15 + $0x188] sm:$0xff]
  %v4269 = vld [vmem:[%s15 + $0x190] sm:$0xff]
  %v4270 = vld [vmem:[%s15 + $0x198] sm:$0xff]
  %v4271 = vld [vmem:[%s15 + $0x1a0] sm:$0xff]
  %v4272 = vld [vmem:[%s15 + $0x1a8] sm:$0xff]
  %v4273 = vld [vmem:[%s15 + $0x1b0] sm:$0xff]
  %v4274 = vld [vmem:[%s15 + $0x1b8] sm:$0xff]
  %v4275 = vld [vmem:[%s15 + $0x1c0] sm:$0xff]
  %v4276 = vld [vmem:[%s15 + $0x1c8] sm:$0xff]
  %v4277 = vld [vmem:[%s15 + $0x1d0] sm:$0xff]
  %v4278 = vld [vmem:[%s15 + $0x1d8] sm:$0xff]
  %v4279 = vld [vmem:[%s15 + $0x1e0] sm:$0xff]
  %v4280 = vld [vmem:[%s15 + $0x1e8] sm:$0xff]
  %v4281 = vld [vmem:[%s15 + $0x1f0] sm:$0xff]
  %v4282 = vld [vmem:[%s15 + $0x1f8] sm:$0xff]
  %4283 = vmatpush.msra.mxu0 %v4279
  %4284 = vmatpush.msra.mxu0 %v4275
  %4285 = vmatpush.msra.mxu0 %v4271
  %4286 = vmatpush.msra.mxu0 %v4267
  %4287 = vmatpush.msra.mxu0 %v4263
  %4288 = vmatpush.msra.mxu0 %v4259
  %4289 = vmatpush.msra.mxu0 %v4255
  %4290 = vmatpush.msra.mxu0 %v4251
  %4291 = vmatpush.msra.mxu0 %v4247
  %4292 = vmatpush.msra.mxu0 %v4243
  %4293 = vmatpush.msra.mxu0 %v4239
  %4294 = vmatpush.msra.mxu0 %v4235
  %4295 = vmatpush.msra.mxu0 %v4231
  %4296 = vmatpush.msra.mxu0 %v4227
  %4297 = vmatpush.msra.mxu0 %v4223
  %4298 = vmatpush.msra.mxu0 %v4219
  %4299 = vmatmul.f32.gmra.mxu0 %v4215
  %v4300 = vpop.f32.mrf.mxu0
  %v4301 = vadd.f32 0.0, %v4300
  %4302 = vmatmul.f32.gmra.mxu0 %v4216
  %v4303 = vpop.f32.mrf.mxu0
  %v4304 = vadd.f32 0.0, %v4303
  %4305 = vmatmul.f32.gmra.mxu0 %v4217
  %v4306 = vpop.f32.mrf.mxu0
  %v4307 = vadd.f32 0.0, %v4306
  %4308 = vmatmul.f32.gmra.mxu0 %v4218
  %v4309 = vpop.f32.mrf.mxu0
  %v4310 = vadd.f32 0.0, %v4309
  %4311 = vdwg.mxu0
  %4312 = vmatpush.msra.mxu0 %v4280
  %4313 = vmatpush.msra.mxu0 %v4276
  %4314 = vmatpush.msra.mxu0 %v4272
  %4315 = vmatpush.msra.mxu0 %v4268
  %4316 = vmatpush.msra.mxu0 %v4264
  %4317 = vmatpush.msra.mxu0 %v4260
  %4318 = vmatpush.msra.mxu0 %v4256
  %4319 = vmatpush.msra.mxu0 %v4252
  %4320 = vmatpush.msra.mxu0 %v4248
  %4321 = vmatpush.msra.mxu0 %v4244
  %4322 = vmatpush.msra.mxu0 %v4240
  %4323 = vmatpush.msra.mxu0 %v4236
  %4324 = vmatpush.msra.mxu0 %v4232
  %4325 = vmatpush.msra.mxu0 %v4228
  %4326 = vmatpush.msra.mxu0 %v4224
  %4327 = vmatpush.msra.mxu0 %v4220
  %4328 = vmatmul.f32.gmra.mxu0 %v4215
  %v4329 = vpop.f32.mrf.mxu0
  %v4330 = vadd.f32 0.0, %v4329
  %4331 = vmatmul.f32.gmra.mxu0 %v4216
  %v4332 = vpop.f32.mrf.mxu0
  %v4333 = vadd.f32 0.0, %v4332
  %4334 = vmatmul.f32.gmra.mxu0 %v4217
  %v4335 = vpop.f32.mrf.mxu0
  %v4336 = vadd.f32 0.0, %v4335
  %4337 = vmatmul.f32.gmra.mxu0 %v4218
  %v4338 = vpop.f32.mrf.mxu0
  %v4339 = vadd.f32 0.0, %v4338
  %4340 = vdwg.mxu0
  %4341 = vmatpush.msra.mxu0 %v4281
  %4342 = vmatpush.msra.mxu0 %v4277
  %4343 = vmatpush.msra.mxu0 %v4273
  %4344 = vmatpush.msra.mxu0 %v4269
  %4345 = vmatpush.msra.mxu0 %v4265
  %4346 = vmatpush.msra.mxu0 %v4261
  %4347 = vmatpush.msra.mxu0 %v4257
  %4348 = vmatpush.msra.mxu0 %v4253
  %4349 = vmatpush.msra.mxu0 %v4249
  %4350 = vmatpush.msra.mxu0 %v4245
  %4351 = vmatpush.msra.mxu0 %v4241
  %4352 = vmatpush.msra.mxu0 %v4237
  %4353 = vmatpush.msra.mxu0 %v4233
  %4354 = vmatpush.msra.mxu0 %v4229
  %4355 = vmatpush.msra.mxu0 %v4225
  %4356 = vmatpush.msra.mxu0 %v4221
  %4357 = vmatmul.f32.gmra.mxu0 %v4215
  %v4358 = vpop.f32.mrf.mxu0
  %v4359 = vadd.f32 0.0, %v4358
  %4360 = vmatmul.f32.gmra.mxu0 %v4216
  %v4361 = vpop.f32.mrf.mxu0
  %v4362 = vadd.f32 0.0, %v4361
  %4363 = vmatmul.f32.gmra.mxu0 %v4217
  %v4364 = vpop.f32.mrf.mxu0
  %v4365 = vadd.f32 0.0, %v4364
  %4366 = vmatmul.f32.gmra.mxu0 %v4218
  %v4367 = vpop.f32.mrf.mxu0
  %v4368 = vadd.f32 0.0, %v4367
  %4369 = vdwg.mxu0
  %4370 = vmatpush.msra.mxu0 %v4282
  %4371 = vmatpush.msra.mxu0 %v4278
  %4372 = vmatpush.msra.mxu0 %v4274
  %4373 = vmatpush.msra.mxu0 %v4270
  %4374 = vmatpush.msra.mxu0 %v4266
  %4375 = vmatpush.msra.mxu0 %v4262
  %4376 = vmatpush.msra.mxu0 %v4258
  %4377 = vmatpush.msra.mxu0 %v4254
  %4378 = vmatpush.msra.mxu0 %v4250
  %4379 = vmatpush.msra.mxu0 %v4246
  %4380 = vmatpush.msra.mxu0 %v4242
  %4381 = vmatpush.msra.mxu0 %v4238
  %4382 = vmatpush.msra.mxu0 %v4234
  %4383 = vmatpush.msra.mxu0 %v4230
  %4384 = vmatpush.msra.mxu0 %v4226
  %4385 = vmatpush.msra.mxu0 %v4222
  %4386 = vmatmul.f32.gmra.mxu0 %v4215
  %v4387 = vpop.f32.mrf.mxu0
  %v4388 = vadd.f32 0.0, %v4387
  %4389 = vmatmul.f32.gmra.mxu0 %v4216
  %v4390 = vpop.f32.mrf.mxu0
  %v4391 = vadd.f32 0.0, %v4390
  %4392 = vmatmul.f32.gmra.mxu0 %v4217
  %v4393 = vpop.f32.mrf.mxu0
  %v4394 = vadd.f32 0.0, %v4393
  %4395 = vmatmul.f32.gmra.mxu0 %v4218
  %v4396 = vpop.f32.mrf.mxu0
  %v4397 = vadd.f32 0.0, %v4396
  %4398 = vdwg.mxu0
  %4399 = vrot.lane.b32.xlu0 %v4301, 17
  %v4400 = vpop.permute.xlu0 %4399
  %4401 = vrot.lane.b32.xlu0 %v4304, 17
  %v4402 = vpop.permute.xlu0 %4401
  %4403 = vrot.lane.b32.xlu0 %v4307, 17
  %v4404 = vpop.permute.xlu0 %4403
  %4405 = vrot.lane.b32.xlu0 %v4310, 17
  %v4406 = vpop.permute.xlu0 %4405
  %4407 = vrot.lane.b32.xlu0 %v4330, 17
  %v4408 = vpop.permute.xlu0 %4407
  %4409 = vrot.lane.b32.xlu0 %v4333, 17
  %v4410 = vpop.permute.xlu0 %4409
  %4411 = vrot.lane.b32.xlu0 %v4336, 17
  %v4412 = vpop.permute.xlu0 %4411
  %4413 = vrot.lane.b32.xlu0 %v4339, 17
  %v4414 = vpop.permute.xlu0 %4413
  %4415 = vrot.lane.b32.xlu0 %v4359, 17
  %v4416 = vpop.permute.xlu0 %4415
  %4417 = vrot.lane.b32.xlu0 %v4362, 17
  %v4418 = vpop.permute.xlu0 %4417
  %4419 = vrot.lane.b32.xlu0 %v4365, 17
  %v4420 = vpop.permute.xlu0 %4419
  %4421 = vrot.lane.b32.xlu0 %v4368, 17
  %v4422 = vpop.permute.xlu0 %4421
  %4423 = vrot.lane.b32.xlu0 %v4388, 17
  %v4424 = vpop.permute.xlu0 %4423
  %4425 = vrot.lane.b32.xlu0 %v4391, 17
  %v4426 = vpop.permute.xlu0 %4425
  %4427 = vrot.lane.b32.xlu0 %v4394, 17
  %v4428 = vpop.permute.xlu0 %4427
  %4429 = vrot.lane.b32.xlu0 %v4397, 17
  %v4430 = vpop.permute.xlu0 %4429
  %v4431 = vsel %vm156, %v4416, %v4424
  %v4432 = vsel %vm156, %v4418, %v4426
  %v4433 = vsel %vm156, %v4420, %v4428
  %v4434 = vsel %vm156, %v4422, %v4430
  %v4435 = vsel %vm156, %v4408, %v4416
  %v4436 = vsel %vm156, %v4410, %v4418
  %v4437 = vsel %vm156, %v4412, %v4420
  %v4438 = vsel %vm156, %v4414, %v4422
  %v4439 = vsel %vm156, %v4400, %v4408
  %v4440 = vsel %vm156, %v4402, %v4410
  %v4441 = vsel %vm156, %v4404, %v4412
  %v4442 = vsel %vm156, %v4406, %v4414
  %v4443 = vsel %vm156, %v4424, %v4400
  %v4444 = vsel %vm156, %v4426, %v4402
  %v4445 = vsel %vm156, %v4428, %v4404
  %v4446 = vsel %vm156, %v4430, %v4406
  %v4447 = vmul.f32 %v4443, %v163
  %v4448 = vmul.f32 %v4439, %v164
  %v4449 = vmul.f32 %v4435, %v165
  %v4450 = vmul.f32 %v4431, %v166
  %v4451 = vmul.f32 %v4444, %v163
  %v4452 = vmul.f32 %v4440, %v164
  %v4453 = vmul.f32 %v4436, %v165
  %v4454 = vmul.f32 %v4432, %v166
  %v4455 = vmul.f32 %v4445, %v163
  %v4456 = vmul.f32 %v4441, %v164
  %v4457 = vmul.f32 %v4437, %v165
  %v4458 = vmul.f32 %v4433, %v166
  %v4459 = vmul.f32 %v4446, %v163
  %v4460 = vmul.f32 %v4442, %v164
  %v4461 = vmul.f32 %v4438, %v165
  %v4462 = vmul.f32 %v4434, %v166
  %4463 = vrot.lane.b32.xlu0 %v4301, 16
  %v4464 = vpop.permute.xlu0 %4463
  %4465 = vrot.lane.b32.xlu0 %v4304, 16
  %v4466 = vpop.permute.xlu0 %4465
  %4467 = vrot.lane.b32.xlu0 %v4307, 16
  %v4468 = vpop.permute.xlu0 %4467
  %4469 = vrot.lane.b32.xlu0 %v4310, 16
  %v4470 = vpop.permute.xlu0 %4469
  %4471 = vrot.lane.b32.xlu0 %v4330, 16
  %v4472 = vpop.permute.xlu0 %4471
  %4473 = vrot.lane.b32.xlu0 %v4333, 16
  %v4474 = vpop.permute.xlu0 %4473
  %4475 = vrot.lane.b32.xlu0 %v4336, 16
  %v4476 = vpop.permute.xlu0 %4475
  %4477 = vrot.lane.b32.xlu0 %v4339, 16
  %v4478 = vpop.permute.xlu0 %4477
  %4479 = vrot.lane.b32.xlu0 %v4359, 16
  %v4480 = vpop.permute.xlu0 %4479
  %4481 = vrot.lane.b32.xlu0 %v4362, 16
  %v4482 = vpop.permute.xlu0 %4481
  %4483 = vrot.lane.b32.xlu0 %v4365, 16
  %v4484 = vpop.permute.xlu0 %4483
  %4485 = vrot.lane.b32.xlu0 %v4368, 16
  %v4486 = vpop.permute.xlu0 %4485
  %4487 = vrot.lane.b32.xlu0 %v4388, 16
  %v4488 = vpop.permute.xlu0 %4487
  %4489 = vrot.lane.b32.xlu0 %v4391, 16
  %v4490 = vpop.permute.xlu0 %4489
  %4491 = vrot.lane.b32.xlu0 %v4394, 16
  %v4492 = vpop.permute.xlu0 %4491
  %4493 = vrot.lane.b32.xlu0 %v4397, 16
  %v4494 = vpop.permute.xlu0 %4493
  %v4495 = vsel %vm183, %v4480, %v4488
  %v4496 = vsel %vm183, %v4482, %v4490
  %v4497 = vsel %vm183, %v4484, %v4492
  %v4498 = vsel %vm183, %v4486, %v4494
  %v4499 = vsel %vm183, %v4472, %v4480
  %v4500 = vsel %vm183, %v4474, %v4482
  %v4501 = vsel %vm183, %v4476, %v4484
  %v4502 = vsel %vm183, %v4478, %v4486
  %v4503 = vsel %vm183, %v4464, %v4472
  %v4504 = vsel %vm183, %v4466, %v4474
  %v4505 = vsel %vm183, %v4468, %v4476
  %v4506 = vsel %vm183, %v4470, %v4478
  %v4507 = vsel %vm183, %v4488, %v4464
  %v4508 = vsel %vm183, %v4490, %v4466
  %v4509 = vsel %vm183, %v4492, %v4468
  %v4510 = vsel %vm183, %v4494, %v4470
  %v4511 = vmul.f32 %v4507, %v191
  %v4512 = vmul.f32 %v4503, %v192
  %v4513 = vmul.f32 %v4499, %v193
  %v4514 = vmul.f32 %v4495, %v194
  %v4515 = vmul.f32 %v4508, %v191
  %v4516 = vmul.f32 %v4504, %v192
  %v4517 = vmul.f32 %v4500, %v193
  %v4518 = vmul.f32 %v4496, %v194
  %v4519 = vmul.f32 %v4509, %v191
  %v4520 = vmul.f32 %v4505, %v192
  %v4521 = vmul.f32 %v4501, %v193
  %v4522 = vmul.f32 %v4497, %v194
  %v4523 = vmul.f32 %v4510, %v191
  %v4524 = vmul.f32 %v4506, %v192
  %v4525 = vmul.f32 %v4502, %v193
  %v4526 = vmul.f32 %v4498, %v194
  %4527 = vrot.lane.b32.xlu0 %v4301, 15
  %v4528 = vpop.permute.xlu0 %4527
  %4529 = vrot.lane.b32.xlu0 %v4304, 15
  %v4530 = vpop.permute.xlu0 %4529
  %4531 = vrot.lane.b32.xlu0 %v4307, 15
  %v4532 = vpop.permute.xlu0 %4531
  %4533 = vrot.lane.b32.xlu0 %v4310, 15
  %v4534 = vpop.permute.xlu0 %4533
  %4535 = vrot.lane.b32.xlu0 %v4330, 15
  %v4536 = vpop.permute.xlu0 %4535
  %4537 = vrot.lane.b32.xlu0 %v4333, 15
  %v4538 = vpop.permute.xlu0 %4537
  %4539 = vrot.lane.b32.xlu0 %v4336, 15
  %v4540 = vpop.permute.xlu0 %4539
  %4541 = vrot.lane.b32.xlu0 %v4339, 15
  %v4542 = vpop.permute.xlu0 %4541
  %4543 = vrot.lane.b32.xlu0 %v4359, 15
  %v4544 = vpop.permute.xlu0 %4543
  %4545 = vrot.lane.b32.xlu0 %v4362, 15
  %v4546 = vpop.permute.xlu0 %4545
  %4547 = vrot.lane.b32.xlu0 %v4365, 15
  %v4548 = vpop.permute.xlu0 %4547
  %4549 = vrot.lane.b32.xlu0 %v4368, 15
  %v4550 = vpop.permute.xlu0 %4549
  %4551 = vrot.lane.b32.xlu0 %v4388, 15
  %v4552 = vpop.permute.xlu0 %4551
  %4553 = vrot.lane.b32.xlu0 %v4391, 15
  %v4554 = vpop.permute.xlu0 %4553
  %4555 = vrot.lane.b32.xlu0 %v4394, 15
  %v4556 = vpop.permute.xlu0 %4555
  %4557 = vrot.lane.b32.xlu0 %v4397, 15
  %v4558 = vpop.permute.xlu0 %4557
  %v4559 = vsel %vm211, %v4544, %v4552
  %v4560 = vsel %vm211, %v4546, %v4554
  %v4561 = vsel %vm211, %v4548, %v4556
  %v4562 = vsel %vm211, %v4550, %v4558
  %v4563 = vsel %vm211, %v4536, %v4544
  %v4564 = vsel %vm211, %v4538, %v4546
  %v4565 = vsel %vm211, %v4540, %v4548
  %v4566 = vsel %vm211, %v4542, %v4550
  %v4567 = vsel %vm211, %v4528, %v4536
  %v4568 = vsel %vm211, %v4530, %v4538
  %v4569 = vsel %vm211, %v4532, %v4540
  %v4570 = vsel %vm211, %v4534, %v4542
  %v4571 = vsel %vm211, %v4552, %v4528
  %v4572 = vsel %vm211, %v4554, %v4530
  %v4573 = vsel %vm211, %v4556, %v4532
  %v4574 = vsel %vm211, %v4558, %v4534
  %v4575 = vmul.f32 %v4571, %v219
  %v4576 = vmul.f32 %v4567, %v220
  %v4577 = vmul.f32 %v4563, %v221
  %v4578 = vmul.f32 %v4559, %v222
  %v4579 = vmul.f32 %v4572, %v219
  %v4580 = vmul.f32 %v4568, %v220
  %v4581 = vmul.f32 %v4564, %v221
  %v4582 = vmul.f32 %v4560, %v222
  %v4583 = vmul.f32 %v4573, %v219
  %v4584 = vmul.f32 %v4569, %v220
  %v4585 = vmul.f32 %v4565, %v221
  %v4586 = vmul.f32 %v4561, %v222
  %v4587 = vmul.f32 %v4574, %v219
  %v4588 = vmul.f32 %v4570, %v220
  %v4589 = vmul.f32 %v4566, %v221
  %v4590 = vmul.f32 %v4562, %v222
  %4591 = vrot.lane.b32.xlu0 %v4301, 1
  %v4592 = vpop.permute.xlu0 %4591
  %4593 = vrot.lane.b32.xlu0 %v4304, 1
  %v4594 = vpop.permute.xlu0 %4593
  %4595 = vrot.lane.b32.xlu0 %v4307, 1
  %v4596 = vpop.permute.xlu0 %4595
  %4597 = vrot.lane.b32.xlu0 %v4310, 1
  %v4598 = vpop.permute.xlu0 %4597
  %4599 = vrot.lane.b32.xlu0 %v4330, 1
  %v4600 = vpop.permute.xlu0 %4599
  %4601 = vrot.lane.b32.xlu0 %v4333, 1
  %v4602 = vpop.permute.xlu0 %4601
  %4603 = vrot.lane.b32.xlu0 %v4336, 1
  %v4604 = vpop.permute.xlu0 %4603
  %4605 = vrot.lane.b32.xlu0 %v4339, 1
  %v4606 = vpop.permute.xlu0 %4605
  %4607 = vrot.lane.b32.xlu0 %v4359, 1
  %v4608 = vpop.permute.xlu0 %4607
  %4609 = vrot.lane.b32.xlu0 %v4362, 1
  %v4610 = vpop.permute.xlu0 %4609
  %4611 = vrot.lane.b32.xlu0 %v4365, 1
  %v4612 = vpop.permute.xlu0 %4611
  %4613 = vrot.lane.b32.xlu0 %v4368, 1
  %v4614 = vpop.permute.xlu0 %4613
  %4615 = vrot.lane.b32.xlu0 %v4388, 1
  %v4616 = vpop.permute.xlu0 %4615
  %4617 = vrot.lane.b32.xlu0 %v4391, 1
  %v4618 = vpop.permute.xlu0 %4617
  %4619 = vrot.lane.b32.xlu0 %v4394, 1
  %v4620 = vpop.permute.xlu0 %4619
  %4621 = vrot.lane.b32.xlu0 %v4397, 1
  %v4622 = vpop.permute.xlu0 %4621
  %v4623 = vsel %vm239, %v4608, %v4616
  %v4624 = vsel %vm239, %v4610, %v4618
  %v4625 = vsel %vm239, %v4612, %v4620
  %v4626 = vsel %vm239, %v4614, %v4622
  %v4627 = vsel %vm239, %v4600, %v4608
  %v4628 = vsel %vm239, %v4602, %v4610
  %v4629 = vsel %vm239, %v4604, %v4612
  %v4630 = vsel %vm239, %v4606, %v4614
  %v4631 = vsel %vm239, %v4592, %v4600
  %v4632 = vsel %vm239, %v4594, %v4602
  %v4633 = vsel %vm239, %v4596, %v4604
  %v4634 = vsel %vm239, %v4598, %v4606
  %v4635 = vsel %vm239, %v4616, %v4592
  %v4636 = vsel %vm239, %v4618, %v4594
  %v4637 = vsel %vm239, %v4620, %v4596
  %v4638 = vsel %vm239, %v4622, %v4598
  %v4639 = vmul.f32 %v4635, %v247
  %v4640 = vmul.f32 %v4631, %v248
  %v4641 = vmul.f32 %v4627, %v249
  %v4642 = vmul.f32 %v4623, %v250
  %v4643 = vmul.f32 %v4636, %v247
  %v4644 = vmul.f32 %v4632, %v248
  %v4645 = vmul.f32 %v4628, %v249
  %v4646 = vmul.f32 %v4624, %v250
  %v4647 = vmul.f32 %v4637, %v247
  %v4648 = vmul.f32 %v4633, %v248
  %v4649 = vmul.f32 %v4629, %v249
  %v4650 = vmul.f32 %v4625, %v250
  %v4651 = vmul.f32 %v4638, %v247
  %v4652 = vmul.f32 %v4634, %v248
  %v4653 = vmul.f32 %v4630, %v249
  %v4654 = vmul.f32 %v4626, %v250
  %v4655 = vmul.f32 %v4301, %v1598
  %v4656 = vmul.f32 %v4330, %v1599
  %v4657 = vmul.f32 %v4359, %v1600
  %v4658 = vmul.f32 %v4388, %v1601
  %v4659 = vmul.f32 %v4304, %v1598
  %v4660 = vmul.f32 %v4333, %v1599
  %v4661 = vmul.f32 %v4362, %v1600
  %v4662 = vmul.f32 %v4391, %v1601
  %v4663 = vmul.f32 %v4307, %v1598
  %v4664 = vmul.f32 %v4336, %v1599
  %v4665 = vmul.f32 %v4365, %v1600
  %v4666 = vmul.f32 %v4394, %v1601
  %v4667 = vmul.f32 %v4310, %v1598
  %v4668 = vmul.f32 %v4339, %v1599
  %v4669 = vmul.f32 %v4368, %v1600
  %v4670 = vmul.f32 %v4397, %v1601
  %4671 = vrot.lane.b32.xlu0 %v4301, 127
  %v4672 = vpop.permute.xlu0 %4671
  %4673 = vrot.lane.b32.xlu0 %v4304, 127
  %v4674 = vpop.permute.xlu0 %4673
  %4675 = vrot.lane.b32.xlu0 %v4307, 127
  %v4676 = vpop.permute.xlu0 %4675
  %4677 = vrot.lane.b32.xlu0 %v4310, 127
  %v4678 = vpop.permute.xlu0 %4677
  %4679 = vrot.lane.b32.xlu0 %v4330, 127
  %v4680 = vpop.permute.xlu0 %4679
  %4681 = vrot.lane.b32.xlu0 %v4333, 127
  %v4682 = vpop.permute.xlu0 %4681
  %4683 = vrot.lane.b32.xlu0 %v4336, 127
  %v4684 = vpop.permute.xlu0 %4683
  %4685 = vrot.lane.b32.xlu0 %v4339, 127
  %v4686 = vpop.permute.xlu0 %4685
  %4687 = vrot.lane.b32.xlu0 %v4359, 127
  %v4688 = vpop.permute.xlu0 %4687
  %4689 = vrot.lane.b32.xlu0 %v4362, 127
  %v4690 = vpop.permute.xlu0 %4689
  %4691 = vrot.lane.b32.xlu0 %v4365, 127
  %v4692 = vpop.permute.xlu0 %4691
  %4693 = vrot.lane.b32.xlu0 %v4368, 127
  %v4694 = vpop.permute.xlu0 %4693
  %4695 = vrot.lane.b32.xlu0 %v4388, 127
  %v4696 = vpop.permute.xlu0 %4695
  %4697 = vrot.lane.b32.xlu0 %v4391, 127
  %v4698 = vpop.permute.xlu0 %4697
  %4699 = vrot.lane.b32.xlu0 %v4394, 127
  %v4700 = vpop.permute.xlu0 %4699
  %4701 = vrot.lane.b32.xlu0 %v4397, 127
  %v4702 = vpop.permute.xlu0 %4701
  %v4703 = vsel %vm270, %v4688, %v4696
  %v4704 = vsel %vm270, %v4690, %v4698
  %v4705 = vsel %vm270, %v4692, %v4700
  %v4706 = vsel %vm270, %v4694, %v4702
  %v4707 = vsel %vm270, %v4680, %v4688
  %v4708 = vsel %vm270, %v4682, %v4690
  %v4709 = vsel %vm270, %v4684, %v4692
  %v4710 = vsel %vm270, %v4686, %v4694
  %v4711 = vsel %vm270, %v4672, %v4680
  %v4712 = vsel %vm270, %v4674, %v4682
  %v4713 = vsel %vm270, %v4676, %v4684
  %v4714 = vsel %vm270, %v4678, %v4686
  %v4715 = vsel %vm270, %v4696, %v4672
  %v4716 = vsel %vm270, %v4698, %v4674
  %v4717 = vsel %vm270, %v4700, %v4676
  %v4718 = vsel %vm270, %v4702, %v4678
  %v4719 = vmul.f32 %v4711, %v278
  %v4720 = vmul.f32 %v4707, %v279
  %v4721 = vmul.f32 %v4703, %v280
  %v4722 = vmul.f32 %v4715, %v281
  %v4723 = vmul.f32 %v4712, %v278
  %v4724 = vmul.f32 %v4708, %v279
  %v4725 = vmul.f32 %v4704, %v280
  %v4726 = vmul.f32 %v4716, %v281
  %v4727 = vmul.f32 %v4713, %v278
  %v4728 = vmul.f32 %v4709, %v279
  %v4729 = vmul.f32 %v4705, %v280
  %v4730 = vmul.f32 %v4717, %v281
  %v4731 = vmul.f32 %v4714, %v278
  %v4732 = vmul.f32 %v4710, %v279
  %v4733 = vmul.f32 %v4706, %v280
  %v4734 = vmul.f32 %v4718, %v281
  %4735 = vrot.lane.b32.xlu0 %v4301, 113
  %v4736 = vpop.permute.xlu0 %4735
  %4737 = vrot.lane.b32.xlu0 %v4304, 113
  %v4738 = vpop.permute.xlu0 %4737
  %4739 = vrot.lane.b32.xlu0 %v4307, 113
  %v4740 = vpop.permute.xlu0 %4739
  %4741 = vrot.lane.b32.xlu0 %v4310, 113
  %v4742 = vpop.permute.xlu0 %4741
  %4743 = vrot.lane.b32.xlu0 %v4330, 113
  %v4744 = vpop.permute.xlu0 %4743
  %4745 = vrot.lane.b32.xlu0 %v4333, 113
  %v4746 = vpop.permute.xlu0 %4745
  %4747 = vrot.lane.b32.xlu0 %v4336, 113
  %v4748 = vpop.permute.xlu0 %4747
  %4749 = vrot.lane.b32.xlu0 %v4339, 113
  %v4750 = vpop.permute.xlu0 %4749
  %4751 = vrot.lane.b32.xlu0 %v4359, 113
  %v4752 = vpop.permute.xlu0 %4751
  %4753 = vrot.lane.b32.xlu0 %v4362, 113
  %v4754 = vpop.permute.xlu0 %4753
  %4755 = vrot.lane.b32.xlu0 %v4365, 113
  %v4756 = vpop.permute.xlu0 %4755
  %4757 = vrot.lane.b32.xlu0 %v4368, 113
  %v4758 = vpop.permute.xlu0 %4757
  %4759 = vrot.lane.b32.xlu0 %v4388, 113
  %v4760 = vpop.permute.xlu0 %4759
  %4761 = vrot.lane.b32.xlu0 %v4391, 113
  %v4762 = vpop.permute.xlu0 %4761
  %4763 = vrot.lane.b32.xlu0 %v4394, 113
  %v4764 = vpop.permute.xlu0 %4763
  %4765 = vrot.lane.b32.xlu0 %v4397, 113
  %v4766 = vpop.permute.xlu0 %4765
  %v4767 = vsel %vm298, %v4752, %v4760
  %v4768 = vsel %vm298, %v4754, %v4762
  %v4769 = vsel %vm298, %v4756, %v4764
  %v4770 = vsel %vm298, %v4758, %v4766
  %v4771 = vsel %vm298, %v4744, %v4752
  %v4772 = vsel %vm298, %v4746, %v4754
  %v4773 = vsel %vm298, %v4748, %v4756
  %v4774 = vsel %vm298, %v4750, %v4758
  %v4775 = vsel %vm298, %v4736, %v4744
  %v4776 = vsel %vm298, %v4738, %v4746
  %v4777 = vsel %vm298, %v4740, %v4748
  %v4778 = vsel %vm298, %v4742, %v4750
  %v4779 = vsel %vm298, %v4760, %v4736
  %v4780 = vsel %vm298, %v4762, %v4738
  %v4781 = vsel %vm298, %v4764, %v4740
  %v4782 = vsel %vm298, %v4766, %v4742
  %v4783 = vmul.f32 %v4775, %v306
  %v4784 = vmul.f32 %v4771, %v307
  %v4785 = vmul.f32 %v4767, %v308
  %v4786 = vmul.f32 %v4779, %v309
  %v4787 = vmul.f32 %v4776, %v306
  %v4788 = vmul.f32 %v4772, %v307
  %v4789 = vmul.f32 %v4768, %v308
  %v4790 = vmul.f32 %v4780, %v309
  %v4791 = vmul.f32 %v4777, %v306
  %v4792 = vmul.f32 %v4773, %v307
  %v4793 = vmul.f32 %v4769, %v308
  %v4794 = vmul.f32 %v4781, %v309
  %v4795 = vmul.f32 %v4778, %v306
  %v4796 = vmul.f32 %v4774, %v307
  %v4797 = vmul.f32 %v4770, %v308
  %v4798 = vmul.f32 %v4782, %v309
  %4799 = vrot.lane.b32.xlu0 %v4301, 112
  %v4800 = vpop.permute.xlu0 %4799
  %4801 = vrot.lane.b32.xlu0 %v4304, 112
  %v4802 = vpop.permute.xlu0 %4801
  %4803 = vrot.lane.b32.xlu0 %v4307, 112
  %v4804 = vpop.permute.xlu0 %4803
  %4805 = vrot.lane.b32.xlu0 %v4310, 112
  %v4806 = vpop.permute.xlu0 %4805
  %4807 = vrot.lane.b32.xlu0 %v4330, 112
  %v4808 = vpop.permute.xlu0 %4807
  %4809 = vrot.lane.b32.xlu0 %v4333, 112
  %v4810 = vpop.permute.xlu0 %4809
  %4811 = vrot.lane.b32.xlu0 %v4336, 112
  %v4812 = vpop.permute.xlu0 %4811
  %4813 = vrot.lane.b32.xlu0 %v4339, 112
  %v4814 = vpop.permute.xlu0 %4813
  %4815 = vrot.lane.b32.xlu0 %v4359, 112
  %v4816 = vpop.permute.xlu0 %4815
  %4817 = vrot.lane.b32.xlu0 %v4362, 112
  %v4818 = vpop.permute.xlu0 %4817
  %4819 = vrot.lane.b32.xlu0 %v4365, 112
  %v4820 = vpop.permute.xlu0 %4819
  %4821 = vrot.lane.b32.xlu0 %v4368, 112
  %v4822 = vpop.permute.xlu0 %4821
  %4823 = vrot.lane.b32.xlu0 %v4388, 112
  %v4824 = vpop.permute.xlu0 %4823
  %4825 = vrot.lane.b32.xlu0 %v4391, 112
  %v4826 = vpop.permute.xlu0 %4825
  %4827 = vrot.lane.b32.xlu0 %v4394, 112
  %v4828 = vpop.permute.xlu0 %4827
  %4829 = vrot.lane.b32.xlu0 %v4397, 112
  %v4830 = vpop.permute.xlu0 %4829
  %v4831 = vsel %vm326, %v4816, %v4824
  %v4832 = vsel %vm326, %v4818, %v4826
  %v4833 = vsel %vm326, %v4820, %v4828
  %v4834 = vsel %vm326, %v4822, %v4830
  %v4835 = vsel %vm326, %v4808, %v4816
  %v4836 = vsel %vm326, %v4810, %v4818
  %v4837 = vsel %vm326, %v4812, %v4820
  %v4838 = vsel %vm326, %v4814, %v4822
  %v4839 = vsel %vm326, %v4800, %v4808
  %v4840 = vsel %vm326, %v4802, %v4810
  %v4841 = vsel %vm326, %v4804, %v4812
  %v4842 = vsel %vm326, %v4806, %v4814
  %v4843 = vsel %vm326, %v4824, %v4800
  %v4844 = vsel %vm326, %v4826, %v4802
  %v4845 = vsel %vm326, %v4828, %v4804
  %v4846 = vsel %vm326, %v4830, %v4806
  %v4847 = vmul.f32 %v4839, %v334
  %v4848 = vmul.f32 %v4835, %v335
  %v4849 = vmul.f32 %v4831, %v336
  %v4850 = vmul.f32 %v4843, %v337
  %v4851 = vmul.f32 %v4840, %v334
  %v4852 = vmul.f32 %v4836, %v335
  %v4853 = vmul.f32 %v4832, %v336
  %v4854 = vmul.f32 %v4844, %v337
  %v4855 = vmul.f32 %v4841, %v334
  %v4856 = vmul.f32 %v4837, %v335
  %v4857 = vmul.f32 %v4833, %v336
  %v4858 = vmul.f32 %v4845, %v337
  %v4859 = vmul.f32 %v4842, %v334
  %v4860 = vmul.f32 %v4838, %v335
  %v4861 = vmul.f32 %v4834, %v336
  %v4862 = vmul.f32 %v4846, %v337
  %4863 = vrot.lane.b32.xlu0 %v4301, 111
  %v4864 = vpop.permute.xlu0 %4863
  %4865 = vrot.lane.b32.xlu0 %v4304, 111
  %v4866 = vpop.permute.xlu0 %4865
  %4867 = vrot.lane.b32.xlu0 %v4307, 111
  %v4868 = vpop.permute.xlu0 %4867
  %4869 = vrot.lane.b32.xlu0 %v4310, 111
  %v4870 = vpop.permute.xlu0 %4869
  %4871 = vrot.lane.b32.xlu0 %v4330, 111
  %v4872 = vpop.permute.xlu0 %4871
  %4873 = vrot.lane.b32.xlu0 %v4333, 111
  %v4874 = vpop.permute.xlu0 %4873
  %4875 = vrot.lane.b32.xlu0 %v4336, 111
  %v4876 = vpop.permute.xlu0 %4875
  %4877 = vrot.lane.b32.xlu0 %v4339, 111
  %v4878 = vpop.permute.xlu0 %4877
  %4879 = vrot.lane.b32.xlu0 %v4359, 111
  %v4880 = vpop.permute.xlu0 %4879
  %4881 = vrot.lane.b32.xlu0 %v4362, 111
  %v4882 = vpop.permute.xlu0 %4881
  %4883 = vrot.lane.b32.xlu0 %v4365, 111
  %v4884 = vpop.permute.xlu0 %4883
  %4885 = vrot.lane.b32.xlu0 %v4368, 111
  %v4886 = vpop.permute.xlu0 %4885
  %4887 = vrot.lane.b32.xlu0 %v4388, 111
  %v4888 = vpop.permute.xlu0 %4887
  %4889 = vrot.lane.b32.xlu0 %v4391, 111
  %v4890 = vpop.permute.xlu0 %4889
  %4891 = vrot.lane.b32.xlu0 %v4394, 111
  %v4892 = vpop.permute.xlu0 %4891
  %4893 = vrot.lane.b32.xlu0 %v4397, 111
  %v4894 = vpop.permute.xlu0 %4893
  %v4895 = vsel %vm354, %v4880, %v4888
  %v4896 = vsel %vm354, %v4882, %v4890
  %v4897 = vsel %vm354, %v4884, %v4892
  %v4898 = vsel %vm354, %v4886, %v4894
  %v4899 = vsel %vm354, %v4872, %v4880
  %v4900 = vsel %vm354, %v4874, %v4882
  %v4901 = vsel %vm354, %v4876, %v4884
  %v4902 = vsel %vm354, %v4878, %v4886
  %v4903 = vsel %vm354, %v4864, %v4872
  %v4904 = vsel %vm354, %v4866, %v4874
  %v4905 = vsel %vm354, %v4868, %v4876
  %v4906 = vsel %vm354, %v4870, %v4878
  %v4907 = vsel %vm354, %v4888, %v4864
  %v4908 = vsel %vm354, %v4890, %v4866
  %v4909 = vsel %vm354, %v4892, %v4868
  %v4910 = vsel %vm354, %v4894, %v4870
  %v4911 = vmul.f32 %v4903, %v362
  %v4912 = vmul.f32 %v4899, %v363
  %v4913 = vmul.f32 %v4895, %v364
  %v4914 = vmul.f32 %v4907, %v365
  %v4915 = vmul.f32 %v4904, %v362
  %v4916 = vmul.f32 %v4900, %v363
  %v4917 = vmul.f32 %v4896, %v364
  %v4918 = vmul.f32 %v4908, %v365
  %v4919 = vmul.f32 %v4905, %v362
  %v4920 = vmul.f32 %v4901, %v363
  %v4921 = vmul.f32 %v4897, %v364
  %v4922 = vmul.f32 %v4909, %v365
  %v4923 = vmul.f32 %v4906, %v362
  %v4924 = vmul.f32 %v4902, %v363
  %v4925 = vmul.f32 %v4898, %v364
  %v4926 = vmul.f32 %v4910, %v365
  %v4927 = vld [vmem:[%s57] sm:$0xff]
  %v4928 = vld [vmem:[%s57 + $0x8] sm:$0xff]
  %v4929 = vld [vmem:[%s57 + $0x10] sm:$0xff]
  %v4930 = vld [vmem:[%s57 + $0x18] sm:$0xff]
  %v4931 = vld [vmem:[%s57 + $0x20] sm:$0xff]
  %v4932 = vld [vmem:[%s57 + $0x28] sm:$0xff]
  %v4933 = vld [vmem:[%s59] sm:$0xff]
  %v4934 = vld [vmem:[%s59 + $0x8] sm:$0xff]
  %4936 = vset.pattern.permute.xlu0 0
  %4937 = vperm.xlu0 %4936, %v4933
  %v4938 = vpop.permute.xlu0 %4937
  %4941 = vset.pattern.permute.xlu0 0
  %4942 = vperm.xlu0 %4941, %v4934
  %v4943 = vpop.permute.xlu0 %4942
  %v4946 = vsel %vm2875, %v4929, 0
  %v4949 = vsel %vm2875, %v4932, 0
  %4951 = vmatpush.msra.mxu0 %v4651
  %4952 = vmatpush.msra.mxu0 %v4647
  %4953 = vmatpush.msra.mxu0 %v4643
  %4954 = vmatpush.msra.mxu0 %v4639
  %4955 = vmatpush.msra.mxu0 %v4587
  %4956 = vmatpush.msra.mxu0 %v4583
  %4957 = vmatpush.msra.mxu0 %v4579
  %4958 = vmatpush.msra.mxu0 %v4575
  %4959 = vmatpush.msra.mxu0 %v4523
  %4960 = vmatpush.msra.mxu0 %v4519
  %4961 = vmatpush.msra.mxu0 %v4515
  %4962 = vmatpush.msra.mxu0 %v4511
  %4963 = vmatpush.msra.mxu0 %v4459
  %4964 = vmatpush.msra.mxu0 %v4455
  %4965 = vmatpush.msra.mxu0 %v4451
  %4966 = vmatpush.msra.mxu0 %v4447
  %4967 = vmatmul.f32.gmra.mxu0 %v4927
  %v4968 = vpop.f32.mrf.mxu0
  %v4969 = vadd.f32 %v4938, %v4968
  %4970 = vmatmul.f32.gmra.mxu0 %v4930
  %v4971 = vpop.f32.mrf.mxu0
  %v4972 = vadd.f32 %v4943, %v4971
  %4973 = vdwg.mxu0
  %4974 = vmatpush.msra.mxu0 %v4859
  %4975 = vmatpush.msra.mxu0 %v4855
  %4976 = vmatpush.msra.mxu0 %v4851
  %4977 = vmatpush.msra.mxu0 %v4847
  %4978 = vmatpush.msra.mxu0 %v4795
  %4979 = vmatpush.msra.mxu0 %v4791
  %4980 = vmatpush.msra.mxu0 %v4787
  %4981 = vmatpush.msra.mxu0 %v4783
  %4982 = vmatpush.msra.mxu0 %v4731
  %4983 = vmatpush.msra.mxu0 %v4727
  %4984 = vmatpush.msra.mxu0 %v4723
  %4985 = vmatpush.msra.mxu0 %v4719
  %4986 = vmatpush.msra.mxu0 %v4667
  %4987 = vmatpush.msra.mxu0 %v4663
  %4988 = vmatpush.msra.mxu0 %v4659
  %4989 = vmatpush.msra.mxu0 %v4655
  %4990 = vmatmul.f32.gmra.mxu0 %v4928
  %v4991 = vpop.f32.mrf.mxu0
  %v4992 = vadd.f32 %v4969, %v4991
  %4993 = vmatmul.f32.gmra.mxu0 %v4931
  %v4994 = vpop.f32.mrf.mxu0
  %v4995 = vadd.f32 %v4972, %v4994
  %4996 = vdwg.mxu0
  %4997 = vmatpush.msra.mxu0 0.0
  %4998 = vmatpush.msra.mxu0 0.0
  %4999 = vmatpush.msra.mxu0 0.0
  %5000 = vmatpush.msra.mxu0 0.0
  %5001 = vmatpush.msra.mxu0 0.0
  %5002 = vmatpush.msra.mxu0 0.0
  %5003 = vmatpush.msra.mxu0 0.0
  %5004 = vmatpush.msra.mxu0 0.0
  %5005 = vmatpush.msra.mxu0 0.0
  %5006 = vmatpush.msra.mxu0 0.0
  %5007 = vmatpush.msra.mxu0 0.0
  %5008 = vmatpush.msra.mxu0 0.0
  %5009 = vmatpush.msra.mxu0 %v4923
  %5010 = vmatpush.msra.mxu0 %v4919
  %5011 = vmatpush.msra.mxu0 %v4915
  %5012 = vmatpush.msra.mxu0 %v4911
  %5013 = vmatmul.f32.gmra.mxu0 %v4946
  %v5014 = vpop.f32.mrf.mxu0
  %v5015 = vadd.f32 %v4992, %v5014
  %5016 = vmatmul.f32.gmra.mxu0 %v4949
  %v5017 = vpop.f32.mrf.mxu0
  %v5018 = vadd.f32 %v4995, %v5017
  %5019 = vdwg.mxu0
  %5020 = vmatpush.msra.mxu0 %v4652
  %5021 = vmatpush.msra.mxu0 %v4648
  %5022 = vmatpush.msra.mxu0 %v4644
  %5023 = vmatpush.msra.mxu0 %v4640
  %5024 = vmatpush.msra.mxu0 %v4588
  %5025 = vmatpush.msra.mxu0 %v4584
  %5026 = vmatpush.msra.mxu0 %v4580
  %5027 = vmatpush.msra.mxu0 %v4576
  %5028 = vmatpush.msra.mxu0 %v4524
  %5029 = vmatpush.msra.mxu0 %v4520
  %5030 = vmatpush.msra.mxu0 %v4516
  %5031 = vmatpush.msra.mxu0 %v4512
  %5032 = vmatpush.msra.mxu0 %v4460
  %5033 = vmatpush.msra.mxu0 %v4456
  %5034 = vmatpush.msra.mxu0 %v4452
  %5035 = vmatpush.msra.mxu0 %v4448
  %5036 = vmatmul.f32.gmra.mxu0 %v4927
  %v5037 = vpop.f32.mrf.mxu0
  %v5038 = vadd.f32 %v4938, %v5037
  %5039 = vmatmul.f32.gmra.mxu0 %v4930
  %v5040 = vpop.f32.mrf.mxu0
  %v5041 = vadd.f32 %v4943, %v5040
  %5042 = vdwg.mxu0
  %5043 = vmatpush.msra.mxu0 %v4860
  %5044 = vmatpush.msra.mxu0 %v4856
  %5045 = vmatpush.msra.mxu0 %v4852
  %5046 = vmatpush.msra.mxu0 %v4848
  %5047 = vmatpush.msra.mxu0 %v4796
  %5048 = vmatpush.msra.mxu0 %v4792
  %5049 = vmatpush.msra.mxu0 %v4788
  %5050 = vmatpush.msra.mxu0 %v4784
  %5051 = vmatpush.msra.mxu0 %v4732
  %5052 = vmatpush.msra.mxu0 %v4728
  %5053 = vmatpush.msra.mxu0 %v4724
  %5054 = vmatpush.msra.mxu0 %v4720
  %5055 = vmatpush.msra.mxu0 %v4668
  %5056 = vmatpush.msra.mxu0 %v4664
  %5057 = vmatpush.msra.mxu0 %v4660
  %5058 = vmatpush.msra.mxu0 %v4656
  %5059 = vmatmul.f32.gmra.mxu0 %v4928
  %v5060 = vpop.f32.mrf.mxu0
  %v5061 = vadd.f32 %v5038, %v5060
  %5062 = vmatmul.f32.gmra.mxu0 %v4931
  %v5063 = vpop.f32.mrf.mxu0
  %v5064 = vadd.f32 %v5041, %v5063
  %5065 = vdwg.mxu0
  %5066 = vmatpush.msra.mxu0 0.0
  %5067 = vmatpush.msra.mxu0 0.0
  %5068 = vmatpush.msra.mxu0 0.0
  %5069 = vmatpush.msra.mxu0 0.0
  %5070 = vmatpush.msra.mxu0 0.0
  %5071 = vmatpush.msra.mxu0 0.0
  %5072 = vmatpush.msra.mxu0 0.0
  %5073 = vmatpush.msra.mxu0 0.0
  %5074 = vmatpush.msra.mxu0 0.0
  %5075 = vmatpush.msra.mxu0 0.0
  %5076 = vmatpush.msra.mxu0 0.0
  %5077 = vmatpush.msra.mxu0 0.0
  %5078 = vmatpush.msra.mxu0 %v4924
  %5079 = vmatpush.msra.mxu0 %v4920
  %5080 = vmatpush.msra.mxu0 %v4916
  %5081 = vmatpush.msra.mxu0 %v4912
  %5082 = vmatmul.f32.gmra.mxu0 %v4946
  %v5083 = vpop.f32.mrf.mxu0
  %v5084 = vadd.f32 %v5061, %v5083
  %5085 = vmatmul.f32.gmra.mxu0 %v4949
  %v5086 = vpop.f32.mrf.mxu0
  %v5087 = vadd.f32 %v5064, %v5086
  %5088 = vdwg.mxu0
  %5089 = vmatpush.msra.mxu0 %v4653
  %5090 = vmatpush.msra.mxu0 %v4649
  %5091 = vmatpush.msra.mxu0 %v4645
  %5092 = vmatpush.msra.mxu0 %v4641
  %5093 = vmatpush.msra.mxu0 %v4589
  %5094 = vmatpush.msra.mxu0 %v4585
  %5095 = vmatpush.msra.mxu0 %v4581
  %5096 = vmatpush.msra.mxu0 %v4577
  %5097 = vmatpush.msra.mxu0 %v4525
  %5098 = vmatpush.msra.mxu0 %v4521
  %5099 = vmatpush.msra.mxu0 %v4517
  %5100 = vmatpush.msra.mxu0 %v4513
  %5101 = vmatpush.msra.mxu0 %v4461
  %5102 = vmatpush.msra.mxu0 %v4457
  %5103 = vmatpush.msra.mxu0 %v4453
  %5104 = vmatpush.msra.mxu0 %v4449
  %5105 = vmatmul.f32.gmra.mxu0 %v4927
  %v5106 = vpop.f32.mrf.mxu0
  %v5107 = vadd.f32 %v4938, %v5106
  %5108 = vmatmul.f32.gmra.mxu0 %v4930
  %v5109 = vpop.f32.mrf.mxu0
  %v5110 = vadd.f32 %v4943, %v5109
  %5111 = vdwg.mxu0
  %5112 = vmatpush.msra.mxu0 %v4861
  %5113 = vmatpush.msra.mxu0 %v4857
  %5114 = vmatpush.msra.mxu0 %v4853
  %5115 = vmatpush.msra.mxu0 %v4849
  %5116 = vmatpush.msra.mxu0 %v4797
  %5117 = vmatpush.msra.mxu0 %v4793
  %5118 = vmatpush.msra.mxu0 %v4789
  %5119 = vmatpush.msra.mxu0 %v4785
  %5120 = vmatpush.msra.mxu0 %v4733
  %5121 = vmatpush.msra.mxu0 %v4729
  %5122 = vmatpush.msra.mxu0 %v4725
  %5123 = vmatpush.msra.mxu0 %v4721
  %5124 = vmatpush.msra.mxu0 %v4669
  %5125 = vmatpush.msra.mxu0 %v4665
  %5126 = vmatpush.msra.mxu0 %v4661
  %5127 = vmatpush.msra.mxu0 %v4657
  %5128 = vmatmul.f32.gmra.mxu0 %v4928
  %v5129 = vpop.f32.mrf.mxu0
  %v5130 = vadd.f32 %v5107, %v5129
  %5131 = vmatmul.f32.gmra.mxu0 %v4931
  %v5132 = vpop.f32.mrf.mxu0
  %v5133 = vadd.f32 %v5110, %v5132
  %5134 = vdwg.mxu0
  %5135 = vmatpush.msra.mxu0 0.0
  %5136 = vmatpush.msra.mxu0 0.0
  %5137 = vmatpush.msra.mxu0 0.0
  %5138 = vmatpush.msra.mxu0 0.0
  %5139 = vmatpush.msra.mxu0 0.0
  %5140 = vmatpush.msra.mxu0 0.0
  %5141 = vmatpush.msra.mxu0 0.0
  %5142 = vmatpush.msra.mxu0 0.0
  %5143 = vmatpush.msra.mxu0 0.0
  %5144 = vmatpush.msra.mxu0 0.0
  %5145 = vmatpush.msra.mxu0 0.0
  %5146 = vmatpush.msra.mxu0 0.0
  %5147 = vmatpush.msra.mxu0 %v4925
  %5148 = vmatpush.msra.mxu0 %v4921
  %5149 = vmatpush.msra.mxu0 %v4917
  %5150 = vmatpush.msra.mxu0 %v4913
  %5151 = vmatmul.f32.gmra.mxu0 %v4946
  %v5152 = vpop.f32.mrf.mxu0
  %v5153 = vadd.f32 %v5130, %v5152
  %5154 = vmatmul.f32.gmra.mxu0 %v4949
  %v5155 = vpop.f32.mrf.mxu0
  %v5156 = vadd.f32 %v5133, %v5155
  %5157 = vdwg.mxu0
  %5158 = vmatpush.msra.mxu0 %v4654
  %5159 = vmatpush.msra.mxu0 %v4650
  %5160 = vmatpush.msra.mxu0 %v4646
  %5161 = vmatpush.msra.mxu0 %v4642
  %5162 = vmatpush.msra.mxu0 %v4590
  %5163 = vmatpush.msra.mxu0 %v4586
  %5164 = vmatpush.msra.mxu0 %v4582
  %5165 = vmatpush.msra.mxu0 %v4578
  %5166 = vmatpush.msra.mxu0 %v4526
  %5167 = vmatpush.msra.mxu0 %v4522
  %5168 = vmatpush.msra.mxu0 %v4518
  %5169 = vmatpush.msra.mxu0 %v4514
  %5170 = vmatpush.msra.mxu0 %v4462
  %5171 = vmatpush.msra.mxu0 %v4458
  %5172 = vmatpush.msra.mxu0 %v4454
  %5173 = vmatpush.msra.mxu0 %v4450
  %5174 = vmatmul.f32.gmra.mxu0 %v4927
  %v5175 = vpop.f32.mrf.mxu0
  %v5176 = vadd.f32 %v4938, %v5175
  %5177 = vmatmul.f32.gmra.mxu0 %v4930
  %v5178 = vpop.f32.mrf.mxu0
  %v5179 = vadd.f32 %v4943, %v5178
  %5180 = vdwg.mxu0
  %5181 = vmatpush.msra.mxu0 %v4862
  %5182 = vmatpush.msra.mxu0 %v4858
  %5183 = vmatpush.msra.mxu0 %v4854
  %5184 = vmatpush.msra.mxu0 %v4850
  %5185 = vmatpush.msra.mxu0 %v4798
  %5186 = vmatpush.msra.mxu0 %v4794
  %5187 = vmatpush.msra.mxu0 %v4790
  %5188 = vmatpush.msra.mxu0 %v4786
  %5189 = vmatpush.msra.mxu0 %v4734
  %5190 = vmatpush.msra.mxu0 %v4730
  %5191 = vmatpush.msra.mxu0 %v4726
  %5192 = vmatpush.msra.mxu0 %v4722
  %5193 = vmatpush.msra.mxu0 %v4670
  %5194 = vmatpush.msra.mxu0 %v4666
  %5195 = vmatpush.msra.mxu0 %v4662
  %5196 = vmatpush.msra.mxu0 %v4658
  %5197 = vmatmul.f32.gmra.mxu0 %v4928
  %v5198 = vpop.f32.mrf.mxu0
  %v5199 = vadd.f32 %v5176, %v5198
  %5200 = vmatmul.f32.gmra.mxu0 %v4931
  %v5201 = vpop.f32.mrf.mxu0
  %v5202 = vadd.f32 %v5179, %v5201
  %5203 = vdwg.mxu0
  %5204 = vmatpush.msra.mxu0 0.0
  %5205 = vmatpush.msra.mxu0 0.0
  %5206 = vmatpush.msra.mxu0 0.0
  %5207 = vmatpush.msra.mxu0 0.0
  %5208 = vmatpush.msra.mxu0 0.0
  %5209 = vmatpush.msra.mxu0 0.0
  %5210 = vmatpush.msra.mxu0 0.0
  %5211 = vmatpush.msra.mxu0 0.0
  %5212 = vmatpush.msra.mxu0 0.0
  %5213 = vmatpush.msra.mxu0 0.0
  %5214 = vmatpush.msra.mxu0 0.0
  %5215 = vmatpush.msra.mxu0 0.0
  %5216 = vmatpush.msra.mxu0 %v4926
  %5217 = vmatpush.msra.mxu0 %v4922
  %5218 = vmatpush.msra.mxu0 %v4918
  %5219 = vmatpush.msra.mxu0 %v4914
  %5220 = vmatmul.f32.gmra.mxu0 %v4946
  %v5221 = vpop.f32.mrf.mxu0
  %v5222 = vadd.f32 %v5199, %v5221
  %5223 = vmatmul.f32.gmra.mxu0 %v4949
  %v5224 = vpop.f32.mrf.mxu0
  %v5225 = vadd.f32 %v5202, %v5224
  %5226 = vdwg.mxu0
  %v5227 = vadd.f32 %v1989, %v5015
  %v5228 = vadd.f32 %v1990, %v5084
  %v5229 = vadd.f32 %v1991, %v5153
  %v5230 = vadd.f32 %v1992, %v5222
  %v5231 = vadd.f32 %v1993, %v5018
  %v5232 = vadd.f32 %v1994, %v5087
  %v5233 = vadd.f32 %v1995, %v5156
  %v5234 = vadd.f32 %v1996, %v5225
  %v5235 = vld [vmem:[%s61] sm:$0x1]
  %v5236 = vld [vmem:[#allocation2] sm:$0x1]
  %5238 = vset.pattern.permute.xlu0 0
  %5239 = vperm.xlu0 %5238, %v5236
  %v5240 = vpop.permute.xlu0 %5239
  %v5242 = vperm.slane %v5240, 0
  %v5244 = vsel %vm1758, %v5235, 0
  %5246 = vmatpush.msra.mxu0 0.0
  %5247 = vmatpush.msra.mxu0 0.0
  %5248 = vmatpush.msra.mxu0 0.0
  %5249 = vmatpush.msra.mxu0 0.0
  %5250 = vmatpush.msra.mxu0 0.0
  %5251 = vmatpush.msra.mxu0 0.0
  %5252 = vmatpush.msra.mxu0 0.0
  %5253 = vmatpush.msra.mxu0 0.0
  %5254 = vmatpush.msra.mxu0 0.0
  %5255 = vmatpush.msra.mxu0 0.0
  %5256 = vmatpush.msra.mxu0 0.0
  %5257 = vmatpush.msra.mxu0 0.0
  %5258 = vmatpush.msra.mxu0 0.0
  %5259 = vmatpush.msra.mxu0 0.0
  %5260 = vmatpush.msra.mxu0 %v5231
  %5261 = vmatpush.msra.mxu0 %v5227
  %5262 = vmatmul.f32.gmra.mxu0 %v5244
  %v5263 = vpop.f32.mrf.mxu0
  %v5264 = vadd.f32 %v5242, %v5263
  %5265 = vdwg.mxu0
  %5266 = vmatpush.msra.mxu0 0.0
  %5267 = vmatpush.msra.mxu0 0.0
  %5268 = vmatpush.msra.mxu0 0.0
  %5269 = vmatpush.msra.mxu0 0.0
  %5270 = vmatpush.msra.mxu0 0.0
  %5271 = vmatpush.msra.mxu0 0.0
  %5272 = vmatpush.msra.mxu0 0.0
  %5273 = vmatpush.msra.mxu0 0.0
  %5274 = vmatpush.msra.mxu0 0.0
  %5275 = vmatpush.msra.mxu0 0.0
  %5276 = vmatpush.msra.mxu0 0.0
  %5277 = vmatpush.msra.mxu0 0.0
  %5278 = vmatpush.msra.mxu0 0.0
  %5279 = vmatpush.msra.mxu0 0.0
  %5280 = vmatpush.msra.mxu0 %v5232
  %5281 = vmatpush.msra.mxu0 %v5228
  %5282 = vmatmul.f32.gmra.mxu0 %v5244
  %v5283 = vpop.f32.mrf.mxu0
  %v5284 = vadd.f32 %v5242, %v5283
  %5285 = vdwg.mxu0
  %5286 = vmatpush.msra.mxu0 0.0
  %5287 = vmatpush.msra.mxu0 0.0
  %5288 = vmatpush.msra.mxu0 0.0
  %5289 = vmatpush.msra.mxu0 0.0
  %5290 = vmatpush.msra.mxu0 0.0
  %5291 = vmatpush.msra.mxu0 0.0
  %5292 = vmatpush.msra.mxu0 0.0
  %5293 = vmatpush.msra.mxu0 0.0
  %5294 = vmatpush.msra.mxu0 0.0
  %5295 = vmatpush.msra.mxu0 0.0
  %5296 = vmatpush.msra.mxu0 0.0
  %5297 = vmatpush.msra.mxu0 0.0
  %5298 = vmatpush.msra.mxu0 0.0
  %5299 = vmatpush.msra.mxu0 0.0
  %5300 = vmatpush.msra.mxu0 %v5233
  %5301 = vmatpush.msra.mxu0 %v5229
  %5302 = vmatmul.f32.gmra.mxu0 %v5244
  %v5303 = vpop.f32.mrf.mxu0
  %v5304 = vadd.f32 %v5242, %v5303
  %5305 = vdwg.mxu0
  %5306 = vmatpush.msra.mxu0 0.0
  %5307 = vmatpush.msra.mxu0 0.0
  %5308 = vmatpush.msra.mxu0 0.0
  %5309 = vmatpush.msra.mxu0 0.0
  %5310 = vmatpush.msra.mxu0 0.0
  %5311 = vmatpush.msra.mxu0 0.0
  %5312 = vmatpush.msra.mxu0 0.0
  %5313 = vmatpush.msra.mxu0 0.0
  %5314 = vmatpush.msra.mxu0 0.0
  %5315 = vmatpush.msra.mxu0 0.0
  %5316 = vmatpush.msra.mxu0 0.0
  %5317 = vmatpush.msra.mxu0 0.0
  %5318 = vmatpush.msra.mxu0 0.0
  %5319 = vmatpush.msra.mxu0 0.0
  %5320 = vmatpush.msra.mxu0 %v5234
  %5321 = vmatpush.msra.mxu0 %v5230
  %5322 = vmatmul.f32.gmra.mxu0 %v5244
  %v5323 = vpop.f32.mrf.mxu0
  %v5324 = vadd.f32 %v5242, %v5323
  %5325 = vdwg.mxu0
  %v5330 = vrot.slane %v5284, 7
  %v5331 = vrot.slane %v5304, 6
  %v5332 = vrot.slane %v5324, 5
  %v5333 = vsel %vm387, %v5264, %v5330
  %vm5334 = vcmask 1042434
  %v5335 = vsel %vm5334, %v5331, %v5332
  %vm5336 = vcmask 1041408
  %v5337 = vsel %vm5336, %v5333, %v5335
  %v5339 = vlaneseq
  %vm5340 = vcmp.ge.s32.totalorder %v5339, 0
  %vm5341 = vcmp.lt.s32.totalorder %v5339, 512
  %vm5342 = vmand %vm5340, %vm5341
  %5343 = vst.msk [vmem:[%s65] sm:$0xf] %vm5342, %v5337
  // Predicated region
  $region130: #{denoise_net_pallas.1} parent=0 // pred_check
    _
  $region131: #{denoise_net_pallas.1} parent=0 // pred_check_branch
    %5345 = sbr.rel (0) target = $region133
  $region132: #{denoise_net_pallas.1} parent=0 // pred_region
    _
  $region133: #{denoise_net_pallas.1} parent=0 // pred_fallthru
    _
  // Predicated region
  $region134: #{denoise_net_pallas.1} parent=0 // pred_check
    _
  $region135: #{denoise_net_pallas.1} parent=0 // pred_check_branch
    %5347 = sbr.rel (0) target = $region137
  $region136: #{denoise_net_pallas.1} parent=0 // pred_region
    _
  $region137: #{denoise_net_pallas.1} parent=0 // pred_fallthru
    _

</llo_original>
